<compile_context>
chip_gen: v7x
topology: tpu7x:2x2x1
jax: 0.10.0
libtpu: 0.0.40
codegen_flags: <defaults>
</compile_context>

<pallas_src>
import functools

import jax
import jax.numpy as jnp
import numpy as np
from jax import lax
from jax.experimental import pallas as pl
from jax.experimental.pallas import tpu as pltpu

EPS = 1e-5  # nn.LayerNorm default

# ------------------------- packed parameter indices ---------------------------
# stacked (C, C) matrices (bf16)
SA_WQ, SA_WK, SA_WV, SA_PW = 0, 1, 2, 3
KNN_WA, KNN_WD, MRG_WA, MRG_WB = 4, 5, 6, 7
CA_WQ, CA_WK, CA_WV, CA_PW = 8, 9, 10, 11
KNX_WA, KNX_WD, MRX_WA, MRX_WB = 12, 13, 14, 15
# stacked (1, C) vectors (f32)
LN1_W, LN1_B, SA_PB, KNN_B, MRG_B = 0, 1, 2, 3, 4
LNQ_W, LNQ_B, LNV_W, LNV_B, CA_PB, KNX_B, MRX_B = 5, 6, 7, 8, 9, 10, 11
LN2_W, LN2_B, FC2_B = 12, 13, 14

GATHER_CHUNK = 512  # max source rows per one-hot gather matmul


# ----------------------------- in-kernel helpers -----------------------------

def _mxu(a, w):
    # activation cast to bf16 (no-op if already bf16), weight assumed bf16,
    # f32 accumulate -> native MXU rate on v5e/v6e/v7x.
    return jnp.dot(a.astype(jnp.bfloat16), w, preferred_element_type=jnp.float32)


def _layernorm(x, w, b):
    # x: (N, C); w, b: (1, C) -- biased variance, matches torch LayerNorm
    mu = jnp.mean(x, axis=-1, keepdims=True)
    var = jnp.mean((x - mu) ** 2, axis=-1, keepdims=True)
    return (x - mu) * lax.rsqrt(var + EPS) * w + b


def _leaky_relu(x):
    return jnp.where(x >= 0, x, 0.2 * x)


def _gelu_erf(x):   # exact GELU (torch nn.GELU default)
    return 0.5 * x * (1.0 + lax.erf(x * 0.7071067811865475))


def _gelu_tanh(x):  # tanh approximation fallback
    return 0.5 * x * (1.0 + jnp.tanh(0.7978845608028654 * (x + 0.044715 * x * x * x)))


def _mha_fused(Qb, Kb, Vb, pw, pb, o_scr, num_heads):
    """Multi-head attention; per-head outputs land in lane-slices of o_scr,
    then ONE full-contraction projection matmul (per perf review)."""
    C = Qb.shape[-1]
    hd = C // num_heads
    # NOTE: Python unroll over heads is fine at these sizes; for large N use
    # lax.fori_loop(unroll=True) so per-head temporaries do not stay live.
    for h in range(num_heads):
        sl = slice(h * hd, (h + 1) * hd)
        # scale already folded into WQ at pack time -> no score scaling here.
        s = lax.dot_general(Qb[:, sl], Kb[:, sl], (((1,), (1,)), ((), ())),
                            preferred_element_type=jnp.float32)      # (Nq, Nk)
        s = s - jnp.max(s, axis=-1, keepdims=True)
        e = jnp.exp(s)
        p_attn = e / jnp.sum(e, axis=-1, keepdims=True)              # exact recip
        o_h = jnp.dot(p_attn.astype(jnp.bfloat16), Vb[:, sl],
                      preferred_element_type=jnp.float32)            # (Nq, hd)
        o_scr[:, sl] = o_h.astype(jnp.bfloat16)
    return jnp.dot(o_scr[...], pw, preferred_element_type=jnp.float32) + pb


def _knn_gather_max(idx, src_b, wa, n_pts, k):
    """max_j (src[idx[j, n]] @ wa) for every query point n.

    idx   : (k, n_pts) int32, lane-dense (idx[j, n] == torch idx[n, j])
    src_b : (m_src, C) bf16 rows to gather from (already LayerNorm-ed)
    Project-then-gather; the gather is a chunked one-hot MXU matmul so the
    transient one-hot never exceeds (GATHER_CHUNK, n_pts).
    """
    m_src = src_b.shape[0]
    proj = jnp.dot(src_b, wa, preferred_element_type=jnp.float32)     # (m_src, C)
    proj_b = proj.astype(jnp.bfloat16)
    # TODO(synk): indices are assumed valid in [0, m_src); padded point clouds
    #             would need masking here.
    gmax = None
    for j in range(k):
        idx_row = idx[j:j + 1, :]                                      # (1, n_pts)
        acc = None
        for c0 in range(0, m_src, GATHER_CHUNK):
            cs = min(GATHER_CHUNK, m_src - c0)
            pos = lax.broadcasted_iota(jnp.int32, (cs, n_pts), 0) + c0
            oh = jnp.where(idx_row == pos, 1.0, 0.0).astype(jnp.bfloat16)  # (cs, n)
            g = lax.dot_general(oh, proj_b[c0:c0 + cs, :],
                                (((0,), (0,)), ((), ())),
                                preferred_element_type=jnp.float32)    # (n, C)
            acc = g if acc is None else acc + g
        gmax = acc if gmax is None else jnp.maximum(gmax, acc)
    return gmax


# ------------------------------ fused kernel ----------------------------------

def _transformer_kernel(q_ref, v_ref, sidx_ref, cidx_ref,
                        wcc_ref, vec_ref, fc1w_ref, fc1b_ref, fc2w_ref,
                        out_ref, o_scr, *, num_heads, n_pts, k, gelu):
    x = q_ref[0]            # (N, C) f32 residual stream for this batch element
    vv = v_ref[0]           # (M, C) f32
    sidx = sidx_ref[0]      # (k, N) int32
    cidx = cidx_ref[0]      # (k, N) int32

    def vrow(i):            # (1, C) broadcast row from the packed vector table
        return vec_ref[i:i + 1, :]

    def mat(i):             # (C, C) bf16 from the packed matrix table
        return wcc_ref[i]

    # ---------- branch 1: norm1 -> self-attention + kNN(self) graph feature ----
    nq = _layernorm(x, vrow(LN1_W), vrow(LN1_B))
    nq_b = nq.astype(jnp.bfloat16)                       # hoisted cast, reused 5x
    Qb = _mxu(nq_b, mat(SA_WQ)).astype(jnp.bfloat16)     # WQ pre-scaled
    Kb = _mxu(nq_b, mat(SA_WK)).astype(jnp.bfloat16)
    Vb = _mxu(nq_b, mat(SA_WV)).astype(jnp.bfloat16)
    attn = _mha_fused(Qb, Kb, Vb, mat(SA_PW), vrow(SA_PB), o_scr, num_heads)

    # knn_map(cat(lv - nq, nq)) = lv@Wa + nq@(Wb - Wa) + b ; max over k commutes
    # with the monotone LeakyReLU and the per-point (j-independent) term.
    gmax = _knn_gather_max(sidx, nq_b, mat(KNN_WA), n_pts, k)
    knn = _leaky_relu(gmax + _mxu(nq_b, mat(KNN_WD)) + vrow(KNN_B))
    # merge_map(cat(attn, knn)) with split weights -> no concatenate
    x = x + _mxu(attn, mat(MRG_WA)) + _mxu(knn, mat(MRG_WB)) + vrow(MRG_B)

    # ---------- branch 2: norm_q/norm_v -> cross-attention + kNN(cross) --------
    nqc = _layernorm(x, vrow(LNQ_W), vrow(LNQ_B))
    nqc_b = nqc.astype(jnp.bfloat16)
    nv = _layernorm(vv, vrow(LNV_W), vrow(LNV_B))
    nv_b = nv.astype(jnp.bfloat16)
    Qb = _mxu(nqc_b, mat(CA_WQ)).astype(jnp.bfloat16)
    Kb = _mxu(nv_b, mat(CA_WK)).astype(jnp.bfloat16)
    Vb = _mxu(nv_b, mat(CA_WV)).astype(jnp.bfloat16)
    attn = _mha_fused(Qb, Kb, Vb, mat(CA_PW), vrow(CA_PB), o_scr, num_heads)

    gmax = _knn_gather_max(cidx, nv_b, mat(KNX_WA), n_pts, k)
    knn = _leaky_relu(gmax + _mxu(nqc_b, mat(KNX_WD)) + vrow(KNX_B))
    x = x + _mxu(attn, mat(MRX_WA)) + _mxu(knn, mat(MRX_WB)) + vrow(MRX_B)

    # ---------- MLP (norm2 -> fc1 -> GELU -> fc2) + residual ----------
    n2 = _layernorm(x, vrow(LN2_W), vrow(LN2_B))
    h = gelu(_mxu(n2, fc1w_ref[...]) + fc1b_ref[...])
    x = x + _mxu(h, fc2w_ref[...]) + vrow(FC2_B)

    # TODO(synk): for small C (<128) a lane-dense (N*C/128, 128) output view
    #             would avoid masked stores; irrelevant at production C=384.
    out_ref[0] = x


# --------------------------- pallas_call wrapper -------------------------------

def _full_spec(a):
    # TODO(synk): on v7x, mark these constant weight refs single-buffered
    #             (pipeline_mode=pl.Buffered(1)) to halve their VMEM footprint.
    nd = a.ndim
    return pl.BlockSpec(a.shape, lambda b, _nd=nd: (0,) * _nd)


def pack_params(p, C, scale):
    """Stack per-layer weights into small tables; bf16 weights, f32 vectors."""
    knn_a = p["knn_w"][:C]
    knn_d = p["knn_w"][C:] - knn_a
    knx_a = p["knnx_w"][:C]
    knx_d = p["knnx_w"][C:] - knx_a
    wcc = jnp.stack([
        p["sa_wq"] * scale, p["sa_wk"], p["sa_wv"], p["sa_pw"],   # scale folded in
        knn_a, knn_d, p["merge_w"][:C], p["merge_w"][C:],
        p["ca_wq"] * scale, p["ca_wk"], p["ca_wv"], p["ca_pw"],
        knx_a, knx_d, p["mergex_w"][:C], p["mergex_w"][C:],
    ]).astype(jnp.bfloat16)                                       # (16, C, C) bf16
    vec = jnp.concatenate([
        p["ln1_w"], p["ln1_b"], p["sa_pb"], p["knn_b"], p["merge_b"],
        p["lnq_w"], p["lnq_b"], p["lnv_w"], p["lnv_b"], p["ca_pb"],
        p["knnx_b"], p["mergex_b"], p["ln2_w"], p["ln2_b"], p["fc2_b"],
    ], axis=0)                                                    # (15, C) f32
    return wcc, vec


def transformer_forward(q, v, self_knn_index, cross_knn_index, p,
                        *, num_heads, scale, k, gelu):
    B, N, C = q.shape
    M = v.shape[1]
    wcc, vec = pack_params(p, C, scale)
    fc1w = p["fc1_w"].astype(jnp.bfloat16)
    fc1b = p["fc1_b"]
    fc2w = p["fc2_w"].astype(jnp.bfloat16)
    # lane-dense kNN indices: (B, k, N) int32 (idx[b, j, n] == torch idx[b, n, j])
    sidx = jnp.transpose(self_knn_index, (0, 2, 1)).astype(jnp.int32)
    cidx = jnp.transpose(cross_knn_index, (0, 2, 1)).astype(jnp.int32)

    kernel = functools.partial(_transformer_kernel, num_heads=num_heads,
                               n_pts=N, k=k, gelu=gelu)
    fn = pl.pallas_call(
        kernel,
        grid=(B,),
        in_specs=[
            pl.BlockSpec((1, N, C), lambda b: (b, 0, 0)),         # q
            pl.BlockSpec((1, M, C), lambda b: (b, 0, 0)),         # v
            pl.BlockSpec((1, k, N), lambda b: (b, 0, 0)),         # self knn idx
            pl.BlockSpec((1, k, N), lambda b: (b, 0, 0)),         # cross knn idx
            _full_spec(wcc), _full_spec(vec),
            _full_spec(fc1w), _full_spec(fc1b), _full_spec(fc2w),
        ],
        out_specs=pl.BlockSpec((1, N, C), lambda b: (b, 0, 0)),
        out_shape=jax.ShapeDtypeStruct((B, N, C), jnp.float32),
        scratch_shapes=[pltpu.VMEM((N, C), jnp.bfloat16)],        # per-head attn out
        # "parallel" over B: each v7x TensorCore takes one batch element; on
        # single-TC v5e/v6e this is one cheap serial grid step.
        # TODO(synk): at production N tile the query axis as a second
        #             "parallel" grid dim and raise vmem_limit accordingly.
        compiler_params=pltpu.CompilerParams(
            dimension_semantics=("parallel",),
            vmem_limit_bytes=32 * 1024 * 1024),
    )
    return fn(q, v, sidx, cidx, wcc, vec, fc1w, fc1b, fc2w)


# --------------------------------- JAX glue ------------------------------------

def index_points(points, idx):
    # points (B, M, C), idx (B, N, K) -> (B, N, K, C)
    return jax.vmap(lambda pts, i: pts[i])(points, idx)


def graph_feature(qn, vn, idx):
    local_v = index_points(vn, idx)                       # (B, N, K, C)
    qe = jnp.broadcast_to(qn[:, :, None, :], local_v.shape)
    return jnp.concatenate([local_v - qe, qe], axis=-1)   # (B, N, K, 2C)


def knn_idx(q_pos, v_pos, k):
    d = jnp.sum((q_pos[:, :, None, :] - v_pos[:, None, :, :]) ** 2, axis=-1)
    return jnp.argsort(d, axis=-1)[..., :k].astype(jnp.int32)


# ------------------------------ pure-JAX reference ----------------------------

def transformer_ref(q, v, self_idx, cross_idx, p, num_heads, scale, gelu):
    def ln(x, w, b):
        mu = x.mean(-1, keepdims=True)
        var = ((x - mu) ** 2).mean(-1, keepdims=True)
        return (x - mu) / jnp.sqrt(var + EPS) * w[0] + b[0]

    def mha(Q, K, V):
        B, N, C = Q.shape
        M = K.shape[1]
        hd = C // num_heads
        Qh = Q.reshape(B, N, num_heads, hd).transpose(0, 2, 1, 3)
        Kh = K.reshape(B, M, num_heads, hd).transpose(0, 2, 1, 3)
        Vh = V.reshape(B, M, num_heads, hd).transpose(0, 2, 1, 3)
        a = jnp.einsum("bhnd,bhmd->bhnm", Qh, Kh) * scale
        a = jax.nn.softmax(a, axis=-1)
        o = jnp.einsum("bhnm,bhmd->bhnd", a, Vh)
        return o.transpose(0, 2, 1, 3).reshape(B, N, C)

    def leaky(x):
        return jnp.where(x >= 0, x, 0.2 * x)

    nq = ln(q, p["ln1_w"], p["ln1_b"])
    sa = mha(nq @ p["sa_wq"], nq @ p["sa_wk"], nq @ p["sa_wv"]) @ p["sa_pw"] + p["sa_pb"][0]
    f = graph_feature(nq, nq, self_idx)
    kn = jnp.max(leaky(f @ p["knn_w"] + p["knn_b"][0]), axis=-2)
    q = q + (jnp.concatenate([sa, kn], -1) @ p["merge_w"] + p["merge_b"][0])

    nq = ln(q, p["lnq_w"], p["lnq_b"])
    nv = ln(v, p["lnv_w"], p["lnv_b"])
    ca = mha(nq @ p["ca_wq"], nv @ p["ca_wk"], nv @ p["ca_wv"]) @ p["ca_pw"] + p["ca_pb"][0]
    f = graph_feature(nq, nv, cross_idx)
    kn = jnp.max(leaky(f @ p["knnx_w"] + p["knnx_b"][0]), axis=-2)
    q = q + (jnp.concatenate([ca, kn], -1) @ p["mergex_w"] + p["mergex_b"][0])

    n2 = ln(q, p["ln2_w"], p["ln2_b"])
    mlp = gelu(n2 @ p["fc1_w"] + p["fc1_b"][0]) @ p["fc2_w"] + p["fc2_b"][0]
    return q + mlp


# ------------------------------ parameter init ---------------------------------

def init_params(key, dim, hidden):
    keys = iter(jax.random.split(key, 32))

    def w(shape, s=0.05):
        return (s * jax.random.normal(next(keys), shape)).astype(jnp.float32)

    def ln_wb():
        return ((1.0 + 0.1 * jax.random.normal(next(keys), (1, dim))).astype(jnp.float32),
                (0.1 * jax.random.normal(next(keys), (1, dim))).astype(jnp.float32))

    p = {}
    p["ln1_w"], p["ln1_b"] = ln_wb()
    p["sa_wq"], p["sa_wk"], p["sa_wv"] = w((dim, dim)), w((dim, dim)), w((dim, dim))
    p["sa_pw"], p["sa_pb"] = w((dim, dim)), w((1, dim))
    p["knn_w"], p["knn_b"] = w((2 * dim, dim)), w((1, dim))
    p["merge_w"], p["merge_b"] = w((2 * dim, dim)), w((1, dim))
    p["lnq_w"], p["lnq_b"] = ln_wb()
    p["lnv_w"], p["lnv_b"] = ln_wb()
    p["ca_wq"], p["ca_wk"], p["ca_wv"] = w((dim, dim)), w((dim, dim)), w((dim, dim))
    p["ca_pw"], p["ca_pb"] = w((dim, dim)), w((1, dim))
    p["knnx_w"], p["knnx_b"] = w((2 * dim, dim)), w((1, dim))
    p["mergex_w"], p["mergex_b"] = w((2 * dim, dim)), w((1, dim))
    p["ln2_w"], p["ln2_b"] = ln_wb()
    p["fc1_w"], p["fc1_b"] = w((dim, hidden)), w((1, hidden))
    p["fc2_w"], p["fc2_b"] = w((hidden, dim)), w((1, dim))
    return p


def _erf_in_pallas_supported():
    def kern(x_ref, o_ref):
        o_ref[...] = lax.erf(x_ref[...])
    try:
        f = pl.pallas_call(kern, out_shape=jax.ShapeDtypeStruct((8, 128), jnp.float32))
        jax.block_until_ready(f(jnp.zeros((8, 128), jnp.float32)))
        return True
    except Exception:
        return False


# ----------------------------------- main --------------------------------------

if __name__ == "__main__":
    B, N, M, C, H, K, HID = 2, 16, 16, 32, 4, 8, 128   # mlp_ratio=4 -> hidden=128
    scale = (C // H) ** -0.5

    key = jax.random.PRNGKey(0)
    kq, kv, kqp, kvp, kp = jax.random.split(key, 5)
    q = jax.random.normal(kq, (B, N, C), jnp.float32)
    v = jax.random.normal(kv, (B, M, C), jnp.float32)
    q_pos = jax.random.normal(kqp, (B, N, 3), jnp.float32)
    v_pos = jax.random.normal(kvp, (B, M, 3), jnp.float32)
    p = init_params(kp, C, HID)

    self_knn_index = knn_idx(q_pos, q_pos, K)     # (B, N, K)
    cross_knn_index = knn_idx(q_pos, v_pos, K)    # (B, N, K)

    # nn.GELU default is the exact (erf) GELU; fall back to tanh approx if the
    # backend cannot lower erf inside Pallas.
    # TODO(synk): if the tanh fallback triggers, GELU differs slightly from torch's exact erf GELU.
    gelu = _gelu_erf if _erf_in_pallas_supported() else _gelu_tanh

    fwd = jax.jit(functools.partial(transformer_forward, num_heads=H, scale=scale,
                                    k=K, gelu=gelu))
    out = jax.block_until_ready(fwd(q, v, self_knn_index, cross_knn_index, p))

    # fp32 "highest"-precision reference (faithful to the torch fp32 module).
    with jax.default_matmul_precision("highest"):
        ref = jax.block_until_ready(
            transformer_ref(q, v, self_knn_index, cross_knn_index, p, H, scale, _gelu_erf))

    out_np, ref_np = np.asarray(out), np.asarray(ref)
    # Tolerance covers bf16-in / f32-acc MXU matmuls vs the fp32-"highest" reference.
    if not np.allclose(out_np, ref_np, atol=3e-2, rtol=3e-2):
        raise AssertionError(
            "Pallas output does not match JAX reference "
            f"(max abs err {float(np.max(np.abs(out_np - ref_np))):.4e})")
    print("KERNEL_OK")
</pallas_src>

<mosaic_0001>
module attributes {stable_mosaic.version = 11 : i64} {
  func.func @kern(%arg0: memref<8x128xf32, #tpu.memory_space<vmem>>, %arg1: memref<8x128xf32, #tpu.memory_space<vmem>>) attributes {dimension_semantics = [], scalar_prefetch = 0 : i64, scratch_operands = 0 : i64, tpu.core_type = #tpu.core_type<tc>} {
    %c0 = arith.constant 0 : index
    %c0_0 = arith.constant 0 : index
    %0 = vector.load %arg0[%c0, %c0_0] : memref<8x128xf32, #tpu.memory_space<vmem>>, vector<8x128xf32>
    %1 = math.erf %0 : vector<8x128xf32>
    %c0_1 = arith.constant 0 : index
    %c0_2 = arith.constant 0 : index
    %2 = vector.load %arg1[%c0_1, %c0_2] : memref<8x128xf32, #tpu.memory_space<vmem>>, vector<8x128xf32>
    tpu.vector_store %arg1[%c0_1, %c0_2], %1 {strides = array<i32>} : memref<8x128xf32, #tpu.memory_space<vmem>>, vector<8x128xf32>,
    return
  }
}

module attributes {stable_mosaic.version = 11 : i64} {
  func.func @_transformer_kernel(%arg0: i32, %arg1: memref<1x16x32xf32, #tpu.memory_space<vmem>>, %arg2: memref<1x16x32xf32, #tpu.memory_space<vmem>>, %arg3: memref<1x8x16xi32, #tpu.memory_space<vmem>>, %arg4: memref<1x8x16xi32, #tpu.memory_space<vmem>>, %arg5: memref<16x32x32xbf16, #tpu.memory_space<vmem>>, %arg6: memref<15x32xf32, #tpu.memory_space<vmem>>, %arg7: memref<32x128xbf16, #tpu.memory_space<vmem>>, %arg8: memref<1x128xf32, #tpu.memory_space<vmem>>, %arg9: memref<128x32xbf16, #tpu.memory_space<vmem>>, %arg10: memref<1x16x32xf32, #tpu.memory_space<vmem>>, %arg11: memref<16x32xbf16, #tpu.memory_space<vmem>>) attributes {dimension_semantics = [#tpu.dimension_semantics<parallel>], iteration_bounds = array<i64: 2>, scalar_prefetch = 0 : i64, scratch_operands = 1 : i64, tpu.core_type = #tpu.core_type<tc>, window_params = [{transform_indices = @transform_0, window_bounds = array<i64: 1, 16, 32>}, {transform_indices = @transform_1, window_bounds = array<i64: 1, 16, 32>}, {transform_indices = @transform_2, window_bounds = array<i64: 1, 8, 16>}, {transform_indices = @transform_3, window_bounds = array<i64: 1, 8, 16>}, {pipeline_mode = #tpu.pipeline_mode<synchronous>, transform_indices = @transform_4, window_bounds = array<i64: 16, 32, 32>}, {pipeline_mode = #tpu.pipeline_mode<synchronous>, transform_indices = @transform_5, window_bounds = array<i64: 15, 32>}, {pipeline_mode = #tpu.pipeline_mode<synchronous>, transform_indices = @transform_6, window_bounds = array<i64: 32, 128>}, {pipeline_mode = #tpu.pipeline_mode<synchronous>, transform_indices = @transform_7, window_bounds = array<i64: 1, 128>}, {pipeline_mode = #tpu.pipeline_mode<synchronous>, transform_indices = @transform_8, window_bounds = array<i64: 128, 32>}, {transform_indices = @transform_9, window_bounds = array<i64: 1, 16, 32>}]} {
    %c0 = arith.constant 0 : index
    %c0_0 = arith.constant 0 : index
    %c0_1 = arith.constant 0 : index
    %0 = vector.load %arg1[%c0, %c0_0, %c0_1] : memref<1x16x32xf32, #tpu.memory_space<vmem>>, vector<1x16x32xf32>
    %1 = vector.shape_cast %0 : vector<1x16x32xf32> to vector<16x32xf32>
    %c0_2 = arith.constant 0 : index
    %c0_3 = arith.constant 0 : index
    %c0_4 = arith.constant 0 : index
    %2 = vector.load %arg2[%c0_2, %c0_3, %c0_4] : memref<1x16x32xf32, #tpu.memory_space<vmem>>, vector<1x16x32xf32>
    %3 = vector.shape_cast %2 : vector<1x16x32xf32> to vector<16x32xf32>
    %c0_5 = arith.constant 0 : index
    %c0_6 = arith.constant 0 : index
    %c0_7 = arith.constant 0 : index
    %4 = vector.load %arg3[%c0_5, %c0_6, %c0_7] : memref<1x8x16xi32, #tpu.memory_space<vmem>>, vector<1x8x16xi32>
    %5 = vector.shape_cast %4 : vector<1x8x16xi32> to vector<8x16xi32>
    %c0_8 = arith.constant 0 : index
    %c0_9 = arith.constant 0 : index
    %c0_10 = arith.constant 0 : index
    %6 = vector.load %arg4[%c0_8, %c0_9, %c0_10] : memref<1x8x16xi32, #tpu.memory_space<vmem>>, vector<1x8x16xi32>
    %7 = vector.shape_cast %6 : vector<1x8x16xi32> to vector<8x16xi32>
    %c0_11 = arith.constant 0 : index
    %c0_12 = arith.constant 0 : index
    %8 = vector.load %arg6[%c0_11, %c0_12] : memref<15x32xf32, #tpu.memory_space<vmem>>, vector<1x32xf32>
    %c1 = arith.constant 1 : index
    %c0_13 = arith.constant 0 : index
    %9 = vector.load %arg6[%c1, %c0_13] : memref<15x32xf32, #tpu.memory_space<vmem>>, vector<1x32xf32>
    %cst = arith.constant dense<0.000000e+00> : vector<16xf32>
    %10 = vector.multi_reduction <add>, %1, %cst [1] : vector<16x32xf32> to vector<16xf32>
    %11 = vector.shape_cast %10 : vector<16xf32> to vector<16x1xf32>
    %cst_14 = arith.constant 3.200000e+01 : f32
    %12 = vector.broadcast %cst_14 : f32 to vector<16x1xf32>
    %13 = arith.divf %11, %12 : vector<16x1xf32>
    %14 = vector.broadcast %13 : vector<16x1xf32> to vector<16x32xf32>
    %15 = arith.subf %1, %14 : vector<16x32xf32>
    %16 = arith.mulf %15, %15 : vector<16x32xf32>
    %cst_15 = arith.constant dense<0.000000e+00> : vector<16xf32>
    %17 = vector.multi_reduction <add>, %16, %cst_15 [1] : vector<16x32xf32> to vector<16xf32>
    %18 = vector.shape_cast %17 : vector<16xf32> to vector<16x1xf32>
    %cst_16 = arith.constant 3.200000e+01 : f32
    %19 = vector.broadcast %cst_16 : f32 to vector<16x1xf32>
    %20 = arith.divf %18, %19 : vector<16x1xf32>
    %21 = vector.broadcast %13 : vector<16x1xf32> to vector<16x32xf32>
    %22 = arith.subf %1, %21 : vector<16x32xf32>
    %cst_17 = arith.constant 9.99999974E-6 : f32
    %23 = vector.broadcast %cst_17 : f32 to vector<16x1xf32>
    %24 = arith.addf %20, %23 : vector<16x1xf32>
    %25 = math.rsqrt %24 : vector<16x1xf32>
    %26 = vector.broadcast %25 : vector<16x1xf32> to vector<16x32xf32>
    %27 = arith.mulf %22, %26 : vector<16x32xf32>
    %28 = vector.broadcast %8 : vector<1x32xf32> to vector<16x32xf32>
    %29 = arith.mulf %27, %28 : vector<16x32xf32>
    %30 = vector.broadcast %9 : vector<1x32xf32> to vector<16x32xf32>
    %31 = arith.addf %29, %30 : vector<16x32xf32>
    %32 = arith.truncf %31 : vector<16x32xf32> to vector<16x32xbf16>
    %c0_18 = arith.constant 0 : index
    %c0_19 = arith.constant 0 : index
    %c0_20 = arith.constant 0 : index
    %33 = vector.load %arg5[%c0_18, %c0_19, %c0_20] : memref<16x32x32xbf16, #tpu.memory_space<vmem>>, vector<1x32x32xbf16>
    %34 = vector.shape_cast %33 : vector<1x32x32xbf16> to vector<32x32xbf16>
    %cst_21 = arith.constant dense<0.000000e+00> : vector<16x32xf32>
    %35 = tpu.matmul %32, %34, %cst_21 {dimension_numbers = #tpu.dot_dimension_numbers<[1], [0], [0], [1], [0, 0, 1, 1], [], []>} : vector<16x32xbf16>, vector<32x32xbf16>, vector<16x32xf32> -> vector<16x32xf32>
    %36 = arith.truncf %35 : vector<16x32xf32> to vector<16x32xbf16>
    %c1_22 = arith.constant 1 : index
    %c0_23 = arith.constant 0 : index
    %c0_24 = arith.constant 0 : index
    %37 = vector.load %arg5[%c1_22, %c0_23, %c0_24] : memref<16x32x32xbf16, #tpu.memory_space<vmem>>, vector<1x32x32xbf16>
    %38 = vector.shape_cast %37 : vector<1x32x32xbf16> to vector<32x32xbf16>
    %cst_25 = arith.constant dense<0.000000e+00> : vector<16x32xf32>
    %39 = tpu.matmul %32, %38, %cst_25 {dimension_numbers = #tpu.dot_dimension_numbers<[1], [0], [0], [1], [0, 0, 1, 1], [], []>} : vector<16x32xbf16>, vector<32x32xbf16>, vector<16x32xf32> -> vector<16x32xf32>
    %40 = arith.truncf %39 : vector<16x32xf32> to vector<16x32xbf16>
    %c2 = arith.constant 2 : index
    %c0_26 = arith.constant 0 : index
    %c0_27 = arith.constant 0 : index
    %41 = vector.load %arg5[%c2, %c0_26, %c0_27] : memref<16x32x32xbf16, #tpu.memory_space<vmem>>, vector<1x32x32xbf16>
    %42 = vector.shape_cast %41 : vector<1x32x32xbf16> to vector<32x32xbf16>
    %cst_28 = arith.constant dense<0.000000e+00> : vector<16x32xf32>
    %43 = tpu.matmul %32, %42, %cst_28 {dimension_numbers = #tpu.dot_dimension_numbers<[1], [0], [0], [1], [0, 0, 1, 1], [], []>} : vector<16x32xbf16>, vector<32x32xbf16>, vector<16x32xf32> -> vector<16x32xf32>
    %44 = arith.truncf %43 : vector<16x32xf32> to vector<16x32xbf16>
    %c3 = arith.constant 3 : index
    %c0_29 = arith.constant 0 : index
    %c0_30 = arith.constant 0 : index
    %45 = vector.load %arg5[%c3, %c0_29, %c0_30] : memref<16x32x32xbf16, #tpu.memory_space<vmem>>, vector<1x32x32xbf16>
    %46 = vector.shape_cast %45 : vector<1x32x32xbf16> to vector<32x32xbf16>
    %c2_31 = arith.constant 2 : index
    %c0_32 = arith.constant 0 : index
    %47 = vector.load %arg6[%c2_31, %c0_32] : memref<15x32xf32, #tpu.memory_space<vmem>>, vector<1x32xf32>
    %48 = vector.extract_strided_slice %36 {offsets = [0, 0], sizes = [16, 8], strides = [1, 1]} : vector<16x32xbf16> to vector<16x8xbf16>
    %49 = vector.extract_strided_slice %40 {offsets = [0, 0], sizes = [16, 8], strides = [1, 1]} : vector<16x32xbf16> to vector<16x8xbf16>
    %cst_33 = arith.constant dense<0.000000e+00> : vector<16x16xf32>
    %50 = tpu.matmul %48, %49, %cst_33 {dimension_numbers = #tpu.dot_dimension_numbers<[1], [1], [0], [0], [0, 0, 1, 0], [], []>} : vector<16x8xbf16>, vector<16x8xbf16>, vector<16x16xf32> -> vector<16x16xf32>
    %cst_34 = arith.constant dense<0xFF800000> : vector<16xf32>
    %51 = vector.multi_reduction <maximumf>, %50, %cst_34 [1] : vector<16x16xf32> to vector<16xf32>
    %52 = vector.shape_cast %51 : vector<16xf32> to vector<16x1xf32>
    %53 = vector.broadcast %52 : vector<16x1xf32> to vector<16x16xf32>
    %54 = arith.subf %50, %53 : vector<16x16xf32>
    %55 = math.exp %54 : vector<16x16xf32>
    %cst_35 = arith.constant dense<0.000000e+00> : vector<16xf32>
    %56 = vector.multi_reduction <add>, %55, %cst_35 [1] : vector<16x16xf32> to vector<16xf32>
    %57 = vector.shape_cast %56 : vector<16xf32> to vector<16x1xf32>
    %58 = vector.broadcast %57 : vector<16x1xf32> to vector<16x16xf32>
    %59 = arith.divf %55, %58 : vector<16x16xf32>
    %60 = arith.truncf %59 : vector<16x16xf32> to vector<16x16xbf16>
    %61 = vector.extract_strided_slice %44 {offsets = [0, 0], sizes = [16, 8], strides = [1, 1]} : vector<16x32xbf16> to vector<16x8xbf16>
    %cst_36 = arith.constant dense<0.000000e+00> : vector<16x8xf32>
    %62 = tpu.matmul %60, %61, %cst_36 {dimension_numbers = #tpu.dot_dimension_numbers<[1], [0], [0], [1], [0, 0, 1, 1], [], []>} : vector<16x16xbf16>, vector<16x8xbf16>, vector<16x8xf32> -> vector<16x8xf32>
    %63 = arith.truncf %62 : vector<16x8xf32> to vector<16x8xbf16>
    %c0_37 = arith.constant 0 : index
    %c0_38 = arith.constant 0 : index
    %64 = vector.load %arg11[%c0_37, %c0_38] : memref<16x32xbf16, #tpu.memory_space<vmem>>, vector<16x8xbf16>
    tpu.vector_store %arg11[%c0_37, %c0_38], %63 {strides = array<i32>} : memref<16x32xbf16, #tpu.memory_space<vmem>>, vector<16x8xbf16>,
    %65 = vector.extract_strided_slice %36 {offsets = [0, 8], sizes = [16, 8], strides = [1, 1]} : vector<16x32xbf16> to vector<16x8xbf16>
    %66 = vector.extract_strided_slice %40 {offsets = [0, 8], sizes = [16, 8], strides = [1, 1]} : vector<16x32xbf16> to vector<16x8xbf16>
    %cst_39 = arith.constant dense<0.000000e+00> : vector<16x16xf32>
    %67 = tpu.matmul %65, %66, %cst_39 {dimension_numbers = #tpu.dot_dimension_numbers<[1], [1], [0], [0], [0, 0, 1, 0], [], []>} : vector<16x8xbf16>, vector<16x8xbf16>, vector<16x16xf32> -> vector<16x16xf32>
    %cst_40 = arith.constant dense<0xFF800000> : vector<16xf32>
    %68 = vector.multi_reduction <maximumf>, %67, %cst_40 [1] : vector<16x16xf32> to vector<16xf32>
    %69 = vector.shape_cast %68 : vector<16xf32> to vector<16x1xf32>
    %70 = vector.broadcast %69 : vector<16x1xf32> to vector<16x16xf32>
    %71 = arith.subf %67, %70 : vector<16x16xf32>
    %72 = math.exp %71 : vector<16x16xf32>
    %cst_41 = arith.constant dense<0.000000e+00> : vector<16xf32>
    %73 = vector.multi_reduction <add>, %72, %cst_41 [1] : vector<16x16xf32> to vector<16xf32>
    %74 = vector.shape_cast %73 : vector<16xf32> to vector<16x1xf32>
    %75 = vector.broadcast %74 : vector<16x1xf32> to vector<16x16xf32>
    %76 = arith.divf %72, %75 : vector<16x16xf32>
    %77 = arith.truncf %76 : vector<16x16xf32> to vector<16x16xbf16>
    %78 = vector.extract_strided_slice %44 {offsets = [0, 8], sizes = [16, 8], strides = [1, 1]} : vector<16x32xbf16> to vector<16x8xbf16>
    %cst_42 = arith.constant dense<0.000000e+00> : vector<16x8xf32>
    %79 = tpu.matmul %77, %78, %cst_42 {dimension_numbers = #tpu.dot_dimension_numbers<[1], [0], [0], [1], [0, 0, 1, 1], [], []>} : vector<16x16xbf16>, vector<16x8xbf16>, vector<16x8xf32> -> vector<16x8xf32>
    %80 = arith.truncf %79 : vector<16x8xf32> to vector<16x8xbf16>
    %c0_43 = arith.constant 0 : index
    %c8 = arith.constant 8 : index
    %81 = vector.load %arg11[%c0_43, %c8] : memref<16x32xbf16, #tpu.memory_space<vmem>>, vector<16x8xbf16>
    tpu.vector_store %arg11[%c0_43, %c8], %80 {strides = array<i32>} : memref<16x32xbf16, #tpu.memory_space<vmem>>, vector<16x8xbf16>,
    %82 = vector.extract_strided_slice %36 {offsets = [0, 16], sizes = [16, 8], strides = [1, 1]} : vector<16x32xbf16> to vector<16x8xbf16>
    %83 = vector.extract_strided_slice %40 {offsets = [0, 16], sizes = [16, 8], strides = [1, 1]} : vector<16x32xbf16> to vector<16x8xbf16>
    %cst_44 = arith.constant dense<0.000000e+00> : vector<16x16xf32>
    %84 = tpu.matmul %82, %83, %cst_44 {dimension_numbers = #tpu.dot_dimension_numbers<[1], [1], [0], [0], [0, 0, 1, 0], [], []>} : vector<16x8xbf16>, vector<16x8xbf16>, vector<16x16xf32> -> vector<16x16xf32>
    %cst_45 = arith.constant dense<0xFF800000> : vector<16xf32>
    %85 = vector.multi_reduction <maximumf>, %84, %cst_45 [1] : vector<16x16xf32> to vector<16xf32>
    %86 = vector.shape_cast %85 : vector<16xf32> to vector<16x1xf32>
    %87 = vector.broadcast %86 : vector<16x1xf32> to vector<16x16xf32>
    %88 = arith.subf %84, %87 : vector<16x16xf32>
    %89 = math.exp %88 : vector<16x16xf32>
    %cst_46 = arith.constant dense<0.000000e+00> : vector<16xf32>
    %90 = vector.multi_reduction <add>, %89, %cst_46 [1] : vector<16x16xf32> to vector<16xf32>
    %91 = vector.shape_cast %90 : vector<16xf32> to vector<16x1xf32>
    %92 = vector.broadcast %91 : vector<16x1xf32> to vector<16x16xf32>
    %93 = arith.divf %89, %92 : vector<16x16xf32>
    %94 = arith.truncf %93 : vector<16x16xf32> to vector<16x16xbf16>
    %95 = vector.extract_strided_slice %44 {offsets = [0, 16], sizes = [16, 8], strides = [1, 1]} : vector<16x32xbf16> to vector<16x8xbf16>
    %cst_47 = arith.constant dense<0.000000e+00> : vector<16x8xf32>
    %96 = tpu.matmul %94, %95, %cst_47 {dimension_numbers = #tpu.dot_dimension_numbers<[1], [0], [0], [1], [0, 0, 1, 1], [], []>} : vector<16x16xbf16>, vector<16x8xbf16>, vector<16x8xf32> -> vector<16x8xf32>
    %97 = arith.truncf %96 : vector<16x8xf32> to vector<16x8xbf16>
    %c0_48 = arith.constant 0 : index
    %c16 = arith.constant 16 : index
    %98 = vector.load %arg11[%c0_48, %c16] : memref<16x32xbf16, #tpu.memory_space<vmem>>, vector<16x8xbf16>
    tpu.vector_store %arg11[%c0_48, %c16], %97 {strides = array<i32>} : memref<16x32xbf16, #tpu.memory_space<vmem>>, vector<16x8xbf16>,
    %99 = vector.extract_strided_slice %36 {offsets = [0, 24], sizes = [16, 8], strides = [1, 1]} : vector<16x32xbf16> to vector<16x8xbf16>
    %100 = vector.extract_strided_slice %40 {offsets = [0, 24], sizes = [16, 8], strides = [1, 1]} : vector<16x32xbf16> to vector<16x8xbf16>
    %cst_49 = arith.constant dense<0.000000e+00> : vector<16x16xf32>
    %101 = tpu.matmul %99, %100, %cst_49 {dimension_numbers = #tpu.dot_dimension_numbers<[1], [1], [0], [0], [0, 0, 1, 0], [], []>} : vector<16x8xbf16>, vector<16x8xbf16>, vector<16x16xf32> -> vector<16x16xf32>
    %cst_50 = arith.constant dense<0xFF800000> : vector<16xf32>
    %102 = vector.multi_reduction <maximumf>, %101, %cst_50 [1] : vector<16x16xf32> to vector<16xf32>
    %103 = vector.shape_cast %102 : vector<16xf32> to vector<16x1xf32>
    %104 = vector.broadcast %103 : vector<16x1xf32> to vector<16x16xf32>
    %105 = arith.subf %101, %104 : vector<16x16xf32>
    %106 = math.exp %105 : vector<16x16xf32>
    %cst_51 = arith.constant dense<0.000000e+00> : vector<16xf32>
    %107 = vector.multi_reduction <add>, %106, %cst_51 [1] : vector<16x16xf32> to vector<16xf32>
    %108 = vector.shape_cast %107 : vector<16xf32> to vector<16x1xf32>
    %109 = vector.broadcast %108 : vector<16x1xf32> to vector<16x16xf32>
    %110 = arith.divf %106, %109 : vector<16x16xf32>
    %111 = arith.truncf %110 : vector<16x16xf32> to vector<16x16xbf16>
    %112 = vector.extract_strided_slice %44 {offsets = [0, 24], sizes = [16, 8], strides = [1, 1]} : vector<16x32xbf16> to vector<16x8xbf16>
    %cst_52 = arith.constant dense<0.000000e+00> : vector<16x8xf32>
    %113 = tpu.matmul %111, %112, %cst_52 {dimension_numbers = #tpu.dot_dimension_numbers<[1], [0], [0], [1], [0, 0, 1, 1], [], []>} : vector<16x16xbf16>, vector<16x8xbf16>, vector<16x8xf32> -> vector<16x8xf32>
    %114 = arith.truncf %113 : vector<16x8xf32> to vector<16x8xbf16>
    %c0_53 = arith.constant 0 : index
    %c24 = arith.constant 24 : index
    %115 = vector.load %arg11[%c0_53, %c24] : memref<16x32xbf16, #tpu.memory_space<vmem>>, vector<16x8xbf16>
    tpu.vector_store %arg11[%c0_53, %c24], %114 {strides = array<i32>} : memref<16x32xbf16, #tpu.memory_space<vmem>>, vector<16x8xbf16>,
    %c0_54 = arith.constant 0 : index
    %c0_55 = arith.constant 0 : index
    %116 = vector.load %arg11[%c0_54, %c0_55] : memref<16x32xbf16, #tpu.memory_space<vmem>>, vector<16x32xbf16>
    %cst_56 = arith.constant dense<0.000000e+00> : vector<16x32xf32>
    %117 = tpu.matmul %116, %46, %cst_56 {dimension_numbers = #tpu.dot_dimension_numbers<[1], [0], [0], [1], [0, 0, 1, 1], [], []>} : vector<16x32xbf16>, vector<32x32xbf16>, vector<16x32xf32> -> vector<16x32xf32>
    %118 = vector.broadcast %47 : vector<1x32xf32> to vector<16x32xf32>
    %119 = arith.addf %117, %118 : vector<16x32xf32>
    %c4 = arith.constant 4 : index
    %c0_57 = arith.constant 0 : index
    %c0_58 = arith.constant 0 : index
    %120 = vector.load %arg5[%c4, %c0_57, %c0_58] : memref<16x32x32xbf16, #tpu.memory_space<vmem>>, vector<1x32x32xbf16>
    %121 = vector.shape_cast %120 : vector<1x32x32xbf16> to vector<32x32xbf16>
    %cst_59 = arith.constant dense<0.000000e+00> : vector<16x32xf32>
    %122 = tpu.matmul %32, %121, %cst_59 {dimension_numbers = #tpu.dot_dimension_numbers<[1], [0], [0], [1], [0, 0, 1, 1], [], []>} : vector<16x32xbf16>, vector<32x32xbf16>, vector<16x32xf32> -> vector<16x32xf32>
    %123 = arith.truncf %122 : vector<16x32xf32> to vector<16x32xbf16>
    %124 = vector.extract_strided_slice %5 {offsets = [0, 0], sizes = [1, 16], strides = [1, 1]} : vector<8x16xi32> to vector<1x16xi32>
    %125 = tpu.iota {dimensions = array<i32: 0>} : vector<16x16xi32>
    %c0_i32 = arith.constant 0 : i32
    %126 = vector.broadcast %c0_i32 : i32 to vector<16x16xi32>
    %127 = arith.addi %125, %126 : vector<16x16xi32>
    %128 = vector.broadcast %124 : vector<1x16xi32> to vector<16x16xi32>
    %129 = arith.cmpi eq, %128, %127 : vector<16x16xi32>
    %cst_60 = arith.constant 1.000000e+00 : f32
    %cst_61 = arith.constant 0.000000e+00 : f32
    %130 = vector.broadcast %cst_60 : f32 to vector<16x16xf32>
    %131 = vector.broadcast %cst_61 : f32 to vector<16x16xf32>
    %132 = arith.select %129, %130, %131 : vector<16x16xi1>, vector<16x16xf32>
    %133 = arith.truncf %132 : vector<16x16xf32> to vector<16x16xbf16>
    %cst_62 = arith.constant dense<0.000000e+00> : vector<16x32xf32>
    %134 = tpu.matmul %133, %123, %cst_62 {dimension_numbers = #tpu.dot_dimension_numbers<[0], [0], [1], [1], [0, 1, 1, 1], [], []>} : vector<16x16xbf16>, vector<16x32xbf16>, vector<16x32xf32> -> vector<16x32xf32>
    %135 = vector.extract_strided_slice %5 {offsets = [1, 0], sizes = [1, 16], strides = [1, 1]} : vector<8x16xi32> to vector<1x16xi32>
    %136 = tpu.iota {dimensions = array<i32: 0>} : vector<16x16xi32>
    %c0_i32_63 = arith.constant 0 : i32
    %137 = vector.broadcast %c0_i32_63 : i32 to vector<16x16xi32>
    %138 = arith.addi %136, %137 : vector<16x16xi32>
    %139 = vector.broadcast %135 : vector<1x16xi32> to vector<16x16xi32>
    %140 = arith.cmpi eq, %139, %138 : vector<16x16xi32>
    %cst_64 = arith.constant 1.000000e+00 : f32
    %cst_65 = arith.constant 0.000000e+00 : f32
    %141 = vector.broadcast %cst_64 : f32 to vector<16x16xf32>
    %142 = vector.broadcast %cst_65 : f32 to vector<16x16xf32>
    %143 = arith.select %140, %141, %142 : vector<16x16xi1>, vector<16x16xf32>
    %144 = arith.truncf %143 : vector<16x16xf32> to vector<16x16xbf16>
    %cst_66 = arith.constant dense<0.000000e+00> : vector<16x32xf32>
    %145 = tpu.matmul %144, %123, %cst_66 {dimension_numbers = #tpu.dot_dimension_numbers<[0], [0], [1], [1], [0, 1, 1, 1], [], []>} : vector<16x16xbf16>, vector<16x32xbf16>, vector<16x32xf32> -> vector<16x32xf32>
    %146 = arith.maximumf %134, %145 : vector<16x32xf32>
    %147 = vector.extract_strided_slice %5 {offsets = [2, 0], sizes = [1, 16], strides = [1, 1]} : vector<8x16xi32> to vector<1x16xi32>
    %148 = tpu.iota {dimensions = array<i32: 0>} : vector<16x16xi32>
    %c0_i32_67 = arith.constant 0 : i32
    %149 = vector.broadcast %c0_i32_67 : i32 to vector<16x16xi32>
    %150 = arith.addi %148, %149 : vector<16x16xi32>
    %151 = vector.broadcast %147 : vector<1x16xi32> to vector<16x16xi32>
    %152 = arith.cmpi eq, %151, %150 : vector<16x16xi32>
    %cst_68 = arith.constant 1.000000e+00 : f32
    %cst_69 = arith.constant 0.000000e+00 : f32
    %153 = vector.broadcast %cst_68 : f32 to vector<16x16xf32>
    %154 = vector.broadcast %cst_69 : f32 to vector<16x16xf32>
    %155 = arith.select %152, %153, %154 : vector<16x16xi1>, vector<16x16xf32>
    %156 = arith.truncf %155 : vector<16x16xf32> to vector<16x16xbf16>
    %cst_70 = arith.constant dense<0.000000e+00> : vector<16x32xf32>
    %157 = tpu.matmul %156, %123, %cst_70 {dimension_numbers = #tpu.dot_dimension_numbers<[0], [0], [1], [1], [0, 1, 1, 1], [], []>} : vector<16x16xbf16>, vector<16x32xbf16>, vector<16x32xf32> -> vector<16x32xf32>
    %158 = arith.maximumf %146, %157 : vector<16x32xf32>
    %159 = vector.extract_strided_slice %5 {offsets = [3, 0], sizes = [1, 16], strides = [1, 1]} : vector<8x16xi32> to vector<1x16xi32>
    %160 = tpu.iota {dimensions = array<i32: 0>} : vector<16x16xi32>
    %c0_i32_71 = arith.constant 0 : i32
    %161 = vector.broadcast %c0_i32_71 : i32 to vector<16x16xi32>
    %162 = arith.addi %160, %161 : vector<16x16xi32>
    %163 = vector.broadcast %159 : vector<1x16xi32> to vector<16x16xi32>
    %164 = arith.cmpi eq, %163, %162 : vector<16x16xi32>
    %cst_72 = arith.constant 1.000000e+00 : f32
    %cst_73 = arith.constant 0.000000e+00 : f32
    %165 = vector.broadcast %cst_72 : f32 to vector<16x16xf32>
    %166 = vector.broadcast %cst_73 : f32 to vector<16x16xf32>
    %167 = arith.select %164, %165, %166 : vector<16x16xi1>, vector<16x16xf32>
    %168 = arith.truncf %167 : vector<16x16xf32> to vector<16x16xbf16>
    %cst_74 = arith.constant dense<0.000000e+00> : vector<16x32xf32>
    %169 = tpu.matmul %168, %123, %cst_74 {dimension_numbers = #tpu.dot_dimension_numbers<[0], [0], [1], [1], [0, 1, 1, 1], [], []>} : vector<16x16xbf16>, vector<16x32xbf16>, vector<16x32xf32> -> vector<16x32xf32>
    %170 = arith.maximumf %158, %169 : vector<16x32xf32>
    %171 = vector.extract_strided_slice %5 {offsets = [4, 0], sizes = [1, 16], strides = [1, 1]} : vector<8x16xi32> to vector<1x16xi32>
    %172 = tpu.iota {dimensions = array<i32: 0>} : vector<16x16xi32>
    %c0_i32_75 = arith.constant 0 : i32
    %173 = vector.broadcast %c0_i32_75 : i32 to vector<16x16xi32>
    %174 = arith.addi %172, %173 : vector<16x16xi32>
    %175 = vector.broadcast %171 : vector<1x16xi32> to vector<16x16xi32>
    %176 = arith.cmpi eq, %175, %174 : vector<16x16xi32>
    %cst_76 = arith.constant 1.000000e+00 : f32
    %cst_77 = arith.constant 0.000000e+00 : f32
    %177 = vector.broadcast %cst_76 : f32 to vector<16x16xf32>
    %178 = vector.broadcast %cst_77 : f32 to vector<16x16xf32>
    %179 = arith.select %176, %177, %178 : vector<16x16xi1>, vector<16x16xf32>
    %180 = arith.truncf %179 : vector<16x16xf32> to vector<16x16xbf16>
    %cst_78 = arith.constant dense<0.000000e+00> : vector<16x32xf32>
    %181 = tpu.matmul %180, %123, %cst_78 {dimension_numbers = #tpu.dot_dimension_numbers<[0], [0], [1], [1], [0, 1, 1, 1], [], []>} : vector<16x16xbf16>, vector<16x32xbf16>, vector<16x32xf32> -> vector<16x32xf32>
    %182 = arith.maximumf %170, %181 : vector<16x32xf32>
    %183 = vector.extract_strided_slice %5 {offsets = [5, 0], sizes = [1, 16], strides = [1, 1]} : vector<8x16xi32> to vector<1x16xi32>
    %184 = tpu.iota {dimensions = array<i32: 0>} : vector<16x16xi32>
    %c0_i32_79 = arith.constant 0 : i32
    %185 = vector.broadcast %c0_i32_79 : i32 to vector<16x16xi32>
    %186 = arith.addi %184, %185 : vector<16x16xi32>
    %187 = vector.broadcast %183 : vector<1x16xi32> to vector<16x16xi32>
    %188 = arith.cmpi eq, %187, %186 : vector<16x16xi32>
    %cst_80 = arith.constant 1.000000e+00 : f32
    %cst_81 = arith.constant 0.000000e+00 : f32
    %189 = vector.broadcast %cst_80 : f32 to vector<16x16xf32>
    %190 = vector.broadcast %cst_81 : f32 to vector<16x16xf32>
    %191 = arith.select %188, %189, %190 : vector<16x16xi1>, vector<16x16xf32>
    %192 = arith.truncf %191 : vector<16x16xf32> to vector<16x16xbf16>
    %cst_82 = arith.constant dense<0.000000e+00> : vector<16x32xf32>
    %193 = tpu.matmul %192, %123, %cst_82 {dimension_numbers = #tpu.dot_dimension_numbers<[0], [0], [1], [1], [0, 1, 1, 1], [], []>} : vector<16x16xbf16>, vector<16x32xbf16>, vector<16x32xf32> -> vector<16x32xf32>
    %194 = arith.maximumf %182, %193 : vector<16x32xf32>
    %195 = vector.extract_strided_slice %5 {offsets = [6, 0], sizes = [1, 16], strides = [1, 1]} : vector<8x16xi32> to vector<1x16xi32>
    %196 = tpu.iota {dimensions = array<i32: 0>} : vector<16x16xi32>
    %c0_i32_83 = arith.constant 0 : i32
    %197 = vector.broadcast %c0_i32_83 : i32 to vector<16x16xi32>
    %198 = arith.addi %196, %197 : vector<16x16xi32>
    %199 = vector.broadcast %195 : vector<1x16xi32> to vector<16x16xi32>
    %200 = arith.cmpi eq, %199, %198 : vector<16x16xi32>
    %cst_84 = arith.constant 1.000000e+00 : f32
    %cst_85 = arith.constant 0.000000e+00 : f32
    %201 = vector.broadcast %cst_84 : f32 to vector<16x16xf32>
    %202 = vector.broadcast %cst_85 : f32 to vector<16x16xf32>
    %203 = arith.select %200, %201, %202 : vector<16x16xi1>, vector<16x16xf32>
    %204 = arith.truncf %203 : vector<16x16xf32> to vector<16x16xbf16>
    %cst_86 = arith.constant dense<0.000000e+00> : vector<16x32xf32>
    %205 = tpu.matmul %204, %123, %cst_86 {dimension_numbers = #tpu.dot_dimension_numbers<[0], [0], [1], [1], [0, 1, 1, 1], [], []>} : vector<16x16xbf16>, vector<16x32xbf16>, vector<16x32xf32> -> vector<16x32xf32>
    %206 = arith.maximumf %194, %205 : vector<16x32xf32>
    %207 = vector.extract_strided_slice %5 {offsets = [7, 0], sizes = [1, 16], strides = [1, 1]} : vector<8x16xi32> to vector<1x16xi32>
    %208 = tpu.iota {dimensions = array<i32: 0>} : vector<16x16xi32>
    %c0_i32_87 = arith.constant 0 : i32
    %209 = vector.broadcast %c0_i32_87 : i32 to vector<16x16xi32>
    %210 = arith.addi %208, %209 : vector<16x16xi32>
    %211 = vector.broadcast %207 : vector<1x16xi32> to vector<16x16xi32>
    %212 = arith.cmpi eq, %211, %210 : vector<16x16xi32>
    %cst_88 = arith.constant 1.000000e+00 : f32
    %cst_89 = arith.constant 0.000000e+00 : f32
    %213 = vector.broadcast %cst_88 : f32 to vector<16x16xf32>
    %214 = vector.broadcast %cst_89 : f32 to vector<16x16xf32>
    %215 = arith.select %212, %213, %214 : vector<16x16xi1>, vector<16x16xf32>
    %216 = arith.truncf %215 : vector<16x16xf32> to vector<16x16xbf16>
    %cst_90 = arith.constant dense<0.000000e+00> : vector<16x32xf32>
    %217 = tpu.matmul %216, %123, %cst_90 {dimension_numbers = #tpu.dot_dimension_numbers<[0], [0], [1], [1], [0, 1, 1, 1], [], []>} : vector<16x16xbf16>, vector<16x32xbf16>, vector<16x32xf32> -> vector<16x32xf32>
    %218 = arith.maximumf %206, %217 : vector<16x32xf32>
    %c5 = arith.constant 5 : index
    %c0_91 = arith.constant 0 : index
    %c0_92 = arith.constant 0 : index
    %219 = vector.load %arg5[%c5, %c0_91, %c0_92] : memref<16x32x32xbf16, #tpu.memory_space<vmem>>, vector<1x32x32xbf16>
    %220 = vector.shape_cast %219 : vector<1x32x32xbf16> to vector<32x32xbf16>
    %cst_93 = arith.constant dense<0.000000e+00> : vector<16x32xf32>
    %221 = tpu.matmul %32, %220, %cst_93 {dimension_numbers = #tpu.dot_dimension_numbers<[1], [0], [0], [1], [0, 0, 1, 1], [], []>} : vector<16x32xbf16>, vector<32x32xbf16>, vector<16x32xf32> -> vector<16x32xf32>
    %222 = arith.addf %218, %221 : vector<16x32xf32>
    %c3_94 = arith.constant 3 : index
    %c0_95 = arith.constant 0 : index
    %223 = vector.load %arg6[%c3_94, %c0_95] : memref<15x32xf32, #tpu.memory_space<vmem>>, vector<1x32xf32>
    %224 = vector.broadcast %223 : vector<1x32xf32> to vector<16x32xf32>
    %225 = arith.addf %222, %224 : vector<16x32xf32>
    %cst_96 = arith.constant 0.000000e+00 : f32
    %226 = vector.broadcast %cst_96 : f32 to vector<16x32xf32>
    %227 = arith.cmpf oge, %225, %226 : vector<16x32xf32>
    %cst_97 = arith.constant 2.000000e-01 : f32
    %228 = vector.broadcast %cst_97 : f32 to vector<16x32xf32>
    %229 = arith.mulf %228, %225 : vector<16x32xf32>
    %230 = arith.select %227, %225, %229 : vector<16x32xi1>, vector<16x32xf32>
    %c6 = arith.constant 6 : index
    %c0_98 = arith.constant 0 : index
    %c0_99 = arith.constant 0 : index
    %231 = vector.load %arg5[%c6, %c0_98, %c0_99] : memref<16x32x32xbf16, #tpu.memory_space<vmem>>, vector<1x32x32xbf16>
    %232 = vector.shape_cast %231 : vector<1x32x32xbf16> to vector<32x32xbf16>
    %233 = arith.truncf %119 : vector<16x32xf32> to vector<16x32xbf16>
    %cst_100 = arith.constant dense<0.000000e+00> : vector<16x32xf32>
    %234 = tpu.matmul %233, %232, %cst_100 {dimension_numbers = #tpu.dot_dimension_numbers<[1], [0], [0], [1], [0, 0, 1, 1], [], []>} : vector<16x32xbf16>, vector<32x32xbf16>, vector<16x32xf32> -> vector<16x32xf32>
    %235 = arith.addf %1, %234 : vector<16x32xf32>
    %c7 = arith.constant 7 : index
    %c0_101 = arith.constant 0 : index
    %c0_102 = arith.constant 0 : index
    %236 = vector.load %arg5[%c7, %c0_101, %c0_102] : memref<16x32x32xbf16, #tpu.memory_space<vmem>>, vector<1x32x32xbf16>
    %237 = vector.shape_cast %236 : vector<1x32x32xbf16> to vector<32x32xbf16>
    %238 = arith.truncf %230 : vector<16x32xf32> to vector<16x32xbf16>
    %cst_103 = arith.constant dense<0.000000e+00> : vector<16x32xf32>
    %239 = tpu.matmul %238, %237, %cst_103 {dimension_numbers = #tpu.dot_dimension_numbers<[1], [0], [0], [1], [0, 0, 1, 1], [], []>} : vector<16x32xbf16>, vector<32x32xbf16>, vector<16x32xf32> -> vector<16x32xf32>
    %240 = arith.addf %235, %239 : vector<16x32xf32>
    %c4_104 = arith.constant 4 : index
    %c0_105 = arith.constant 0 : index
    %241 = vector.load %arg6[%c4_104, %c0_105] : memref<15x32xf32, #tpu.memory_space<vmem>>, vector<1x32xf32>
    %242 = vector.broadcast %241 : vector<1x32xf32> to vector<16x32xf32>
    %243 = arith.addf %240, %242 : vector<16x32xf32>
    %c5_106 = arith.constant 5 : index
    %c0_107 = arith.constant 0 : index
    %244 = vector.load %arg6[%c5_106, %c0_107] : memref<15x32xf32, #tpu.memory_space<vmem>>, vector<1x32xf32>
    %c6_108 = arith.constant 6 : index
    %c0_109 = arith.constant 0 : index
    %245 = vector.load %arg6[%c6_108, %c0_109] : memref<15x32xf32, #tpu.memory_space<vmem>>, vector<1x32xf32>
    %cst_110 = arith.constant dense<0.000000e+00> : vector<16xf32>
    %246 = vector.multi_reduction <add>, %243, %cst_110 [1] : vector<16x32xf32> to vector<16xf32>
    %247 = vector.shape_cast %246 : vector<16xf32> to vector<16x1xf32>
    %cst_111 = arith.constant 3.200000e+01 : f32
    %248 = vector.broadcast %cst_111 : f32 to vector<16x1xf32>
    %249 = arith.divf %247, %248 : vector<16x1xf32>
    %250 = vector.broadcast %249 : vector<16x1xf32> to vector<16x32xf32>
    %251 = arith.subf %243, %250 : vector<16x32xf32>
    %252 = arith.mulf %251, %251 : vector<16x32xf32>
    %cst_112 = arith.constant dense<0.000000e+00> : vector<16xf32>
    %253 = vector.multi_reduction <add>, %252, %cst_112 [1] : vector<16x32xf32> to vector<16xf32>
    %254 = vector.shape_cast %253 : vector<16xf32> to vector<16x1xf32>
    %cst_113 = arith.constant 3.200000e+01 : f32
    %255 = vector.broadcast %cst_113 : f32 to vector<16x1xf32>
    %256 = arith.divf %254, %255 : vector<16x1xf32>
    %257 = vector.broadcast %249 : vector<16x1xf32> to vector<16x32xf32>
    %258 = arith.subf %243, %257 : vector<16x32xf32>
    %cst_114 = arith.constant 9.99999974E-6 : f32
    %259 = vector.broadcast %cst_114 : f32 to vector<16x1xf32>
    %260 = arith.addf %256, %259 : vector<16x1xf32>
    %261 = math.rsqrt %260 : vector<16x1xf32>
    %262 = vector.broadcast %261 : vector<16x1xf32> to vector<16x32xf32>
    %263 = arith.mulf %258, %262 : vector<16x32xf32>
    %264 = vector.broadcast %244 : vector<1x32xf32> to vector<16x32xf32>
    %265 = arith.mulf %263, %264 : vector<16x32xf32>
    %266 = vector.broadcast %245 : vector<1x32xf32> to vector<16x32xf32>
    %267 = arith.addf %265, %266 : vector<16x32xf32>
    %268 = arith.truncf %267 : vector<16x32xf32> to vector<16x32xbf16>
    %c7_115 = arith.constant 7 : index
    %c0_116 = arith.constant 0 : index
    %269 = vector.load %arg6[%c7_115, %c0_116] : memref<15x32xf32, #tpu.memory_space<vmem>>, vector<1x32xf32>
    %c8_117 = arith.constant 8 : index
    %c0_118 = arith.constant 0 : index
    %270 = vector.load %arg6[%c8_117, %c0_118] : memref<15x32xf32, #tpu.memory_space<vmem>>, vector<1x32xf32>
    %cst_119 = arith.constant dense<0.000000e+00> : vector<16xf32>
    %271 = vector.multi_reduction <add>, %3, %cst_119 [1] : vector<16x32xf32> to vector<16xf32>
    %272 = vector.shape_cast %271 : vector<16xf32> to vector<16x1xf32>
    %cst_120 = arith.constant 3.200000e+01 : f32
    %273 = vector.broadcast %cst_120 : f32 to vector<16x1xf32>
    %274 = arith.divf %272, %273 : vector<16x1xf32>
    %275 = vector.broadcast %274 : vector<16x1xf32> to vector<16x32xf32>
    %276 = arith.subf %3, %275 : vector<16x32xf32>
    %277 = arith.mulf %276, %276 : vector<16x32xf32>
    %cst_121 = arith.constant dense<0.000000e+00> : vector<16xf32>
    %278 = vector.multi_reduction <add>, %277, %cst_121 [1] : vector<16x32xf32> to vector<16xf32>
    %279 = vector.shape_cast %278 : vector<16xf32> to vector<16x1xf32>
    %cst_122 = arith.constant 3.200000e+01 : f32
    %280 = vector.broadcast %cst_122 : f32 to vector<16x1xf32>
    %281 = arith.divf %279, %280 : vector<16x1xf32>
    %282 = vector.broadcast %274 : vector<16x1xf32> to vector<16x32xf32>
    %283 = arith.subf %3, %282 : vector<16x32xf32>
    %cst_123 = arith.constant 9.99999974E-6 : f32
    %284 = vector.broadcast %cst_123 : f32 to vector<16x1xf32>
    %285 = arith.addf %281, %284 : vector<16x1xf32>
    %286 = math.rsqrt %285 : vector<16x1xf32>
    %287 = vector.broadcast %286 : vector<16x1xf32> to vector<16x32xf32>
    %288 = arith.mulf %283, %287 : vector<16x32xf32>
    %289 = vector.broadcast %269 : vector<1x32xf32> to vector<16x32xf32>
    %290 = arith.mulf %288, %289 : vector<16x32xf32>
    %291 = vector.broadcast %270 : vector<1x32xf32> to vector<16x32xf32>
    %292 = arith.addf %290, %291 : vector<16x32xf32>
    %293 = arith.truncf %292 : vector<16x32xf32> to vector<16x32xbf16>
    %c8_124 = arith.constant 8 : index
    %c0_125 = arith.constant 0 : index
    %c0_126 = arith.constant 0 : index
    %294 = vector.load %arg5[%c8_124, %c0_125, %c0_126] : memref<16x32x32xbf16, #tpu.memory_space<vmem>>, vector<1x32x32xbf16>
    %295 = vector.shape_cast %294 : vector<1x32x32xbf16> to vector<32x32xbf16>
    %cst_127 = arith.constant dense<0.000000e+00> : vector<16x32xf32>
    %296 = tpu.matmul %268, %295, %cst_127 {dimension_numbers = #tpu.dot_dimension_numbers<[1], [0], [0], [1], [0, 0, 1, 1], [], []>} : vector<16x32xbf16>, vector<32x32xbf16>, vector<16x32xf32> -> vector<16x32xf32>
    %297 = arith.truncf %296 : vector<16x32xf32> to vector<16x32xbf16>
    %c9 = arith.constant 9 : index
    %c0_128 = arith.constant 0 : index
    %c0_129 = arith.constant 0 : index
    %298 = vector.load %arg5[%c9, %c0_128, %c0_129] : memref<16x32x32xbf16, #tpu.memory_space<vmem>>, vector<1x32x32xbf16>
    %299 = vector.shape_cast %298 : vector<1x32x32xbf16> to vector<32x32xbf16>
    %cst_130 = arith.constant dense<0.000000e+00> : vector<16x32xf32>
    %300 = tpu.matmul %293, %299, %cst_130 {dimension_numbers = #tpu.dot_dimension_numbers<[1], [0], [0], [1], [0, 0, 1, 1], [], []>} : vector<16x32xbf16>, vector<32x32xbf16>, vector<16x32xf32> -> vector<16x32xf32>
    %301 = arith.truncf %300 : vector<16x32xf32> to vector<16x32xbf16>
    %c10 = arith.constant 10 : index
    %c0_131 = arith.constant 0 : index
    %c0_132 = arith.constant 0 : index
    %302 = vector.load %arg5[%c10, %c0_131, %c0_132] : memref<16x32x32xbf16, #tpu.memory_space<vmem>>, vector<1x32x32xbf16>
    %303 = vector.shape_cast %302 : vector<1x32x32xbf16> to vector<32x32xbf16>
    %cst_133 = arith.constant dense<0.000000e+00> : vector<16x32xf32>
    %304 = tpu.matmul %293, %303, %cst_133 {dimension_numbers = #tpu.dot_dimension_numbers<[1], [0], [0], [1], [0, 0, 1, 1], [], []>} : vector<16x32xbf16>, vector<32x32xbf16>, vector<16x32xf32> -> vector<16x32xf32>
    %305 = arith.truncf %304 : vector<16x32xf32> to vector<16x32xbf16>
    %c11 = arith.constant 11 : index
    %c0_134 = arith.constant 0 : index
    %c0_135 = arith.constant 0 : index
    %306 = vector.load %arg5[%c11, %c0_134, %c0_135] : memref<16x32x32xbf16, #tpu.memory_space<vmem>>, vector<1x32x32xbf16>
    %307 = vector.shape_cast %306 : vector<1x32x32xbf16> to vector<32x32xbf16>
    %c9_136 = arith.constant 9 : index
    %c0_137 = arith.constant 0 : index
    %308 = vector.load %arg6[%c9_136, %c0_137] : memref<15x32xf32, #tpu.memory_space<vmem>>, vector<1x32xf32>
    %309 = vector.extract_strided_slice %297 {offsets = [0, 0], sizes = [16, 8], strides = [1, 1]} : vector<16x32xbf16> to vector<16x8xbf16>
    %310 = vector.extract_strided_slice %301 {offsets = [0, 0], sizes = [16, 8], strides = [1, 1]} : vector<16x32xbf16> to vector<16x8xbf16>
    %cst_138 = arith.constant dense<0.000000e+00> : vector<16x16xf32>
    %311 = tpu.matmul %309, %310, %cst_138 {dimension_numbers = #tpu.dot_dimension_numbers<[1], [1], [0], [0], [0, 0, 1, 0], [], []>} : vector<16x8xbf16>, vector<16x8xbf16>, vector<16x16xf32> -> vector<16x16xf32>
    %cst_139 = arith.constant dense<0xFF800000> : vector<16xf32>
    %312 = vector.multi_reduction <maximumf>, %311, %cst_139 [1] : vector<16x16xf32> to vector<16xf32>
    %313 = vector.shape_cast %312 : vector<16xf32> to vector<16x1xf32>
    %314 = vector.broadcast %313 : vector<16x1xf32> to vector<16x16xf32>
    %315 = arith.subf %311, %314 : vector<16x16xf32>
    %316 = math.exp %315 : vector<16x16xf32>
    %cst_140 = arith.constant dense<0.000000e+00> : vector<16xf32>
    %317 = vector.multi_reduction <add>, %316, %cst_140 [1] : vector<16x16xf32> to vector<16xf32>
    %318 = vector.shape_cast %317 : vector<16xf32> to vector<16x1xf32>
    %319 = vector.broadcast %318 : vector<16x1xf32> to vector<16x16xf32>
    %320 = arith.divf %316, %319 : vector<16x16xf32>
    %321 = arith.truncf %320 : vector<16x16xf32> to vector<16x16xbf16>
    %322 = vector.extract_strided_slice %305 {offsets = [0, 0], sizes = [16, 8], strides = [1, 1]} : vector<16x32xbf16> to vector<16x8xbf16>
    %cst_141 = arith.constant dense<0.000000e+00> : vector<16x8xf32>
    %323 = tpu.matmul %321, %322, %cst_141 {dimension_numbers = #tpu.dot_dimension_numbers<[1], [0], [0], [1], [0, 0, 1, 1], [], []>} : vector<16x16xbf16>, vector<16x8xbf16>, vector<16x8xf32> -> vector<16x8xf32>
    %324 = arith.truncf %323 : vector<16x8xf32> to vector<16x8xbf16>
    %c0_142 = arith.constant 0 : index
    %c0_143 = arith.constant 0 : index
    %325 = vector.load %arg11[%c0_142, %c0_143] : memref<16x32xbf16, #tpu.memory_space<vmem>>, vector<16x8xbf16>
    tpu.vector_store %arg11[%c0_142, %c0_143], %324 {strides = array<i32>} : memref<16x32xbf16, #tpu.memory_space<vmem>>, vector<16x8xbf16>,
    %326 = vector.extract_strided_slice %297 {offsets = [0, 8], sizes = [16, 8], strides = [1, 1]} : vector<16x32xbf16> to vector<16x8xbf16>
    %327 = vector.extract_strided_slice %301 {offsets = [0, 8], sizes = [16, 8], strides = [1, 1]} : vector<16x32xbf16> to vector<16x8xbf16>
    %cst_144 = arith.constant dense<0.000000e+00> : vector<16x16xf32>
    %328 = tpu.matmul %326, %327, %cst_144 {dimension_numbers = #tpu.dot_dimension_numbers<[1], [1], [0], [0], [0, 0, 1, 0], [], []>} : vector<16x8xbf16>, vector<16x8xbf16>, vector<16x16xf32> -> vector<16x16xf32>
    %cst_145 = arith.constant dense<0xFF800000> : vector<16xf32>
    %329 = vector.multi_reduction <maximumf>, %328, %cst_145 [1] : vector<16x16xf32> to vector<16xf32>
    %330 = vector.shape_cast %329 : vector<16xf32> to vector<16x1xf32>
    %331 = vector.broadcast %330 : vector<16x1xf32> to vector<16x16xf32>
    %332 = arith.subf %328, %331 : vector<16x16xf32>
    %333 = math.exp %332 : vector<16x16xf32>
    %cst_146 = arith.constant dense<0.000000e+00> : vector<16xf32>
    %334 = vector.multi_reduction <add>, %333, %cst_146 [1] : vector<16x16xf32> to vector<16xf32>
    %335 = vector.shape_cast %334 : vector<16xf32> to vector<16x1xf32>
    %336 = vector.broadcast %335 : vector<16x1xf32> to vector<16x16xf32>
    %337 = arith.divf %333, %336 : vector<16x16xf32>
    %338 = arith.truncf %337 : vector<16x16xf32> to vector<16x16xbf16>
    %339 = vector.extract_strided_slice %305 {offsets = [0, 8], sizes = [16, 8], strides = [1, 1]} : vector<16x32xbf16> to vector<16x8xbf16>
    %cst_147 = arith.constant dense<0.000000e+00> : vector<16x8xf32>
    %340 = tpu.matmul %338, %339, %cst_147 {dimension_numbers = #tpu.dot_dimension_numbers<[1], [0], [0], [1], [0, 0, 1, 1], [], []>} : vector<16x16xbf16>, vector<16x8xbf16>, vector<16x8xf32> -> vector<16x8xf32>
    %341 = arith.truncf %340 : vector<16x8xf32> to vector<16x8xbf16>
    %c0_148 = arith.constant 0 : index
    %c8_149 = arith.constant 8 : index
    %342 = vector.load %arg11[%c0_148, %c8_149] : memref<16x32xbf16, #tpu.memory_space<vmem>>, vector<16x8xbf16>
    tpu.vector_store %arg11[%c0_148, %c8_149], %341 {strides = array<i32>} : memref<16x32xbf16, #tpu.memory_space<vmem>>, vector<16x8xbf16>,
    %343 = vector.extract_strided_slice %297 {offsets = [0, 16], sizes = [16, 8], strides = [1, 1]} : vector<16x32xbf16> to vector<16x8xbf16>
    %344 = vector.extract_strided_slice %301 {offsets = [0, 16], sizes = [16, 8], strides = [1, 1]} : vector<16x32xbf16> to vector<16x8xbf16>
    %cst_150 = arith.constant dense<0.000000e+00> : vector<16x16xf32>
    %345 = tpu.matmul %343, %344, %cst_150 {dimension_numbers = #tpu.dot_dimension_numbers<[1], [1], [0], [0], [0, 0, 1, 0], [], []>} : vector<16x8xbf16>, vector<16x8xbf16>, vector<16x16xf32> -> vector<16x16xf32>
    %cst_151 = arith.constant dense<0xFF800000> : vector<16xf32>
    %346 = vector.multi_reduction <maximumf>, %345, %cst_151 [1] : vector<16x16xf32> to vector<16xf32>
    %347 = vector.shape_cast %346 : vector<16xf32> to vector<16x1xf32>
    %348 = vector.broadcast %347 : vector<16x1xf32> to vector<16x16xf32>
    %349 = arith.subf %345, %348 : vector<16x16xf32>
    %350 = math.exp %349 : vector<16x16xf32>
    %cst_152 = arith.constant dense<0.000000e+00> : vector<16xf32>
    %351 = vector.multi_reduction <add>, %350, %cst_152 [1] : vector<16x16xf32> to vector<16xf32>
    %352 = vector.shape_cast %351 : vector<16xf32> to vector<16x1xf32>
    %353 = vector.broadcast %352 : vector<16x1xf32> to vector<16x16xf32>
    %354 = arith.divf %350, %353 : vector<16x16xf32>
    %355 = arith.truncf %354 : vector<16x16xf32> to vector<16x16xbf16>
    %356 = vector.extract_strided_slice %305 {offsets = [0, 16], sizes = [16, 8], strides = [1, 1]} : vector<16x32xbf16> to vector<16x8xbf16>
    %cst_153 = arith.constant dense<0.000000e+00> : vector<16x8xf32>
    %357 = tpu.matmul %355, %356, %cst_153 {dimension_numbers = #tpu.dot_dimension_numbers<[1], [0], [0], [1], [0, 0, 1, 1], [], []>} : vector<16x16xbf16>, vector<16x8xbf16>, vector<16x8xf32> -> vector<16x8xf32>
    %358 = arith.truncf %357 : vector<16x8xf32> to vector<16x8xbf16>
    %c0_154 = arith.constant 0 : index
    %c16_155 = arith.constant 16 : index
    %359 = vector.load %arg11[%c0_154, %c16_155] : memref<16x32xbf16, #tpu.memory_space<vmem>>, vector<16x8xbf16>
    tpu.vector_store %arg11[%c0_154, %c16_155], %358 {strides = array<i32>} : memref<16x32xbf16, #tpu.memory_space<vmem>>, vector<16x8xbf16>,
    %360 = vector.extract_strided_slice %297 {offsets = [0, 24], sizes = [16, 8], strides = [1, 1]} : vector<16x32xbf16> to vector<16x8xbf16>
    %361 = vector.extract_strided_slice %301 {offsets = [0, 24], sizes = [16, 8], strides = [1, 1]} : vector<16x32xbf16> to vector<16x8xbf16>
    %cst_156 = arith.constant dense<0.000000e+00> : vector<16x16xf32>
    %362 = tpu.matmul %360, %361, %cst_156 {dimension_numbers = #tpu.dot_dimension_numbers<[1], [1], [0], [0], [0, 0, 1, 0], [], []>} : vector<16x8xbf16>, vector<16x8xbf16>, vector<16x16xf32> -> vector<16x16xf32>
    %cst_157 = arith.constant dense<0xFF800000> : vector<16xf32>
    %363 = vector.multi_reduction <maximumf>, %362, %cst_157 [1] : vector<16x16xf32> to vector<16xf32>
    %364 = vector.shape_cast %363 : vector<16xf32> to vector<16x1xf32>
    %365 = vector.broadcast %364 : vector<16x1xf32> to vector<16x16xf32>
    %366 = arith.subf %362, %365 : vector<16x16xf32>
    %367 = math.exp %366 : vector<16x16xf32>
    %cst_158 = arith.constant dense<0.000000e+00> : vector<16xf32>
    %368 = vector.multi_reduction <add>, %367, %cst_158 [1] : vector<16x16xf32> to vector<16xf32>
    %369 = vector.shape_cast %368 : vector<16xf32> to vector<16x1xf32>
    %370 = vector.broadcast %369 : vector<16x1xf32> to vector<16x16xf32>
    %371 = arith.divf %367, %370 : vector<16x16xf32>
    %372 = arith.truncf %371 : vector<16x16xf32> to vector<16x16xbf16>
    %373 = vector.extract_strided_slice %305 {offsets = [0, 24], sizes = [16, 8], strides = [1, 1]} : vector<16x32xbf16> to vector<16x8xbf16>
    %cst_159 = arith.constant dense<0.000000e+00> : vector<16x8xf32>
    %374 = tpu.matmul %372, %373, %cst_159 {dimension_numbers = #tpu.dot_dimension_numbers<[1], [0], [0], [1], [0, 0, 1, 1], [], []>} : vector<16x16xbf16>, vector<16x8xbf16>, vector<16x8xf32> -> vector<16x8xf32>
    %375 = arith.truncf %374 : vector<16x8xf32> to vector<16x8xbf16>
    %c0_160 = arith.constant 0 : index
    %c24_161 = arith.constant 24 : index
    %376 = vector.load %arg11[%c0_160, %c24_161] : memref<16x32xbf16, #tpu.memory_space<vmem>>, vector<16x8xbf16>
    tpu.vector_store %arg11[%c0_160, %c24_161], %375 {strides = array<i32>} : memref<16x32xbf16, #tpu.memory_space<vmem>>, vector<16x8xbf16>,
    %c0_162 = arith.constant 0 : index
    %c0_163 = arith.constant 0 : index
    %377 = vector.load %arg11[%c0_162, %c0_163] : memref<16x32xbf16, #tpu.memory_space<vmem>>, vector<16x32xbf16>
    %cst_164 = arith.constant dense<0.000000e+00> : vector<16x32xf32>
    %378 = tpu.matmul %377, %307, %cst_164 {dimension_numbers = #tpu.dot_dimension_numbers<[1], [0], [0], [1], [0, 0, 1, 1], [], []>} : vector<16x32xbf16>, vector<32x32xbf16>, vector<16x32xf32> -> vector<16x32xf32>
    %379 = vector.broadcast %308 : vector<1x32xf32> to vector<16x32xf32>
    %380 = arith.addf %378, %379 : vector<16x32xf32>
    %c12 = arith.constant 12 : index
    %c0_165 = arith.constant 0 : index
    %c0_166 = arith.constant 0 : index
    %381 = vector.load %arg5[%c12, %c0_165, %c0_166] : memref<16x32x32xbf16, #tpu.memory_space<vmem>>, vector<1x32x32xbf16>
    %382 = vector.shape_cast %381 : vector<1x32x32xbf16> to vector<32x32xbf16>
    %cst_167 = arith.constant dense<0.000000e+00> : vector<16x32xf32>
    %383 = tpu.matmul %293, %382, %cst_167 {dimension_numbers = #tpu.dot_dimension_numbers<[1], [0], [0], [1], [0, 0, 1, 1], [], []>} : vector<16x32xbf16>, vector<32x32xbf16>, vector<16x32xf32> -> vector<16x32xf32>
    %384 = arith.truncf %383 : vector<16x32xf32> to vector<16x32xbf16>
    %385 = vector.extract_strided_slice %7 {offsets = [0, 0], sizes = [1, 16], strides = [1, 1]} : vector<8x16xi32> to vector<1x16xi32>
    %386 = tpu.iota {dimensions = array<i32: 0>} : vector<16x16xi32>
    %c0_i32_168 = arith.constant 0 : i32
    %387 = vector.broadcast %c0_i32_168 : i32 to vector<16x16xi32>
    %388 = arith.addi %386, %387 : vector<16x16xi32>
    %389 = vector.broadcast %385 : vector<1x16xi32> to vector<16x16xi32>
    %390 = arith.cmpi eq, %389, %388 : vector<16x16xi32>
    %cst_169 = arith.constant 1.000000e+00 : f32
    %cst_170 = arith.constant 0.000000e+00 : f32
    %391 = vector.broadcast %cst_169 : f32 to vector<16x16xf32>
    %392 = vector.broadcast %cst_170 : f32 to vector<16x16xf32>
    %393 = arith.select %390, %391, %392 : vector<16x16xi1>, vector<16x16xf32>
    %394 = arith.truncf %393 : vector<16x16xf32> to vector<16x16xbf16>
    %cst_171 = arith.constant dense<0.000000e+00> : vector<16x32xf32>
    %395 = tpu.matmul %394, %384, %cst_171 {dimension_numbers = #tpu.dot_dimension_numbers<[0], [0], [1], [1], [0, 1, 1, 1], [], []>} : vector<16x16xbf16>, vector<16x32xbf16>, vector<16x32xf32> -> vector<16x32xf32>
    %396 = vector.extract_strided_slice %7 {offsets = [1, 0], sizes = [1, 16], strides = [1, 1]} : vector<8x16xi32> to vector<1x16xi32>
    %397 = tpu.iota {dimensions = array<i32: 0>} : vector<16x16xi32>
    %c0_i32_172 = arith.constant 0 : i32
    %398 = vector.broadcast %c0_i32_172 : i32 to vector<16x16xi32>
    %399 = arith.addi %397, %398 : vector<16x16xi32>
    %400 = vector.broadcast %396 : vector<1x16xi32> to vector<16x16xi32>
    %401 = arith.cmpi eq, %400, %399 : vector<16x16xi32>
    %cst_173 = arith.constant 1.000000e+00 : f32
    %cst_174 = arith.constant 0.000000e+00 : f32
    %402 = vector.broadcast %cst_173 : f32 to vector<16x16xf32>
    %403 = vector.broadcast %cst_174 : f32 to vector<16x16xf32>
    %404 = arith.select %401, %402, %403 : vector<16x16xi1>, vector<16x16xf32>
    %405 = arith.truncf %404 : vector<16x16xf32> to vector<16x16xbf16>
    %cst_175 = arith.constant dense<0.000000e+00> : vector<16x32xf32>
    %406 = tpu.matmul %405, %384, %cst_175 {dimension_numbers = #tpu.dot_dimension_numbers<[0], [0], [1], [1], [0, 1, 1, 1], [], []>} : vector<16x16xbf16>, vector<16x32xbf16>, vector<16x32xf32> -> vector<16x32xf32>
    %407 = arith.maximumf %395, %406 : vector<16x32xf32>
    %408 = vector.extract_strided_slice %7 {offsets = [2, 0], sizes = [1, 16], strides = [1, 1]} : vector<8x16xi32> to vector<1x16xi32>
    %409 = tpu.iota {dimensions = array<i32: 0>} : vector<16x16xi32>
    %c0_i32_176 = arith.constant 0 : i32
    %410 = vector.broadcast %c0_i32_176 : i32 to vector<16x16xi32>
    %411 = arith.addi %409, %410 : vector<16x16xi32>
    %412 = vector.broadcast %408 : vector<1x16xi32> to vector<16x16xi32>
    %413 = arith.cmpi eq, %412, %411 : vector<16x16xi32>
    %cst_177 = arith.constant 1.000000e+00 : f32
    %cst_178 = arith.constant 0.000000e+00 : f32
    %414 = vector.broadcast %cst_177 : f32 to vector<16x16xf32>
    %415 = vector.broadcast %cst_178 : f32 to vector<16x16xf32>
    %416 = arith.select %413, %414, %415 : vector<16x16xi1>, vector<16x16xf32>
    %417 = arith.truncf %416 : vector<16x16xf32> to vector<16x16xbf16>
    %cst_179 = arith.constant dense<0.000000e+00> : vector<16x32xf32>
    %418 = tpu.matmul %417, %384, %cst_179 {dimension_numbers = #tpu.dot_dimension_numbers<[0], [0], [1], [1], [0, 1, 1, 1], [], []>} : vector<16x16xbf16>, vector<16x32xbf16>, vector<16x32xf32> -> vector<16x32xf32>
    %419 = arith.maximumf %407, %418 : vector<16x32xf32>
    %420 = vector.extract_strided_slice %7 {offsets = [3, 0], sizes = [1, 16], strides = [1, 1]} : vector<8x16xi32> to vector<1x16xi32>
    %421 = tpu.iota {dimensions = array<i32: 0>} : vector<16x16xi32>
    %c0_i32_180 = arith.constant 0 : i32
    %422 = vector.broadcast %c0_i32_180 : i32 to vector<16x16xi32>
    %423 = arith.addi %421, %422 : vector<16x16xi32>
    %424 = vector.broadcast %420 : vector<1x16xi32> to vector<16x16xi32>
    %425 = arith.cmpi eq, %424, %423 : vector<16x16xi32>
    %cst_181 = arith.constant 1.000000e+00 : f32
    %cst_182 = arith.constant 0.000000e+00 : f32
    %426 = vector.broadcast %cst_181 : f32 to vector<16x16xf32>
    %427 = vector.broadcast %cst_182 : f32 to vector<16x16xf32>
    %428 = arith.select %425, %426, %427 : vector<16x16xi1>, vector<16x16xf32>
    %429 = arith.truncf %428 : vector<16x16xf32> to vector<16x16xbf16>
    %cst_183 = arith.constant dense<0.000000e+00> : vector<16x32xf32>
    %430 = tpu.matmul %429, %384, %cst_183 {dimension_numbers = #tpu.dot_dimension_numbers<[0], [0], [1], [1], [0, 1, 1, 1], [], []>} : vector<16x16xbf16>, vector<16x32xbf16>, vector<16x32xf32> -> vector<16x32xf32>
    %431 = arith.maximumf %419, %430 : vector<16x32xf32>
    %432 = vector.extract_strided_slice %7 {offsets = [4, 0], sizes = [1, 16], strides = [1, 1]} : vector<8x16xi32> to vector<1x16xi32>
    %433 = tpu.iota {dimensions = array<i32: 0>} : vector<16x16xi32>
    %c0_i32_184 = arith.constant 0 : i32
    %434 = vector.broadcast %c0_i32_184 : i32 to vector<16x16xi32>
    %435 = arith.addi %433, %434 : vector<16x16xi32>
    %436 = vector.broadcast %432 : vector<1x16xi32> to vector<16x16xi32>
    %437 = arith.cmpi eq, %436, %435 : vector<16x16xi32>
    %cst_185 = arith.constant 1.000000e+00 : f32
    %cst_186 = arith.constant 0.000000e+00 : f32
    %438 = vector.broadcast %cst_185 : f32 to vector<16x16xf32>
    %439 = vector.broadcast %cst_186 : f32 to vector<16x16xf32>
    %440 = arith.select %437, %438, %439 : vector<16x16xi1>, vector<16x16xf32>
    %441 = arith.truncf %440 : vector<16x16xf32> to vector<16x16xbf16>
    %cst_187 = arith.constant dense<0.000000e+00> : vector<16x32xf32>
    %442 = tpu.matmul %441, %384, %cst_187 {dimension_numbers = #tpu.dot_dimension_numbers<[0], [0], [1], [1], [0, 1, 1, 1], [], []>} : vector<16x16xbf16>, vector<16x32xbf16>, vector<16x32xf32> -> vector<16x32xf32>
    %443 = arith.maximumf %431, %442 : vector<16x32xf32>
    %444 = vector.extract_strided_slice %7 {offsets = [5, 0], sizes = [1, 16], strides = [1, 1]} : vector<8x16xi32> to vector<1x16xi32>
    %445 = tpu.iota {dimensions = array<i32: 0>} : vector<16x16xi32>
    %c0_i32_188 = arith.constant 0 : i32
    %446 = vector.broadcast %c0_i32_188 : i32 to vector<16x16xi32>
    %447 = arith.addi %445, %446 : vector<16x16xi32>
    %448 = vector.broadcast %444 : vector<1x16xi32> to vector<16x16xi32>
    %449 = arith.cmpi eq, %448, %447 : vector<16x16xi32>
    %cst_189 = arith.constant 1.000000e+00 : f32
    %cst_190 = arith.constant 0.000000e+00 : f32
    %450 = vector.broadcast %cst_189 : f32 to vector<16x16xf32>
    %451 = vector.broadcast %cst_190 : f32 to vector<16x16xf32>
    %452 = arith.select %449, %450, %451 : vector<16x16xi1>, vector<16x16xf32>
    %453 = arith.truncf %452 : vector<16x16xf32> to vector<16x16xbf16>
    %cst_191 = arith.constant dense<0.000000e+00> : vector<16x32xf32>
    %454 = tpu.matmul %453, %384, %cst_191 {dimension_numbers = #tpu.dot_dimension_numbers<[0], [0], [1], [1], [0, 1, 1, 1], [], []>} : vector<16x16xbf16>, vector<16x32xbf16>, vector<16x32xf32> -> vector<16x32xf32>
    %455 = arith.maximumf %443, %454 : vector<16x32xf32>
    %456 = vector.extract_strided_slice %7 {offsets = [6, 0], sizes = [1, 16], strides = [1, 1]} : vector<8x16xi32> to vector<1x16xi32>
    %457 = tpu.iota {dimensions = array<i32: 0>} : vector<16x16xi32>
    %c0_i32_192 = arith.constant 0 : i32
    %458 = vector.broadcast %c0_i32_192 : i32 to vector<16x16xi32>
    %459 = arith.addi %457, %458 : vector<16x16xi32>
    %460 = vector.broadcast %456 : vector<1x16xi32> to vector<16x16xi32>
    %461 = arith.cmpi eq, %460, %459 : vector<16x16xi32>
    %cst_193 = arith.constant 1.000000e+00 : f32
    %cst_194 = arith.constant 0.000000e+00 : f32
    %462 = vector.broadcast %cst_193 : f32 to vector<16x16xf32>
    %463 = vector.broadcast %cst_194 : f32 to vector<16x16xf32>
    %464 = arith.select %461, %462, %463 : vector<16x16xi1>, vector<16x16xf32>
    %465 = arith.truncf %464 : vector<16x16xf32> to vector<16x16xbf16>
    %cst_195 = arith.constant dense<0.000000e+00> : vector<16x32xf32>
    %466 = tpu.matmul %465, %384, %cst_195 {dimension_numbers = #tpu.dot_dimension_numbers<[0], [0], [1], [1], [0, 1, 1, 1], [], []>} : vector<16x16xbf16>, vector<16x32xbf16>, vector<16x32xf32> -> vector<16x32xf32>
    %467 = arith.maximumf %455, %466 : vector<16x32xf32>
    %468 = vector.extract_strided_slice %7 {offsets = [7, 0], sizes = [1, 16], strides = [1, 1]} : vector<8x16xi32> to vector<1x16xi32>
    %469 = tpu.iota {dimensions = array<i32: 0>} : vector<16x16xi32>
    %c0_i32_196 = arith.constant 0 : i32
    %470 = vector.broadcast %c0_i32_196 : i32 to vector<16x16xi32>
    %471 = arith.addi %469, %470 : vector<16x16xi32>
    %472 = vector.broadcast %468 : vector<1x16xi32> to vector<16x16xi32>
    %473 = arith.cmpi eq, %472, %471 : vector<16x16xi32>
    %cst_197 = arith.constant 1.000000e+00 : f32
    %cst_198 = arith.constant 0.000000e+00 : f32
    %474 = vector.broadcast %cst_197 : f32 to vector<16x16xf32>
    %475 = vector.broadcast %cst_198 : f32 to vector<16x16xf32>
    %476 = arith.select %473, %474, %475 : vector<16x16xi1>, vector<16x16xf32>
    %477 = arith.truncf %476 : vector<16x16xf32> to vector<16x16xbf16>
    %cst_199 = arith.constant dense<0.000000e+00> : vector<16x32xf32>
    %478 = tpu.matmul %477, %384, %cst_199 {dimension_numbers = #tpu.dot_dimension_numbers<[0], [0], [1], [1], [0, 1, 1, 1], [], []>} : vector<16x16xbf16>, vector<16x32xbf16>, vector<16x32xf32> -> vector<16x32xf32>
    %479 = arith.maximumf %467, %478 : vector<16x32xf32>
    %c13 = arith.constant 13 : index
    %c0_200 = arith.constant 0 : index
    %c0_201 = arith.constant 0 : index
    %480 = vector.load %arg5[%c13, %c0_200, %c0_201] : memref<16x32x32xbf16, #tpu.memory_space<vmem>>, vector<1x32x32xbf16>
    %481 = vector.shape_cast %480 : vector<1x32x32xbf16> to vector<32x32xbf16>
    %cst_202 = arith.constant dense<0.000000e+00> : vector<16x32xf32>
    %482 = tpu.matmul %268, %481, %cst_202 {dimension_numbers = #tpu.dot_dimension_numbers<[1], [0], [0], [1], [0, 0, 1, 1], [], []>} : vector<16x32xbf16>, vector<32x32xbf16>, vector<16x32xf32> -> vector<16x32xf32>
    %483 = arith.addf %479, %482 : vector<16x32xf32>
    %c10_203 = arith.constant 10 : index
    %c0_204 = arith.constant 0 : index
    %484 = vector.load %arg6[%c10_203, %c0_204] : memref<15x32xf32, #tpu.memory_space<vmem>>, vector<1x32xf32>
    %485 = vector.broadcast %484 : vector<1x32xf32> to vector<16x32xf32>
    %486 = arith.addf %483, %485 : vector<16x32xf32>
    %cst_205 = arith.constant 0.000000e+00 : f32
    %487 = vector.broadcast %cst_205 : f32 to vector<16x32xf32>
    %488 = arith.cmpf oge, %486, %487 : vector<16x32xf32>
    %cst_206 = arith.constant 2.000000e-01 : f32
    %489 = vector.broadcast %cst_206 : f32 to vector<16x32xf32>
    %490 = arith.mulf %489, %486 : vector<16x32xf32>
    %491 = arith.select %488, %486, %490 : vector<16x32xi1>, vector<16x32xf32>
    %c14 = arith.constant 14 : index
    %c0_207 = arith.constant 0 : index
    %c0_208 = arith.constant 0 : index
    %492 = vector.load %arg5[%c14, %c0_207, %c0_208] : memref<16x32x32xbf16, #tpu.memory_space<vmem>>, vector<1x32x32xbf16>
    %493 = vector.shape_cast %492 : vector<1x32x32xbf16> to vector<32x32xbf16>
    %494 = arith.truncf %380 : vector<16x32xf32> to vector<16x32xbf16>
    %cst_209 = arith.constant dense<0.000000e+00> : vector<16x32xf32>
    %495 = tpu.matmul %494, %493, %cst_209 {dimension_numbers = #tpu.dot_dimension_numbers<[1], [0], [0], [1], [0, 0, 1, 1], [], []>} : vector<16x32xbf16>, vector<32x32xbf16>, vector<16x32xf32> -> vector<16x32xf32>
    %496 = arith.addf %243, %495 : vector<16x32xf32>
    %c15 = arith.constant 15 : index
    %c0_210 = arith.constant 0 : index
    %c0_211 = arith.constant 0 : index
    %497 = vector.load %arg5[%c15, %c0_210, %c0_211] : memref<16x32x32xbf16, #tpu.memory_space<vmem>>, vector<1x32x32xbf16>
    %498 = vector.shape_cast %497 : vector<1x32x32xbf16> to vector<32x32xbf16>
    %499 = arith.truncf %491 : vector<16x32xf32> to vector<16x32xbf16>
    %cst_212 = arith.constant dense<0.000000e+00> : vector<16x32xf32>
    %500 = tpu.matmul %499, %498, %cst_212 {dimension_numbers = #tpu.dot_dimension_numbers<[1], [0], [0], [1], [0, 0, 1, 1], [], []>} : vector<16x32xbf16>, vector<32x32xbf16>, vector<16x32xf32> -> vector<16x32xf32>
    %501 = arith.addf %496, %500 : vector<16x32xf32>
    %c11_213 = arith.constant 11 : index
    %c0_214 = arith.constant 0 : index
    %502 = vector.load %arg6[%c11_213, %c0_214] : memref<15x32xf32, #tpu.memory_space<vmem>>, vector<1x32xf32>
    %503 = vector.broadcast %502 : vector<1x32xf32> to vector<16x32xf32>
    %504 = arith.addf %501, %503 : vector<16x32xf32>
    %c12_215 = arith.constant 12 : index
    %c0_216 = arith.constant 0 : index
    %505 = vector.load %arg6[%c12_215, %c0_216] : memref<15x32xf32, #tpu.memory_space<vmem>>, vector<1x32xf32>
    %c13_217 = arith.constant 13 : index
    %c0_218 = arith.constant 0 : index
    %506 = vector.load %arg6[%c13_217, %c0_218] : memref<15x32xf32, #tpu.memory_space<vmem>>, vector<1x32xf32>
    %cst_219 = arith.constant dense<0.000000e+00> : vector<16xf32>
    %507 = vector.multi_reduction <add>, %504, %cst_219 [1] : vector<16x32xf32> to vector<16xf32>
    %508 = vector.shape_cast %507 : vector<16xf32> to vector<16x1xf32>
    %cst_220 = arith.constant 3.200000e+01 : f32
    %509 = vector.broadcast %cst_220 : f32 to vector<16x1xf32>
    %510 = arith.divf %508, %509 : vector<16x1xf32>
    %511 = vector.broadcast %510 : vector<16x1xf32> to vector<16x32xf32>
    %512 = arith.subf %504, %511 : vector<16x32xf32>
    %513 = arith.mulf %512, %512 : vector<16x32xf32>
    %cst_221 = arith.constant dense<0.000000e+00> : vector<16xf32>
    %514 = vector.multi_reduction <add>, %513, %cst_221 [1] : vector<16x32xf32> to vector<16xf32>
    %515 = vector.shape_cast %514 : vector<16xf32> to vector<16x1xf32>
    %cst_222 = arith.constant 3.200000e+01 : f32
    %516 = vector.broadcast %cst_222 : f32 to vector<16x1xf32>
    %517 = arith.divf %515, %516 : vector<16x1xf32>
    %518 = vector.broadcast %510 : vector<16x1xf32> to vector<16x32xf32>
    %519 = arith.subf %504, %518 : vector<16x32xf32>
    %cst_223 = arith.constant 9.99999974E-6 : f32
    %520 = vector.broadcast %cst_223 : f32 to vector<16x1xf32>
    %521 = arith.addf %517, %520 : vector<16x1xf32>
    %522 = math.rsqrt %521 : vector<16x1xf32>
    %523 = vector.broadcast %522 : vector<16x1xf32> to vector<16x32xf32>
    %524 = arith.mulf %519, %523 : vector<16x32xf32>
    %525 = vector.broadcast %505 : vector<1x32xf32> to vector<16x32xf32>
    %526 = arith.mulf %524, %525 : vector<16x32xf32>
    %527 = vector.broadcast %506 : vector<1x32xf32> to vector<16x32xf32>
    %528 = arith.addf %526, %527 : vector<16x32xf32>
    %c0_224 = arith.constant 0 : index
    %c0_225 = arith.constant 0 : index
    %529 = vector.load %arg7[%c0_224, %c0_225] : memref<32x128xbf16, #tpu.memory_space<vmem>>, vector<32x128xbf16>
    %530 = arith.truncf %528 : vector<16x32xf32> to vector<16x32xbf16>
    %cst_226 = arith.constant dense<0.000000e+00> : vector<16x128xf32>
    %531 = tpu.matmul %530, %529, %cst_226 {dimension_numbers = #tpu.dot_dimension_numbers<[1], [0], [0], [1], [0, 0, 1, 1], [], []>} : vector<16x32xbf16>, vector<32x128xbf16>, vector<16x128xf32> -> vector<16x128xf32>
    %c0_227 = arith.constant 0 : index
    %c0_228 = arith.constant 0 : index
    %532 = vector.load %arg8[%c0_227, %c0_228] : memref<1x128xf32, #tpu.memory_space<vmem>>, vector<1x128xf32>
    %533 = vector.broadcast %532 : vector<1x128xf32> to vector<16x128xf32>
    %534 = arith.addf %531, %533 : vector<16x128xf32>
    %cst_229 = arith.constant 5.000000e-01 : f32
    %535 = vector.broadcast %cst_229 : f32 to vector<16x128xf32>
    %536 = arith.mulf %535, %534 : vector<16x128xf32>
    %cst_230 = arith.constant 4.471500e-02 : f32
    %537 = vector.broadcast %cst_230 : f32 to vector<16x128xf32>
    %538 = arith.mulf %537, %534 : vector<16x128xf32>
    %539 = arith.mulf %538, %534 : vector<16x128xf32>
    %540 = arith.mulf %539, %534 : vector<16x128xf32>
    %541 = arith.addf %534, %540 : vector<16x128xf32>
    %cst_231 = arith.constant 0.797884583 : f32
    %542 = vector.broadcast %cst_231 : f32 to vector<16x128xf32>
    %543 = arith.mulf %542, %541 : vector<16x128xf32>
    %544 = math.tanh %543 : vector<16x128xf32>
    %cst_232 = arith.constant 1.000000e+00 : f32
    %545 = vector.broadcast %cst_232 : f32 to vector<16x128xf32>
    %546 = arith.addf %545, %544 : vector<16x128xf32>
    %547 = arith.mulf %536, %546 : vector<16x128xf32>
    %c0_233 = arith.constant 0 : index
    %c0_234 = arith.constant 0 : index
    %548 = vector.load %arg9[%c0_233, %c0_234] : memref<128x32xbf16, #tpu.memory_space<vmem>>, vector<128x32xbf16>
    %549 = arith.truncf %547 : vector<16x128xf32> to vector<16x128xbf16>
    %cst_235 = arith.constant dense<0.000000e+00> : vector<16x32xf32>
    %550 = tpu.matmul %549, %548, %cst_235 {dimension_numbers = #tpu.dot_dimension_numbers<[1], [0], [0], [1], [0, 0, 1, 1], [], []>} : vector<16x128xbf16>, vector<128x32xbf16>, vector<16x32xf32> -> vector<16x32xf32>
    %551 = arith.addf %504, %550 : vector<16x32xf32>
    %c14_236 = arith.constant 14 : index
    %c0_237 = arith.constant 0 : index
    %552 = vector.load %arg6[%c14_236, %c0_237] : memref<15x32xf32, #tpu.memory_space<vmem>>, vector<1x32xf32>
    %553 = vector.broadcast %552 : vector<1x32xf32> to vector<16x32xf32>
    %554 = arith.addf %551, %553 : vector<16x32xf32>
    %c0_238 = arith.constant 0 : index
    %c0_239 = arith.constant 0 : index
    %c0_240 = arith.constant 0 : index
    %555 = vector.load %arg10[%c0_238, %c0_239, %c0_240] : memref<1x16x32xf32, #tpu.memory_space<vmem>>, vector<1x16x32xf32>
    %556 = vector.shape_cast %555 : vector<1x16x32xf32> to vector<16x32xf32>
    %557 = vector.shape_cast %554 : vector<16x32xf32> to vector<1x16x32xf32>
    tpu.vector_store %arg10[%c0_238, %c0_239, %c0_240], %557 {strides = array<i32>} : memref<1x16x32xf32, #tpu.memory_space<vmem>>, vector<1x16x32xf32>,
    return
  }
  func.func @transform_0(%arg0: i32) -> (i32, i32, i32) {
    %c0_i32 = arith.constant 0 : i32
    %c0_i32_0 = arith.constant 0 : i32
    %c0_i32_1 = arith.constant 0 : i32
    return %arg0, %c0_i32, %c0_i32_0 : i32, i32, i32
  }
  func.func @transform_1(%arg0: i32) -> (i32, i32, i32) {
    %c0_i32 = arith.constant 0 : i32
    %c0_i32_0 = arith.constant 0 : i32
    %c0_i32_1 = arith.constant 0 : i32
    return %arg0, %c0_i32, %c0_i32_0 : i32, i32, i32
  }
  func.func @transform_2(%arg0: i32) -> (i32, i32, i32) {
    %c0_i32 = arith.constant 0 : i32
    %c0_i32_0 = arith.constant 0 : i32
    %c0_i32_1 = arith.constant 0 : i32
    return %arg0, %c0_i32, %c0_i32_0 : i32, i32, i32
  }
  func.func @transform_3(%arg0: i32) -> (i32, i32, i32) {
    %c0_i32 = arith.constant 0 : i32
    %c0_i32_0 = arith.constant 0 : i32
    %c0_i32_1 = arith.constant 0 : i32
    return %arg0, %c0_i32, %c0_i32_0 : i32, i32, i32
  }
  func.func @transform_4(%arg0: i32) -> (i32, i32, i32) {
    %c0_i32 = arith.constant 0 : i32
    %c0_i32_0 = arith.constant 0 : i32
    %c0_i32_1 = arith.constant 0 : i32
    %c0_i32_2 = arith.constant 0 : i32
    return %c0_i32, %c0_i32_0, %c0_i32_1 : i32, i32, i32
  }
  func.func @transform_5(%arg0: i32) -> (i32, i32) {
    %c0_i32 = arith.constant 0 : i32
    %c0_i32_0 = arith.constant 0 : i32
    %c0_i32_1 = arith.constant 0 : i32
    return %c0_i32, %c0_i32_0 : i32, i32
  }
  func.func @transform_6(%arg0: i32) -> (i32, i32) {
    %c0_i32 = arith.constant 0 : i32
    %c0_i32_0 = arith.constant 0 : i32
    %c0_i32_1 = arith.constant 0 : i32
    return %c0_i32, %c0_i32_0 : i32, i32
  }
  func.func @transform_7(%arg0: i32) -> (i32, i32) {
    %c0_i32 = arith.constant 0 : i32
    %c0_i32_0 = arith.constant 0 : i32
    %c0_i32_1 = arith.constant 0 : i32
    return %c0_i32, %c0_i32_0 : i32, i32
  }
  func.func @transform_8(%arg0: i32) -> (i32, i32) {
    %c0_i32 = arith.constant 0 : i32
    %c0_i32_0 = arith.constant 0 : i32
    %c0_i32_1 = arith.constant 0 : i32
    return %c0_i32, %c0_i32_0 : i32, i32
  }
  func.func @transform_9(%arg0: i32) -> (i32, i32, i32) {
    %c0_i32 = arith.constant 0 : i32
    %c0_i32_0 = arith.constant 0 : i32
    %c0_i32_1 = arith.constant 0 : i32
    return %arg0, %c0_i32, %c0_i32_0 : i32, i32, i32
  }
}

</mosaic_0001>

<llo_original>
// kernel: tpu_custom_call.1
$region0: #{tpu_custom_call.1}
  #allocation0 [shape = 'u32[]', space=smem, size = 0x4, offset = 0x4, fixed_abs, tag = 'smem constant byte address 0x4 - core index']
  #allocation1 [shape = 'u32[144,128]{1,0:T(1,128)}', space=vmem, size = 0x12000, scoped, tag = 'internal scratch']
  %s0 = inlined_call_operand.hbm [shape: f32[8,128], index: 0, kind: input, shape index: {}]
  %s1 = inlined_call_operand.hbm [shape: f32[8,128], index: 1, kind: output, shape index: {}]
  %s2 = sld [smem:[#allocation0]]
  $region18: #{tpu_custom_call.1} parent=0
    _
  %s4 = ssub.s32 1, %s2
  %s5 = scalar_select 0, %s4, %s2
  $region1: #{tpu_custom_call.1} parent=0
    #allocation2 [shape = 'u8[4096]{0}', space=vmem, size = 0x1000, scoped, tag = 'input window, operand 0, single buffered']
    #allocation3 [shape = 's32[1]{0}', space=sflag, size = 0x4, scoped, tag = 'scoped memory for tpu_custom_call.1']
    #allocation4 [shape = 's32[1]{0}', space=sflag, size = 0x4, scoped, tag = 'scoped memory for tpu_custom_call.1']
    #allocation5 [shape = 'u8[4096]{0}', space=vmem, size = 0x1000, scoped, tag = 'output window, operand 0, single buffered']
    %6 = vsyncpa [#allocation3], 0
    %7 = vsyncpa [#allocation4], 0
    // Predicated region
    $region2: #{tpu_custom_call.1} parent=1 // pred_check
      _
    $region3: #{tpu_custom_call.1} parent=1 // pred_check_branch
      %9 = sbr.rel (0) target = $region5
    $region4: #{tpu_custom_call.1} parent=1 // pred_region
      %s11 = ssub.s32 128, 128
      %12 = vsyncadd [#allocation3], %s11
      %s14 = sshll.u32 [#allocation2], 4
      %s15 = int_to_ptr.vmem [resolvable:$true] %s14
      %17 = dma.hbm_to_vmem [thread:$0]  %s0, 128, %s15, [#allocation3]
    $region5: #{tpu_custom_call.1} parent=1 // pred_fallthru
      _
    // Predicated region
    $region6: #{tpu_custom_call.1} parent=1 // pred_check
      _
    $region7: #{tpu_custom_call.1} parent=1 // pred_check_branch
      %19 = sbr.rel (0) target = $region9
    $region8: #{tpu_custom_call.1} parent=1 // pred_region
      %20 = dma.done [#allocation3], 128
    $region9: #{tpu_custom_call.1} parent=1 // pred_fallthru
      _
    %v21 = vld [vmem:[#allocation2] sm:$0xff]
    %v22 = verf.f32.pop %v21
    %23 = vst [vmem:[#allocation5] sm:$0xff] %v22
    // Predicated region
    $region10: #{tpu_custom_call.1} parent=1 // pred_check
      _
    $region11: #{tpu_custom_call.1} parent=1 // pred_check_branch
      %25 = sbr.rel (0) target = $region13
    $region12: #{tpu_custom_call.1} parent=1 // pred_region
      %s27 = ssub.s32 128, 128
      %28 = vsyncadd [#allocation4], %s27
      %s30 = sshll.u32 [#allocation5], 4
      %s31 = int_to_ptr.vmem [resolvable:$true] %s30
      %33 = dma.vmem_to_hbm [thread:$0]  %s31, 128, %s1, [#allocation4]
    $region13: #{tpu_custom_call.1} parent=1 // pred_fallthru
      _
    // Predicated region
    $region14: #{tpu_custom_call.1} parent=1 // pred_check
      _
    $region15: #{tpu_custom_call.1} parent=1 // pred_check_branch
      %35 = sbr.rel (0) target = $region17
    $region16: #{tpu_custom_call.1} parent=1 // pred_region
      %36 = dma.done [#allocation4], 128
    $region17: #{tpu_custom_call.1} parent=1 // pred_fallthru
      _
    %37 = vsyncpa [#allocation3], 1
    %38 = vsyncpa [#allocation4], 1

// kernel: transformer_forward.1
$region0: #{transformer_forward.1}
  #allocation0 [shape = 'u32[]', space=smem, size = 0x4, offset = 0x4, fixed_abs, tag = 'smem constant byte address 0x4 - core index']
  #allocation1 [shape = 'u32[144,128]{1,0:T(1,128)}', space=vmem, size = 0x12000, scoped, tag = 'internal scratch']
  #allocation2 [shape = 'bf16[16,32]{1,0:T(16,128)(2,1)}', space=vmem, size = 0x1000, scoped, tag = 'scratch operand']
  %s0 = inlined_call_operand.vmem [shape: f32[2,16,32], index: 0, kind: input, shape index: {}]
  %s1 = inlined_call_operand.vmem [shape: f32[2,16,32], index: 1, kind: input, shape index: {}]
  %s2 = inlined_call_operand.vmem [shape: s32[2,8,16], index: 2, kind: input, shape index: {}]
  %s3 = inlined_call_operand.vmem [shape: s32[2,8,16], index: 3, kind: input, shape index: {}]
  %s4 = inlined_call_operand.vmem [shape: bf16[16,32,32], index: 4, kind: input, shape index: {}]
  %s5 = inlined_call_operand.vmem [shape: f32[15,32], index: 5, kind: input, shape index: {}]
  %s6 = inlined_call_operand.vmem [shape: bf16[32,128], index: 6, kind: input, shape index: {}]
  %s7 = inlined_call_operand.vmem [shape: f32[1,128], index: 7, kind: input, shape index: {}]
  %s8 = inlined_call_operand.vmem [shape: bf16[128,32], index: 8, kind: input, shape index: {}]
  %s9 = inlined_call_operand.hbm [shape: f32[2,16,32], index: 9, kind: output, shape index: {}]
  %s10 = sld [smem:[#allocation0]]
  $region69: #{transformer_forward.1} parent=0
    _
  %s12 = ssub.s32 1, %s10
  %s13 = scalar_select 0, %s12, %s10
  $region1: #{transformer_forward.1} parent=0
    #allocation3 [shape = 'u8[16384]{0}', space=vmem, size = 0x4000, scoped, tag = 'output window, operand 0']
    #allocation4 [shape = 's32[2]{0}', space=sflag, size = 0x8, scoped, tag = 'scoped memory for transformer_forward.1']
    %14 = vsyncpa [#allocation4], 0
    %s15 = scalar_lea.sflag [#allocation4], 1
    %16 = vsyncpa %s15, 0
    loop: start=0, step=1, limit=4
    $region2: #{transformer_forward.1} parent=1 // loop_pre_header
      _
    $region3: #{transformer_forward.1} parent=1 // loop_header
      %s18 = sphi 0, %s22
      %p19 = scmp.ge.s32.totalorder %s18, 4
      %s28 = sphi 0, %s30
      %s31 = sphi 0, %s28
      %s32 = sphi 0, %s31
      %s48 = sphi 0, %s32
      %s54 = sphi 0, %s56
      %s57 = sphi 0, %s54
      %s58 = sphi 0, %s57
      %s74 = sphi 0, %s58
      %s80 = sphi 0, %s82
      %s83 = sphi 0, %s80
      %s84 = sphi 0, %s83
      %s100 = sphi 0, %s84
      %s106 = sphi 0, %s108
      %s109 = sphi 0, %s106
      %s110 = sphi 0, %s109
      %s126 = sphi 0, %s110
      %s130 = sphi 0, %s130
      %s132 = sphi 0, %s130
      %s133 = sphi 0, %s132
      %s147 = sphi 0, %s133
      %s151 = sphi 0, %s151
      %s153 = sphi 0, %s151
      %s154 = sphi 0, %s153
      %s168 = sphi 0, %s154
      %s172 = sphi 0, %s172
      %s174 = sphi 0, %s172
      %s175 = sphi 0, %s174
      %s189 = sphi 0, %s175
      %s193 = sphi 0, %s193
      %s195 = sphi 0, %s193
      %s196 = sphi 0, %s195
      %s210 = sphi 0, %s196
      %s214 = sphi 0, %s214
      %s216 = sphi 0, %s214
      %s217 = sphi 0, %s216
      %s231 = sphi 0, %s217
      %s237 = sphi 0, %s239
      %s240 = sphi 0, %s237
      %s241 = sphi 0, %s240
      %s257 = sphi 0, %s241
    $region4: #{transformer_forward.1} parent=1 // loop_header_branch
      %21 = sbr.rel (%p19) target = $region8
    $region5: #{transformer_forward.1} parent=1 // loop_body
      %s23 = ssub.s32 %s18, 1
      %s24 = ssub.s32 %s18, 2
      %s25 = sadd.s32 %s18, 1
      %s26 = ssub.s32 %s18, %s25
      %p27 = scmp.eq.s32.totalorder %s26, 0
      %s29 = sadd.s32 %s28, 1
      %s30 = scalar_select %p27, %s28, %s29
      %p33 = pneg %p27
      %p34 = scmp.eq.s32.totalorder %s18, 1
      %p35 = por %p33, %p34
      %p36 = scmp.ne.s32.totalorder %s28, %s31
      %p37 = scmp.eq.s32.totalorder %s18, 0
      %p38 = por %p36, %p37
      %p39 = scmp.ne.s32.totalorder %s28, %s31
      %p40 = scmp.eq.s32.totalorder %s23, 1
      %p41 = por %p39, %p40
      %p42 = scmp.ne.s32.totalorder %s31, %s32
      %p43 = scmp.eq.s32.totalorder %s23, 0
      %p44 = por %p42, %p43
      %p45 = scmp.ne.s32.totalorder %s31, %s32
      %p46 = scmp.eq.s32.totalorder %s24, 1
      %p47 = por %p45, %p46
      %p49 = scmp.ne.s32.totalorder %s32, %s48
      %p50 = scmp.eq.s32.totalorder %s24, 0
      %p51 = por %p49, %p50
      %s52 = ssub.s32 %s18, %s25
      %p53 = scmp.eq.s32.totalorder %s52, 0
      %s55 = sadd.s32 %s54, 1
      %s56 = scalar_select %p53, %s54, %s55
      %p59 = pneg %p53
      %p60 = scmp.eq.s32.totalorder %s18, 1
      %p61 = por %p59, %p60
      %p62 = scmp.ne.s32.totalorder %s54, %s57
      %p63 = scmp.eq.s32.totalorder %s18, 0
      %p64 = por %p62, %p63
      %p65 = scmp.ne.s32.totalorder %s54, %s57
      %p66 = scmp.eq.s32.totalorder %s23, 1
      %p67 = por %p65, %p66
      %p68 = scmp.ne.s32.totalorder %s57, %s58
      %p69 = scmp.eq.s32.totalorder %s23, 0
      %p70 = por %p68, %p69
      %p71 = scmp.ne.s32.totalorder %s57, %s58
      %p72 = scmp.eq.s32.totalorder %s24, 1
      %p73 = por %p71, %p72
      %p75 = scmp.ne.s32.totalorder %s58, %s74
      %p76 = scmp.eq.s32.totalorder %s24, 0
      %p77 = por %p75, %p76
      %s78 = ssub.s32 %s18, %s25
      %p79 = scmp.eq.s32.totalorder %s78, 0
      %s81 = sadd.s32 %s80, 1
      %s82 = scalar_select %p79, %s80, %s81
      %p85 = pneg %p79
      %p86 = scmp.eq.s32.totalorder %s18, 1
      %p87 = por %p85, %p86
      %p88 = scmp.ne.s32.totalorder %s80, %s83
      %p89 = scmp.eq.s32.totalorder %s18, 0
      %p90 = por %p88, %p89
      %p91 = scmp.ne.s32.totalorder %s80, %s83
      %p92 = scmp.eq.s32.totalorder %s23, 1
      %p93 = por %p91, %p92
      %p94 = scmp.ne.s32.totalorder %s83, %s84
      %p95 = scmp.eq.s32.totalorder %s23, 0
      %p96 = por %p94, %p95
      %p97 = scmp.ne.s32.totalorder %s83, %s84
      %p98 = scmp.eq.s32.totalorder %s24, 1
      %p99 = por %p97, %p98
      %p101 = scmp.ne.s32.totalorder %s84, %s100
      %p102 = scmp.eq.s32.totalorder %s24, 0
      %p103 = por %p101, %p102
      %s104 = ssub.s32 %s18, %s25
      %p105 = scmp.eq.s32.totalorder %s104, 0
      %s107 = sadd.s32 %s106, 1
      %s108 = scalar_select %p105, %s106, %s107
      %p111 = pneg %p105
      %p112 = scmp.eq.s32.totalorder %s18, 1
      %p113 = por %p111, %p112
      %p114 = scmp.ne.s32.totalorder %s106, %s109
      %p115 = scmp.eq.s32.totalorder %s18, 0
      %p116 = por %p114, %p115
      %p117 = scmp.ne.s32.totalorder %s106, %s109
      %p118 = scmp.eq.s32.totalorder %s23, 1
      %p119 = por %p117, %p118
      %p120 = scmp.ne.s32.totalorder %s109, %s110
      %p121 = scmp.eq.s32.totalorder %s23, 0
      %p122 = por %p120, %p121
      %p123 = scmp.ne.s32.totalorder %s109, %s110
      %p124 = scmp.eq.s32.totalorder %s24, 1
      %p125 = por %p123, %p124
      %p127 = scmp.ne.s32.totalorder %s110, %s126
      %p128 = scmp.eq.s32.totalorder %s24, 0
      %p129 = por %p127, %p128
      %s131 = sadd.s32 %s130, 1
      %p134 = scmp.eq.s32.totalorder %s18, 1
      %p135 = scmp.ne.s32.totalorder %s130, %s132
      %p136 = scmp.eq.s32.totalorder %s18, 0
      %p137 = por %p135, %p136
      %p138 = scmp.ne.s32.totalorder %s130, %s132
      %p139 = scmp.eq.s32.totalorder %s23, 1
      %p140 = por %p138, %p139
      %p141 = scmp.ne.s32.totalorder %s132, %s133
      %p142 = scmp.eq.s32.totalorder %s23, 0
      %p143 = por %p141, %p142
      %p144 = scmp.ne.s32.totalorder %s132, %s133
      %p145 = scmp.eq.s32.totalorder %s24, 1
      %p146 = por %p144, %p145
      %p148 = scmp.ne.s32.totalorder %s133, %s147
      %p149 = scmp.eq.s32.totalorder %s24, 0
      %p150 = por %p148, %p149
      %s152 = sadd.s32 %s151, 1
      %p155 = scmp.eq.s32.totalorder %s18, 1
      %p156 = scmp.ne.s32.totalorder %s151, %s153
      %p157 = scmp.eq.s32.totalorder %s18, 0
      %p158 = por %p156, %p157
      %p159 = scmp.ne.s32.totalorder %s151, %s153
      %p160 = scmp.eq.s32.totalorder %s23, 1
      %p161 = por %p159, %p160
      %p162 = scmp.ne.s32.totalorder %s153, %s154
      %p163 = scmp.eq.s32.totalorder %s23, 0
      %p164 = por %p162, %p163
      %p165 = scmp.ne.s32.totalorder %s153, %s154
      %p166 = scmp.eq.s32.totalorder %s24, 1
      %p167 = por %p165, %p166
      %p169 = scmp.ne.s32.totalorder %s154, %s168
      %p170 = scmp.eq.s32.totalorder %s24, 0
      %p171 = por %p169, %p170
      %s173 = sadd.s32 %s172, 1
      %p176 = scmp.eq.s32.totalorder %s18, 1
      %p177 = scmp.ne.s32.totalorder %s172, %s174
      %p178 = scmp.eq.s32.totalorder %s18, 0
      %p179 = por %p177, %p178
      %p180 = scmp.ne.s32.totalorder %s172, %s174
      %p181 = scmp.eq.s32.totalorder %s23, 1
      %p182 = por %p180, %p181
      %p183 = scmp.ne.s32.totalorder %s174, %s175
      %p184 = scmp.eq.s32.totalorder %s23, 0
      %p185 = por %p183, %p184
      %p186 = scmp.ne.s32.totalorder %s174, %s175
      %p187 = scmp.eq.s32.totalorder %s24, 1
      %p188 = por %p186, %p187
      %p190 = scmp.ne.s32.totalorder %s175, %s189
      %p191 = scmp.eq.s32.totalorder %s24, 0
      %p192 = por %p190, %p191
      %s194 = sadd.s32 %s193, 1
      %p197 = scmp.eq.s32.totalorder %s18, 1
      %p198 = scmp.ne.s32.totalorder %s193, %s195
      %p199 = scmp.eq.s32.totalorder %s18, 0
      %p200 = por %p198, %p199
      %p201 = scmp.ne.s32.totalorder %s193, %s195
      %p202 = scmp.eq.s32.totalorder %s23, 1
      %p203 = por %p201, %p202
      %p204 = scmp.ne.s32.totalorder %s195, %s196
      %p205 = scmp.eq.s32.totalorder %s23, 0
      %p206 = por %p204, %p205
      %p207 = scmp.ne.s32.totalorder %s195, %s196
      %p208 = scmp.eq.s32.totalorder %s24, 1
      %p209 = por %p207, %p208
      %p211 = scmp.ne.s32.totalorder %s196, %s210
      %p212 = scmp.eq.s32.totalorder %s24, 0
      %p213 = por %p211, %p212
      %s215 = sadd.s32 %s214, 1
      %p218 = scmp.eq.s32.totalorder %s18, 1
      %p219 = scmp.ne.s32.totalorder %s214, %s216
      %p220 = scmp.eq.s32.totalorder %s18, 0
      %p221 = por %p219, %p220
      %p222 = scmp.ne.s32.totalorder %s214, %s216
      %p223 = scmp.eq.s32.totalorder %s23, 1
      %p224 = por %p222, %p223
      %p225 = scmp.ne.s32.totalorder %s216, %s217
      %p226 = scmp.eq.s32.totalorder %s23, 0
      %p227 = por %p225, %p226
      %p228 = scmp.ne.s32.totalorder %s216, %s217
      %p229 = scmp.eq.s32.totalorder %s24, 1
      %p230 = por %p228, %p229
      %p232 = scmp.ne.s32.totalorder %s217, %s231
      %p233 = scmp.eq.s32.totalorder %s24, 0
      %p234 = por %p232, %p233
      %s235 = ssub.s32 %s18, %s25
      %p236 = scmp.eq.s32.totalorder %s235, 0
      %s238 = sadd.s32 %s237, 1
      %s239 = scalar_select %p236, %s237, %s238
      %p242 = pneg %p236
      %p243 = scmp.eq.s32.totalorder %s18, 1
      %p244 = por %p242, %p243
      %p245 = scmp.ne.s32.totalorder %s237, %s240
      %p246 = scmp.eq.s32.totalorder %s18, 0
      %p247 = por %p245, %p246
      %p248 = scmp.ne.s32.totalorder %s237, %s240
      %p249 = scmp.eq.s32.totalorder %s23, 1
      %p250 = por %p248, %p249
      %p251 = scmp.ne.s32.totalorder %s240, %s241
      %p252 = scmp.eq.s32.totalorder %s23, 0
      %p253 = por %p251, %p252
      %p254 = scmp.ne.s32.totalorder %s240, %s241
      %p255 = scmp.eq.s32.totalorder %s24, 1
      %p256 = por %p254, %p255
      %p258 = scmp.ne.s32.totalorder %s241, %s257
      %p259 = scmp.eq.s32.totalorder %s24, 0
      %p260 = por %p258, %p259
      %p261 = scmp.le.s32.totalorder 1, %s18
      %p262 = scmp.lt.s32.totalorder %s18, 3
      %p263 = pnand %p261, %p262
      %p264 = pneg %p263
      // Predicated region
      $region9: #{transformer_forward.1} parent=5 // pred_check
        _
      $region10: #{transformer_forward.1} parent=5 // pred_check_branch
        %266 = sbr.rel (%p263) target = $region12
      $region11: #{transformer_forward.1} parent=5 // pred_region
        %s267 = ssub.s32 %s18, 1
        // Predicated region
        $region13: #{transformer_forward.1} parent=11 // pred_check
          %p268 = pneg %p143
        $region14: #{transformer_forward.1} parent=11 // pred_check_branch
          %270 = sbr.rel (%p268) target = $region16
        $region15: #{transformer_forward.1} parent=11 // pred_region
          _
        $region16: #{transformer_forward.1} parent=11 // pred_fallthru
          _
        // Predicated region
        $region17: #{transformer_forward.1} parent=11 // pred_check
          %p271 = pneg %p164
        $region18: #{transformer_forward.1} parent=11 // pred_check_branch
          %273 = sbr.rel (%p271) target = $region20
        $region19: #{transformer_forward.1} parent=11 // pred_region
          _
        $region20: #{transformer_forward.1} parent=11 // pred_fallthru
          _
        // Predicated region
        $region21: #{transformer_forward.1} parent=11 // pred_check
          %p274 = pneg %p185
        $region22: #{transformer_forward.1} parent=11 // pred_check_branch
          %276 = sbr.rel (%p274) target = $region24
        $region23: #{transformer_forward.1} parent=11 // pred_region
          _
        $region24: #{transformer_forward.1} parent=11 // pred_fallthru
          _
        // Predicated region
        $region25: #{transformer_forward.1} parent=11 // pred_check
          %p277 = pneg %p206
        $region26: #{transformer_forward.1} parent=11 // pred_check_branch
          %279 = sbr.rel (%p277) target = $region28
        $region27: #{transformer_forward.1} parent=11 // pred_region
          _
        $region28: #{transformer_forward.1} parent=11 // pred_fallthru
          _
        // Predicated region
        $region29: #{transformer_forward.1} parent=11 // pred_check
          %p280 = pneg %p227
        $region30: #{transformer_forward.1} parent=11 // pred_check_branch
          %282 = sbr.rel (%p280) target = $region32
        $region31: #{transformer_forward.1} parent=11 // pred_region
          _
        $region32: #{transformer_forward.1} parent=11 // pred_fallthru
          _
      $region12: #{transformer_forward.1} parent=5 // pred_fallthru
        _
      %p283 = scmp.lt.s32.totalorder %s18, 2
      // Predicated region
      $region33: #{transformer_forward.1} parent=5 // pred_check
        %p284 = pneg %p283
      $region34: #{transformer_forward.1} parent=5 // pred_check_branch
        %286 = sbr.rel (%p284) target = $region36
      $region35: #{transformer_forward.1} parent=5 // pred_region
        // Predicated region
        $region37: #{transformer_forward.1} parent=35 // pred_check
          %p287 = pneg %p38
        $region38: #{transformer_forward.1} parent=35 // pred_check_branch
          %289 = sbr.rel (%p287) target = $region40
        $region39: #{transformer_forward.1} parent=35 // pred_region
          %p290 = scmp.lt.s32.totalorder %s18, 1
          %s291 = scalar_select %p290, %s18, 1
          %s292 = smul.addr %s291, 2
          %s293 = smul.addr %s292, 8
          %s294 = scalar_lea.vmem %s0, %s293
        $region40: #{transformer_forward.1} parent=35 // pred_fallthru
          _
        // Predicated region
        $region41: #{transformer_forward.1} parent=35 // pred_check
          %p295 = pneg %p64
        $region42: #{transformer_forward.1} parent=35 // pred_check_branch
          %297 = sbr.rel (%p295) target = $region44
        $region43: #{transformer_forward.1} parent=35 // pred_region
          %p298 = scmp.lt.s32.totalorder %s18, 1
          %s299 = scalar_select %p298, %s18, 1
          %s300 = smul.addr %s299, 2
          %s301 = smul.addr %s300, 8
          %s302 = scalar_lea.vmem %s1, %s301
        $region44: #{transformer_forward.1} parent=35 // pred_fallthru
          _
        // Predicated region
        $region45: #{transformer_forward.1} parent=35 // pred_check
          %p303 = pneg %p90
        $region46: #{transformer_forward.1} parent=35 // pred_check_branch
          %305 = sbr.rel (%p303) target = $region48
        $region47: #{transformer_forward.1} parent=35 // pred_region
          %p306 = scmp.lt.s32.totalorder %s18, 1
          %s307 = scalar_select %p306, %s18, 1
          %s308 = smul.addr %s307, 8
          %s309 = scalar_lea.vmem %s2, %s308
        $region48: #{transformer_forward.1} parent=35 // pred_fallthru
          _
        // Predicated region
        $region49: #{transformer_forward.1} parent=35 // pred_check
          %p310 = pneg %p116
        $region50: #{transformer_forward.1} parent=35 // pred_check_branch
          %312 = sbr.rel (%p310) target = $region52
        $region51: #{transformer_forward.1} parent=35 // pred_region
          %p313 = scmp.lt.s32.totalorder %s18, 1
          %s314 = scalar_select %p313, %s18, 1
          %s315 = smul.addr %s314, 8
          %s316 = scalar_lea.vmem %s3, %s315
        $region52: #{transformer_forward.1} parent=35 // pred_fallthru
          _
      $region36: #{transformer_forward.1} parent=5 // pred_fallthru
        _
      %p317 = scmp.le.s32.totalorder 1, %s18
      %p318 = scmp.lt.s32.totalorder %s18, 3
      %p319 = pnand %p317, %p318
      %p320 = pneg %p319
      // Predicated region
      $region53: #{transformer_forward.1} parent=5 // pred_check
        _
      $region54: #{transformer_forward.1} parent=5 // pred_check_branch
        %322 = sbr.rel (%p319) target = $region56
      $region55: #{transformer_forward.1} parent=5 // pred_region
        %s323 = ssub.s32 %s18, 1
        %p324 = scmp.lt.s32.totalorder %s23, 1
        %s325 = scalar_select %p324, %s23, 1
        %s326 = smul.addr %s325, 2
        %s327 = smul.addr %s326, 8
        %s328 = scalar_lea.vmem %s0, %s327
        %p329 = pneg %p44
        %p330 = pneg %p41
        %p331 = scmp.lt.s32.totalorder %s23, 1
        %s332 = scalar_select %p331, %s23, 1
        %s333 = smul.addr %s332, 2
        %s334 = smul.addr %s333, 8
        %s335 = scalar_lea.vmem %s1, %s334
        %p336 = pneg %p70
        %p337 = pneg %p67
        %p338 = scmp.lt.s32.totalorder %s23, 1
        %s339 = scalar_select %p338, %s23, 1
        %s340 = smul.addr %s339, 8
        %s341 = scalar_lea.vmem %s2, %s340
        %p342 = pneg %p96
        %p343 = pneg %p93
        %p344 = scmp.lt.s32.totalorder %s23, 1
        %s345 = scalar_select %p344, %s23, 1
        %s346 = smul.addr %s345, 8
        %s347 = scalar_lea.vmem %s3, %s346
        %p348 = pneg %p122
        %p349 = pneg %p119
        %p350 = pneg %p143
        %p351 = pneg %p140
        %p352 = pneg %p164
        %p353 = pneg %p161
        %p354 = pneg %p185
        %p355 = pneg %p182
        %p356 = pneg %p206
        %p357 = pneg %p203
        %p358 = pneg %p227
        %p359 = pneg %p224
        %p360 = pneg %p253
        %p361 = pneg %p250
        %s362 = sand.u32 %s240, 1
        %s363 = scalar_lea.sflag [#allocation4], %s362
        %s364 = sand.u32 %s240, 1
        %s365 = smul.addr %s364, 16
        %s366 = scalar_lea.vmem [#allocation3], %s365
        %p367 = scmp.lt.s32.totalorder %s23, 1
        %s368 = scalar_select %p367, %s23, 1
        %s369 = smul.addr %s368, 2
        %s370 = smul.addr %s369, 8
        %s371 = scalar_lea.vmem %s0, %s370
        %p372 = scmp.lt.s32.totalorder %s23, 1
        %s373 = scalar_select %p372, %s23, 1
        %s374 = smul.addr %s373, 2
        %s375 = smul.addr %s374, 8
        %s376 = scalar_lea.vmem %s1, %s375
        %p377 = scmp.lt.s32.totalorder %s23, 1
        %s378 = scalar_select %p377, %s23, 1
        %s379 = smul.addr %s378, 8
        %s380 = scalar_lea.vmem %s2, %s379
        %p381 = scmp.lt.s32.totalorder %s23, 1
        %s382 = scalar_select %p381, %s23, 1
        %s383 = smul.addr %s382, 8
        %s384 = scalar_lea.vmem %s3, %s383
        %v386 = vld [vmem:[%s371] sm:$0xff]
        %v387 = vld [vmem:[%s371 + $0x8] sm:$0xff]
        %v388 = vld [vmem:[%s376] sm:$0xff]
        %v389 = vld [vmem:[%s376 + $0x8] sm:$0xff]
        %v390 = vld [vmem:[%s380] sm:$0xff]
        %v391 = vld [vmem:[%s384] sm:$0xff]
        %v392 = vld [vmem:[%s5] sm:$0x1]
        %v393 = vld [vmem:[%s5 + $0x1] sm:$0x1]
        %vm394 = vcmask 261120
        %v395 = vsel %vm394, %v386, 0.0
        %396 = vadd.xlane.f32.xlu0 %v395
        %v397 = vpop.xlane.xlu0 %396
        %v398 = vsel %vm394, %v387, 0.0
        %399 = vadd.xlane.f32.xlu0 %v398
        %v400 = vpop.xlane.xlu0 %399
        %v401 = vrcp.pop 32.0
        %v402 = vmul.f32 %v397, %v401
        %v403 = vmul.f32 %v400, %v401
        %v404 = vsub.f32 %v386, %v402
        %v405 = vsub.f32 %v387, %v403
        %v406 = vmul.f32 %v404, %v404
        %v407 = vmul.f32 %v405, %v405
        %v408 = vsel %vm394, %v406, 0.0
        %409 = vadd.xlane.f32.xlu0 %v408
        %v410 = vpop.xlane.xlu0 %409
        %v411 = vsel %vm394, %v407, 0.0
        %412 = vadd.xlane.f32.xlu0 %v411
        %v413 = vpop.xlane.xlu0 %412
        %v414 = vmul.f32 %v410, %v401
        %v415 = vmul.f32 %v413, %v401
        %v416 = vadd.f32 %v414, 1e-05
        %v417 = vadd.f32 %v415, 1e-05
        %v418 = vrsqrt.pop %v416
        %v419 = vrsqrt.pop %v417
        %v420 = vmul.f32 %v404, %v418
        %v421 = vmul.f32 %v405, %v419
        %v422 = vlaneseq
        %v423 = vshrl.u32 %v422, 7
        %v424 = vsub.s32 0, %v423
        %v425 = vrot.slane %v392, %v424
        %v426 = vmul.f32 %v420, %v425
        %v427 = vmul.f32 %v421, %v425
        %v428 = vlaneseq
        %v429 = vshrl.u32 %v428, 7
        %v430 = vsub.s32 0, %v429
        %v431 = vrot.slane %v393, %v430
        %v432 = vadd.f32 %v426, %v431
        %v433 = vadd.f32 %v427, %v431
        %v434 = vpack.c.bf16 %v433, %v432
        %v435 = vld [vmem:[%s4] sm:$0xf]
        %v436 = vld [vmem:[%s4 + $0x4] sm:$0xf]
        %v437 = vld [vmem:[%s4 + $0x8] sm:$0xf]
        %v438 = vld [vmem:[%s4 + $0xc] sm:$0xf]
        %v443 = vunpack.c.l.b16 %v435
        %v444 = vunpack.c.l.b16 %v436
        %v445 = vunpack.c.l.b16 %v437
        %v446 = vunpack.c.l.b16 %v438
        %v447 = vpack.c.b16 %v444, %v443
        %v448 = vpack.c.b16 %v446, %v445
        %v452 = vsel %vm394, %v434, 0
        %454 = vmatprep.subr.bf16.mxu0 0
        %455 = vmatpush1.bf16.msra.mxu0 %v447
        %456 = vmatprep.subr.bf16.mxu0 0
        %457 = vmatpush1.bf16.msra.mxu0 %v448
        %458 = vmatprep.subr.bf16.mxu0 0
        %459 = vmatpush1.bf16.msra.mxu0 0
        %460 = vmatprep.subr.bf16.mxu0 0
        %461 = vmatpush1.bf16.msra.mxu0 0
        %462 = vmatprep.subr.bf16.mxu0 0
        %463 = vmatpush1.bf16.msra.mxu0 0
        %464 = vmatprep.subr.bf16.mxu0 0
        %465 = vmatpush1.bf16.msra.mxu0 0
        %466 = vmatprep.subr.bf16.mxu0 0
        %467 = vmatpush1.bf16.msra.mxu0 0
        %468 = vmatprep.subr.bf16.mxu0 0
        %469 = vmatpush1.bf16.msra.mxu0 0
        %470 = vmatprep.subr.bf16.mxu0 0
        %471 = vmatpush1.bf16.msra.mxu0 0
        %472 = vmatprep.subr.bf16.mxu0 0
        %473 = vmatpush1.bf16.msra.mxu0 0
        %474 = vmatprep.subr.bf16.mxu0 0
        %475 = vmatpush1.bf16.msra.mxu0 0
        %476 = vmatprep.subr.bf16.mxu0 0
        %477 = vmatpush1.bf16.msra.mxu0 0
        %478 = vmatprep.subr.bf16.mxu0 0
        %479 = vmatpush1.bf16.msra.mxu0 0
        %480 = vmatprep.subr.bf16.mxu0 0
        %481 = vmatpush1.bf16.msra.mxu0 0
        %482 = vmatprep.subr.bf16.mxu0 0
        %483 = vmatpush1.bf16.msra.mxu0 0
        %484 = vmatprep.subr.bf16.mxu0 0
        %485 = vmatpush1.bf16.msra.mxu0 0
        %486 = vmatprep.mubr.bf16.mxu0 0
        %487 = vmatmul.mubr.bf16.gmra.mrb[0].mxu0 %v452
        %v488 = vpop.f32.mrb[0].mxu0
        %v489 = vadd.f32 0.0, %v488
        %v490 = vpop.f32.mrb[0].mxu0
        %v491 = vpop.f32.mrb[0].mxu0
        %v492 = vadd.f32 0.0, %v491
        %v493 = vpop.f32.mrb[0].mxu0
        %494 = vdwg.mxu0
        %v495 = vpack.c.bf16 %v492, %v489
        %s496 = scalar_lea.vmem %s4, 16
        %v497 = vld [vmem:[%s496] sm:$0xf]
        %v498 = vld [vmem:[%s496 + $0x4] sm:$0xf]
        %v499 = vld [vmem:[%s496 + $0x8] sm:$0xf]
        %v500 = vld [vmem:[%s496 + $0xc] sm:$0xf]
        %v505 = vunpack.c.l.b16 %v497
        %v506 = vunpack.c.l.b16 %v498
        %v507 = vunpack.c.l.b16 %v499
        %v508 = vunpack.c.l.b16 %v500
        %v509 = vpack.c.b16 %v506, %v505
        %v510 = vpack.c.b16 %v508, %v507
        %513 = vmatprep.subr.bf16.mxu0 0
        %514 = vmatpush1.bf16.msra.mxu0 %v509
        %515 = vmatprep.subr.bf16.mxu0 0
        %516 = vmatpush1.bf16.msra.mxu0 %v510
        %517 = vmatprep.subr.bf16.mxu0 0
        %518 = vmatpush1.bf16.msra.mxu0 0
        %519 = vmatprep.subr.bf16.mxu0 0
        %520 = vmatpush1.bf16.msra.mxu0 0
        %521 = vmatprep.subr.bf16.mxu0 0
        %522 = vmatpush1.bf16.msra.mxu0 0
        %523 = vmatprep.subr.bf16.mxu0 0
        %524 = vmatpush1.bf16.msra.mxu0 0
        %525 = vmatprep.subr.bf16.mxu0 0
        %526 = vmatpush1.bf16.msra.mxu0 0
        %527 = vmatprep.subr.bf16.mxu0 0
        %528 = vmatpush1.bf16.msra.mxu0 0
        %529 = vmatprep.subr.bf16.mxu0 0
        %530 = vmatpush1.bf16.msra.mxu0 0
        %531 = vmatprep.subr.bf16.mxu0 0
        %532 = vmatpush1.bf16.msra.mxu0 0
        %533 = vmatprep.subr.bf16.mxu0 0
        %534 = vmatpush1.bf16.msra.mxu0 0
        %535 = vmatprep.subr.bf16.mxu0 0
        %536 = vmatpush1.bf16.msra.mxu0 0
        %537 = vmatprep.subr.bf16.mxu0 0
        %538 = vmatpush1.bf16.msra.mxu0 0
        %539 = vmatprep.subr.bf16.mxu0 0
        %540 = vmatpush1.bf16.msra.mxu0 0
        %541 = vmatprep.subr.bf16.mxu0 0
        %542 = vmatpush1.bf16.msra.mxu0 0
        %543 = vmatprep.subr.bf16.mxu0 0
        %544 = vmatpush1.bf16.msra.mxu0 0
        %545 = vmatprep.mubr.bf16.mxu0 0
        %546 = vmatmul.mubr.bf16.gmra.mrb[0].mxu0 %v452
        %v547 = vpop.f32.mrb[0].mxu0
        %v548 = vadd.f32 0.0, %v547
        %v549 = vpop.f32.mrb[0].mxu0
        %v550 = vpop.f32.mrb[0].mxu0
        %v551 = vadd.f32 0.0, %v550
        %v552 = vpop.f32.mrb[0].mxu0
        %553 = vdwg.mxu0
        %v554 = vpack.c.bf16 %v551, %v548
        %s555 = scalar_lea.vmem %s4, 32
        %v556 = vld [vmem:[%s555] sm:$0xf]
        %v557 = vld [vmem:[%s555 + $0x4] sm:$0xf]
        %v558 = vld [vmem:[%s555 + $0x8] sm:$0xf]
        %v559 = vld [vmem:[%s555 + $0xc] sm:$0xf]
        %v564 = vunpack.c.l.b16 %v556
        %v565 = vunpack.c.l.b16 %v557
        %v566 = vunpack.c.l.b16 %v558
        %v567 = vunpack.c.l.b16 %v559
        %v568 = vpack.c.b16 %v565, %v564
        %v569 = vpack.c.b16 %v567, %v566
        %572 = vmatprep.subr.bf16.mxu0 0
        %573 = vmatpush1.bf16.msra.mxu0 %v568
        %574 = vmatprep.subr.bf16.mxu0 0
        %575 = vmatpush1.bf16.msra.mxu0 %v569
        %576 = vmatprep.subr.bf16.mxu0 0
        %577 = vmatpush1.bf16.msra.mxu0 0
        %578 = vmatprep.subr.bf16.mxu0 0
        %579 = vmatpush1.bf16.msra.mxu0 0
        %580 = vmatprep.subr.bf16.mxu0 0
        %581 = vmatpush1.bf16.msra.mxu0 0
        %582 = vmatprep.subr.bf16.mxu0 0
        %583 = vmatpush1.bf16.msra.mxu0 0
        %584 = vmatprep.subr.bf16.mxu0 0
        %585 = vmatpush1.bf16.msra.mxu0 0
        %586 = vmatprep.subr.bf16.mxu0 0
        %587 = vmatpush1.bf16.msra.mxu0 0
        %588 = vmatprep.subr.bf16.mxu0 0
        %589 = vmatpush1.bf16.msra.mxu0 0
        %590 = vmatprep.subr.bf16.mxu0 0
        %591 = vmatpush1.bf16.msra.mxu0 0
        %592 = vmatprep.subr.bf16.mxu0 0
        %593 = vmatpush1.bf16.msra.mxu0 0
        %594 = vmatprep.subr.bf16.mxu0 0
        %595 = vmatpush1.bf16.msra.mxu0 0
        %596 = vmatprep.subr.bf16.mxu0 0
        %597 = vmatpush1.bf16.msra.mxu0 0
        %598 = vmatprep.subr.bf16.mxu0 0
        %599 = vmatpush1.bf16.msra.mxu0 0
        %600 = vmatprep.subr.bf16.mxu0 0
        %601 = vmatpush1.bf16.msra.mxu0 0
        %602 = vmatprep.subr.bf16.mxu0 0
        %603 = vmatpush1.bf16.msra.mxu0 0
        %604 = vmatprep.mubr.bf16.mxu0 0
        %605 = vmatmul.mubr.bf16.gmra.mrb[0].mxu0 %v452
        %v606 = vpop.f32.mrb[0].mxu0
        %v607 = vadd.f32 0.0, %v606
        %v608 = vpop.f32.mrb[0].mxu0
        %v609 = vpop.f32.mrb[0].mxu0
        %v610 = vadd.f32 0.0, %v609
        %v611 = vpop.f32.mrb[0].mxu0
        %612 = vdwg.mxu0
        %v613 = vpack.c.bf16 %v610, %v607
        %s614 = scalar_lea.vmem %s4, 48
        %v615 = vld [vmem:[%s614] sm:$0xf]
        %v616 = vld [vmem:[%s614 + $0x4] sm:$0xf]
        %v617 = vld [vmem:[%s614 + $0x8] sm:$0xf]
        %v618 = vld [vmem:[%s614 + $0xc] sm:$0xf]
        %v619 = vld [vmem:[%s5 + $0x2] sm:$0x1]
        %vm620 = vcmask 64512
        %v622 = vsel %vm620, %v495, 0
        %v625 = vsel %vm620, %v554, 0
        %627 = vmatprep.subr.bf16.mxu0 0
        %628 = vmatpush1.bf16.xpose.msra.mxu0 %v625
        %629 = vmatprep.subr.bf16.mxu0 0
        %630 = vmatpush1.bf16.xpose.msra.mxu0 0
        %631 = vmatprep.subr.bf16.mxu0 0
        %632 = vmatpush1.bf16.xpose.msra.mxu0 0
        %633 = vmatprep.subr.bf16.mxu0 0
        %634 = vmatpush1.bf16.xpose.msra.mxu0 0
        %635 = vmatprep.subr.bf16.mxu0 0
        %636 = vmatpush1.bf16.xpose.msra.mxu0 0
        %637 = vmatprep.subr.bf16.mxu0 0
        %638 = vmatpush1.bf16.xpose.msra.mxu0 0
        %639 = vmatprep.subr.bf16.mxu0 0
        %640 = vmatpush1.bf16.xpose.msra.mxu0 0
        %641 = vmatprep.subr.bf16.mxu0 0
        %642 = vmatpush1.bf16.xpose.msra.mxu0 0
        %643 = vmatprep.subr.bf16.mxu0 0
        %644 = vmatpush1.bf16.xpose.msra.mxu0 0
        %645 = vmatprep.subr.bf16.mxu0 0
        %646 = vmatpush1.bf16.xpose.msra.mxu0 0
        %647 = vmatprep.subr.bf16.mxu0 0
        %648 = vmatpush1.bf16.xpose.msra.mxu0 0
        %649 = vmatprep.subr.bf16.mxu0 0
        %650 = vmatpush1.bf16.xpose.msra.mxu0 0
        %651 = vmatprep.subr.bf16.mxu0 0
        %652 = vmatpush1.bf16.xpose.msra.mxu0 0
        %653 = vmatprep.subr.bf16.mxu0 0
        %654 = vmatpush1.bf16.xpose.msra.mxu0 0
        %655 = vmatprep.subr.bf16.mxu0 0
        %656 = vmatpush1.bf16.xpose.msra.mxu0 0
        %657 = vmatprep.subr.bf16.mxu0 0
        %658 = vmatpush1.bf16.xpose.msra.mxu0 0
        %659 = vmatprep.mubr.bf16.mxu0 0
        %660 = vmatmul.mubr.bf16.gmra.mrb[0].mxu0 %v622
        %v661 = vpop.f32.mrb[0].mxu0
        %v662 = vadd.f32 0.0, %v661
        %v663 = vpop.f32.mrb[0].mxu0
        %v664 = vpop.f32.mrb[0].mxu0
        %v665 = vadd.f32 0.0, %v664
        %v666 = vpop.f32.mrb[0].mxu0
        %667 = vdwg.mxu0
        %vm668 = vcmask 130048
        %v669 = vsel %vm668, %v662, -inf
        %670 = vmax.xlane.f32.xlu0 %v669
        %v671 = vpop.xlane.xlu0 %670
        %v672 = vsel %vm668, %v665, -inf
        %673 = vmax.xlane.f32.xlu0 %v672
        %v674 = vpop.xlane.xlu0 %673
        %v675 = vsub.f32 %v662, %v671
        %v676 = vsub.f32 %v665, %v674
        %v677 = vmul.f32 %v675, 1.442695
        %v678 = vpow.pop %v677
        %v679 = vmul.f32 %v676, 1.442695
        %v680 = vpow.pop %v679
        %v681 = vsel %vm668, %v678, 0.0
        %682 = vadd.xlane.f32.xlu0 %v681
        %v683 = vpop.xlane.xlu0 %682
        %v684 = vsel %vm668, %v680, 0.0
        %685 = vadd.xlane.f32.xlu0 %v684
        %v686 = vpop.xlane.xlu0 %685
        %v687 = vrcp.pop %v683
        %v688 = vmul.f32 %v678, %v687
        %v689 = vrcp.pop %v686
        %v690 = vmul.f32 %v680, %v689
        %v691 = vpack.c.bf16 %v690, %v688
        %v693 = vsel %vm668, %v691, 0
        %695 = vmatprep.subr.bf16.mxu0 0
        %696 = vmatpush1.bf16.msra.mxu0 %v613
        %697 = vmatprep.subr.bf16.mxu0 0
        %698 = vmatpush1.bf16.msra.mxu0 0
        %699 = vmatprep.subr.bf16.mxu0 0
        %700 = vmatpush1.bf16.msra.mxu0 0
        %701 = vmatprep.subr.bf16.mxu0 0
        %702 = vmatpush1.bf16.msra.mxu0 0
        %703 = vmatprep.subr.bf16.mxu0 0
        %704 = vmatpush1.bf16.msra.mxu0 0
        %705 = vmatprep.subr.bf16.mxu0 0
        %706 = vmatpush1.bf16.msra.mxu0 0
        %707 = vmatprep.subr.bf16.mxu0 0
        %708 = vmatpush1.bf16.msra.mxu0 0
        %709 = vmatprep.subr.bf16.mxu0 0
        %710 = vmatpush1.bf16.msra.mxu0 0
        %711 = vmatprep.subr.bf16.mxu0 0
        %712 = vmatpush1.bf16.msra.mxu0 0
        %713 = vmatprep.subr.bf16.mxu0 0
        %714 = vmatpush1.bf16.msra.mxu0 0
        %715 = vmatprep.subr.bf16.mxu0 0
        %716 = vmatpush1.bf16.msra.mxu0 0
        %717 = vmatprep.subr.bf16.mxu0 0
        %718 = vmatpush1.bf16.msra.mxu0 0
        %719 = vmatprep.subr.bf16.mxu0 0
        %720 = vmatpush1.bf16.msra.mxu0 0
        %721 = vmatprep.subr.bf16.mxu0 0
        %722 = vmatpush1.bf16.msra.mxu0 0
        %723 = vmatprep.subr.bf16.mxu0 0
        %724 = vmatpush1.bf16.msra.mxu0 0
        %725 = vmatprep.subr.bf16.mxu0 0
        %726 = vmatpush1.bf16.msra.mxu0 0
        %727 = vmatprep.mubr.bf16.mxu0 0
        %728 = vmatmul.mubr.bf16.gmra.mrb[0].mxu0 %v693
        %v729 = vpop.f32.mrb[0].mxu0
        %v730 = vadd.f32 0.0, %v729
        %v731 = vpop.f32.mrb[0].mxu0
        %v732 = vpop.f32.mrb[0].mxu0
        %v733 = vadd.f32 0.0, %v732
        %v734 = vpop.f32.mrb[0].mxu0
        %735 = vdwg.mxu0
        %v736 = vpack.c.bf16 %v733, %v730
        %737 = vst.msk [vmem:[#allocation2] sm:$0xff] %vm620, %v736
        %739 = vrot.lane.b32.xlu0 %v495, 120
        %v740 = vpop.permute.xlu0 %739
        %742 = vrot.lane.b32.xlu0 %v554, 120
        %v743 = vpop.permute.xlu0 %742
        %v745 = vsel %vm620, %v740, 0
        %v748 = vsel %vm620, %v743, 0
        %750 = vmatprep.subr.bf16.mxu0 0
        %751 = vmatpush1.bf16.xpose.msra.mxu0 %v748
        %752 = vmatprep.subr.bf16.mxu0 0
        %753 = vmatpush1.bf16.xpose.msra.mxu0 0
        %754 = vmatprep.subr.bf16.mxu0 0
        %755 = vmatpush1.bf16.xpose.msra.mxu0 0
        %756 = vmatprep.subr.bf16.mxu0 0
        %757 = vmatpush1.bf16.xpose.msra.mxu0 0
        %758 = vmatprep.subr.bf16.mxu0 0
        %759 = vmatpush1.bf16.xpose.msra.mxu0 0
        %760 = vmatprep.subr.bf16.mxu0 0
        %761 = vmatpush1.bf16.xpose.msra.mxu0 0
        %762 = vmatprep.subr.bf16.mxu0 0
        %763 = vmatpush1.bf16.xpose.msra.mxu0 0
        %764 = vmatprep.subr.bf16.mxu0 0
        %765 = vmatpush1.bf16.xpose.msra.mxu0 0
        %766 = vmatprep.subr.bf16.mxu0 0
        %767 = vmatpush1.bf16.xpose.msra.mxu0 0
        %768 = vmatprep.subr.bf16.mxu0 0
        %769 = vmatpush1.bf16.xpose.msra.mxu0 0
        %770 = vmatprep.subr.bf16.mxu0 0
        %771 = vmatpush1.bf16.xpose.msra.mxu0 0
        %772 = vmatprep.subr.bf16.mxu0 0
        %773 = vmatpush1.bf16.xpose.msra.mxu0 0
        %774 = vmatprep.subr.bf16.mxu0 0
        %775 = vmatpush1.bf16.xpose.msra.mxu0 0
        %776 = vmatprep.subr.bf16.mxu0 0
        %777 = vmatpush1.bf16.xpose.msra.mxu0 0
        %778 = vmatprep.subr.bf16.mxu0 0
        %779 = vmatpush1.bf16.xpose.msra.mxu0 0
        %780 = vmatprep.subr.bf16.mxu0 0
        %781 = vmatpush1.bf16.xpose.msra.mxu0 0
        %782 = vmatprep.mubr.bf16.mxu0 0
        %783 = vmatmul.mubr.bf16.gmra.mrb[0].mxu0 %v745
        %v784 = vpop.f32.mrb[0].mxu0
        %v785 = vadd.f32 0.0, %v784
        %v786 = vpop.f32.mrb[0].mxu0
        %v787 = vpop.f32.mrb[0].mxu0
        %v788 = vadd.f32 0.0, %v787
        %v789 = vpop.f32.mrb[0].mxu0
        %790 = vdwg.mxu0
        %v791 = vsel %vm668, %v785, -inf
        %792 = vmax.xlane.f32.xlu0 %v791
        %v793 = vpop.xlane.xlu0 %792
        %v794 = vsel %vm668, %v788, -inf
        %795 = vmax.xlane.f32.xlu0 %v794
        %v796 = vpop.xlane.xlu0 %795
        %v797 = vsub.f32 %v785, %v793
        %v798 = vsub.f32 %v788, %v796
        %v799 = vmul.f32 %v797, 1.442695
        %v800 = vpow.pop %v799
        %v801 = vmul.f32 %v798, 1.442695
        %v802 = vpow.pop %v801
        %v803 = vsel %vm668, %v800, 0.0
        %804 = vadd.xlane.f32.xlu0 %v803
        %v805 = vpop.xlane.xlu0 %804
        %v806 = vsel %vm668, %v802, 0.0
        %807 = vadd.xlane.f32.xlu0 %v806
        %v808 = vpop.xlane.xlu0 %807
        %v809 = vrcp.pop %v805
        %v810 = vmul.f32 %v800, %v809
        %v811 = vrcp.pop %v808
        %v812 = vmul.f32 %v802, %v811
        %v813 = vpack.c.bf16 %v812, %v810
        %815 = vrot.lane.b32.xlu0 %v613, 120
        %v816 = vpop.permute.xlu0 %815
        %v819 = vsel %vm668, %v813, 0
        %821 = vmatprep.subr.bf16.mxu0 0
        %822 = vmatpush1.bf16.msra.mxu0 %v816
        %823 = vmatprep.subr.bf16.mxu0 0
        %824 = vmatpush1.bf16.msra.mxu0 0
        %825 = vmatprep.subr.bf16.mxu0 0
        %826 = vmatpush1.bf16.msra.mxu0 0
        %827 = vmatprep.subr.bf16.mxu0 0
        %828 = vmatpush1.bf16.msra.mxu0 0
        %829 = vmatprep.subr.bf16.mxu0 0
        %830 = vmatpush1.bf16.msra.mxu0 0
        %831 = vmatprep.subr.bf16.mxu0 0
        %832 = vmatpush1.bf16.msra.mxu0 0
        %833 = vmatprep.subr.bf16.mxu0 0
        %834 = vmatpush1.bf16.msra.mxu0 0
        %835 = vmatprep.subr.bf16.mxu0 0
        %836 = vmatpush1.bf16.msra.mxu0 0
        %837 = vmatprep.subr.bf16.mxu0 0
        %838 = vmatpush1.bf16.msra.mxu0 0
        %839 = vmatprep.subr.bf16.mxu0 0
        %840 = vmatpush1.bf16.msra.mxu0 0
        %841 = vmatprep.subr.bf16.mxu0 0
        %842 = vmatpush1.bf16.msra.mxu0 0
        %843 = vmatprep.subr.bf16.mxu0 0
        %844 = vmatpush1.bf16.msra.mxu0 0
        %845 = vmatprep.subr.bf16.mxu0 0
        %846 = vmatpush1.bf16.msra.mxu0 0
        %847 = vmatprep.subr.bf16.mxu0 0
        %848 = vmatpush1.bf16.msra.mxu0 0
        %849 = vmatprep.subr.bf16.mxu0 0
        %850 = vmatpush1.bf16.msra.mxu0 0
        %851 = vmatprep.subr.bf16.mxu0 0
        %852 = vmatpush1.bf16.msra.mxu0 0
        %853 = vmatprep.mubr.bf16.mxu0 0
        %854 = vmatmul.mubr.bf16.gmra.mrb[0].mxu0 %v819
        %v855 = vpop.f32.mrb[0].mxu0
        %v856 = vadd.f32 0.0, %v855
        %v857 = vpop.f32.mrb[0].mxu0
        %v858 = vpop.f32.mrb[0].mxu0
        %v859 = vadd.f32 0.0, %v858
        %v860 = vpop.f32.mrb[0].mxu0
        %861 = vdwg.mxu0
        %v862 = vpack.c.bf16 %v859, %v856
        %864 = vrot.lane.b32.xlu0 %v862, 8
        %v865 = vpop.permute.xlu0 %864
        %vm867 = vcmask 130112
        %868 = vst.msk [vmem:[#allocation2] sm:$0xff] %vm867, %v865
        %869 = vrot.lane.b32.xlu0 %v495, 112
        %v870 = vpop.permute.xlu0 %869
        %871 = vrot.lane.b32.xlu0 %v554, 112
        %v872 = vpop.permute.xlu0 %871
        %v874 = vsel %vm620, %v870, 0
        %v877 = vsel %vm620, %v872, 0
        %879 = vmatprep.subr.bf16.mxu0 0
        %880 = vmatpush1.bf16.xpose.msra.mxu0 %v877
        %881 = vmatprep.subr.bf16.mxu0 0
        %882 = vmatpush1.bf16.xpose.msra.mxu0 0
        %883 = vmatprep.subr.bf16.mxu0 0
        %884 = vmatpush1.bf16.xpose.msra.mxu0 0
        %885 = vmatprep.subr.bf16.mxu0 0
        %886 = vmatpush1.bf16.xpose.msra.mxu0 0
        %887 = vmatprep.subr.bf16.mxu0 0
        %888 = vmatpush1.bf16.xpose.msra.mxu0 0
        %889 = vmatprep.subr.bf16.mxu0 0
        %890 = vmatpush1.bf16.xpose.msra.mxu0 0
        %891 = vmatprep.subr.bf16.mxu0 0
        %892 = vmatpush1.bf16.xpose.msra.mxu0 0
        %893 = vmatprep.subr.bf16.mxu0 0
        %894 = vmatpush1.bf16.xpose.msra.mxu0 0
        %895 = vmatprep.subr.bf16.mxu0 0
        %896 = vmatpush1.bf16.xpose.msra.mxu0 0
        %897 = vmatprep.subr.bf16.mxu0 0
        %898 = vmatpush1.bf16.xpose.msra.mxu0 0
        %899 = vmatprep.subr.bf16.mxu0 0
        %900 = vmatpush1.bf16.xpose.msra.mxu0 0
        %901 = vmatprep.subr.bf16.mxu0 0
        %902 = vmatpush1.bf16.xpose.msra.mxu0 0
        %903 = vmatprep.subr.bf16.mxu0 0
        %904 = vmatpush1.bf16.xpose.msra.mxu0 0
        %905 = vmatprep.subr.bf16.mxu0 0
        %906 = vmatpush1.bf16.xpose.msra.mxu0 0
        %907 = vmatprep.subr.bf16.mxu0 0
        %908 = vmatpush1.bf16.xpose.msra.mxu0 0
        %909 = vmatprep.subr.bf16.mxu0 0
        %910 = vmatpush1.bf16.xpose.msra.mxu0 0
        %911 = vmatprep.mubr.bf16.mxu0 0
        %912 = vmatmul.mubr.bf16.gmra.mrb[0].mxu0 %v874
        %v913 = vpop.f32.mrb[0].mxu0
        %v914 = vadd.f32 0.0, %v913
        %v915 = vpop.f32.mrb[0].mxu0
        %v916 = vpop.f32.mrb[0].mxu0
        %v917 = vadd.f32 0.0, %v916
        %v918 = vpop.f32.mrb[0].mxu0
        %919 = vdwg.mxu0
        %v920 = vsel %vm668, %v914, -inf
        %921 = vmax.xlane.f32.xlu0 %v920
        %v922 = vpop.xlane.xlu0 %921
        %v923 = vsel %vm668, %v917, -inf
        %924 = vmax.xlane.f32.xlu0 %v923
        %v925 = vpop.xlane.xlu0 %924
        %v926 = vsub.f32 %v914, %v922
        %v927 = vsub.f32 %v917, %v925
        %v928 = vmul.f32 %v926, 1.442695
        %v929 = vpow.pop %v928
        %v930 = vmul.f32 %v927, 1.442695
        %v931 = vpow.pop %v930
        %v932 = vsel %vm668, %v929, 0.0
        %933 = vadd.xlane.f32.xlu0 %v932
        %v934 = vpop.xlane.xlu0 %933
        %v935 = vsel %vm668, %v931, 0.0
        %936 = vadd.xlane.f32.xlu0 %v935
        %v937 = vpop.xlane.xlu0 %936
        %v938 = vrcp.pop %v934
        %v939 = vmul.f32 %v929, %v938
        %v940 = vrcp.pop %v937
        %v941 = vmul.f32 %v931, %v940
        %v942 = vpack.c.bf16 %v941, %v939
        %943 = vrot.lane.b32.xlu0 %v613, 112
        %v944 = vpop.permute.xlu0 %943
        %v947 = vsel %vm668, %v942, 0
        %949 = vmatprep.subr.bf16.mxu0 0
        %950 = vmatpush1.bf16.msra.mxu0 %v944
        %951 = vmatprep.subr.bf16.mxu0 0
        %952 = vmatpush1.bf16.msra.mxu0 0
        %953 = vmatprep.subr.bf16.mxu0 0
        %954 = vmatpush1.bf16.msra.mxu0 0
        %955 = vmatprep.subr.bf16.mxu0 0
        %956 = vmatpush1.bf16.msra.mxu0 0
        %957 = vmatprep.subr.bf16.mxu0 0
        %958 = vmatpush1.bf16.msra.mxu0 0
        %959 = vmatprep.subr.bf16.mxu0 0
        %960 = vmatpush1.bf16.msra.mxu0 0
        %961 = vmatprep.subr.bf16.mxu0 0
        %962 = vmatpush1.bf16.msra.mxu0 0
        %963 = vmatprep.subr.bf16.mxu0 0
        %964 = vmatpush1.bf16.msra.mxu0 0
        %965 = vmatprep.subr.bf16.mxu0 0
        %966 = vmatpush1.bf16.msra.mxu0 0
        %967 = vmatprep.subr.bf16.mxu0 0
        %968 = vmatpush1.bf16.msra.mxu0 0
        %969 = vmatprep.subr.bf16.mxu0 0
        %970 = vmatpush1.bf16.msra.mxu0 0
        %971 = vmatprep.subr.bf16.mxu0 0
        %972 = vmatpush1.bf16.msra.mxu0 0
        %973 = vmatprep.subr.bf16.mxu0 0
        %974 = vmatpush1.bf16.msra.mxu0 0
        %975 = vmatprep.subr.bf16.mxu0 0
        %976 = vmatpush1.bf16.msra.mxu0 0
        %977 = vmatprep.subr.bf16.mxu0 0
        %978 = vmatpush1.bf16.msra.mxu0 0
        %979 = vmatprep.subr.bf16.mxu0 0
        %980 = vmatpush1.bf16.msra.mxu0 0
        %981 = vmatprep.mubr.bf16.mxu0 0
        %982 = vmatmul.mubr.bf16.gmra.mrb[0].mxu0 %v947
        %v983 = vpop.f32.mrb[0].mxu0
        %v984 = vadd.f32 0.0, %v983
        %v985 = vpop.f32.mrb[0].mxu0
        %v986 = vpop.f32.mrb[0].mxu0
        %v987 = vadd.f32 0.0, %v986
        %v988 = vpop.f32.mrb[0].mxu0
        %989 = vdwg.mxu0
        %v990 = vpack.c.bf16 %v987, %v984
        %992 = vrot.lane.b32.xlu0 %v990, 16
        %v993 = vpop.permute.xlu0 %992
        %vm995 = vcmask 195712
        %996 = vst.msk [vmem:[#allocation2] sm:$0xff] %vm995, %v993
        %997 = vrot.lane.b32.xlu0 %v495, 104
        %v998 = vpop.permute.xlu0 %997
        %999 = vrot.lane.b32.xlu0 %v554, 104
        %v1000 = vpop.permute.xlu0 %999
        %v1002 = vsel %vm620, %v998, 0
        %v1005 = vsel %vm620, %v1000, 0
        %1007 = vmatprep.subr.bf16.mxu0 0
        %1008 = vmatpush1.bf16.xpose.msra.mxu0 %v1005
        %1009 = vmatprep.subr.bf16.mxu0 0
        %1010 = vmatpush1.bf16.xpose.msra.mxu0 0
        %1011 = vmatprep.subr.bf16.mxu0 0
        %1012 = vmatpush1.bf16.xpose.msra.mxu0 0
        %1013 = vmatprep.subr.bf16.mxu0 0
        %1014 = vmatpush1.bf16.xpose.msra.mxu0 0
        %1015 = vmatprep.subr.bf16.mxu0 0
        %1016 = vmatpush1.bf16.xpose.msra.mxu0 0
        %1017 = vmatprep.subr.bf16.mxu0 0
        %1018 = vmatpush1.bf16.xpose.msra.mxu0 0
        %1019 = vmatprep.subr.bf16.mxu0 0
        %1020 = vmatpush1.bf16.xpose.msra.mxu0 0
        %1021 = vmatprep.subr.bf16.mxu0 0
        %1022 = vmatpush1.bf16.xpose.msra.mxu0 0
        %1023 = vmatprep.subr.bf16.mxu0 0
        %1024 = vmatpush1.bf16.xpose.msra.mxu0 0
        %1025 = vmatprep.subr.bf16.mxu0 0
        %1026 = vmatpush1.bf16.xpose.msra.mxu0 0
        %1027 = vmatprep.subr.bf16.mxu0 0
        %1028 = vmatpush1.bf16.xpose.msra.mxu0 0
        %1029 = vmatprep.subr.bf16.mxu0 0
        %1030 = vmatpush1.bf16.xpose.msra.mxu0 0
        %1031 = vmatprep.subr.bf16.mxu0 0
        %1032 = vmatpush1.bf16.xpose.msra.mxu0 0
        %1033 = vmatprep.subr.bf16.mxu0 0
        %1034 = vmatpush1.bf16.xpose.msra.mxu0 0
        %1035 = vmatprep.subr.bf16.mxu0 0
        %1036 = vmatpush1.bf16.xpose.msra.mxu0 0
        %1037 = vmatprep.subr.bf16.mxu0 0
        %1038 = vmatpush1.bf16.xpose.msra.mxu0 0
        %1039 = vmatprep.mubr.bf16.mxu0 0
        %1040 = vmatmul.mubr.bf16.gmra.mrb[0].mxu0 %v1002
        %v1041 = vpop.f32.mrb[0].mxu0
        %v1042 = vadd.f32 0.0, %v1041
        %v1043 = vpop.f32.mrb[0].mxu0
        %v1044 = vpop.f32.mrb[0].mxu0
        %v1045 = vadd.f32 0.0, %v1044
        %v1046 = vpop.f32.mrb[0].mxu0
        %1047 = vdwg.mxu0
        %v1048 = vsel %vm668, %v1042, -inf
        %1049 = vmax.xlane.f32.xlu0 %v1048
        %v1050 = vpop.xlane.xlu0 %1049
        %v1051 = vsel %vm668, %v1045, -inf
        %1052 = vmax.xlane.f32.xlu0 %v1051
        %v1053 = vpop.xlane.xlu0 %1052
        %v1054 = vsub.f32 %v1042, %v1050
        %v1055 = vsub.f32 %v1045, %v1053
        %v1056 = vmul.f32 %v1054, 1.442695
        %v1057 = vpow.pop %v1056
        %v1058 = vmul.f32 %v1055, 1.442695
        %v1059 = vpow.pop %v1058
        %v1060 = vsel %vm668, %v1057, 0.0
        %1061 = vadd.xlane.f32.xlu0 %v1060
        %v1062 = vpop.xlane.xlu0 %1061
        %v1063 = vsel %vm668, %v1059, 0.0
        %1064 = vadd.xlane.f32.xlu0 %v1063
        %v1065 = vpop.xlane.xlu0 %1064
        %v1066 = vrcp.pop %v1062
        %v1067 = vmul.f32 %v1057, %v1066
        %v1068 = vrcp.pop %v1065
        %v1069 = vmul.f32 %v1059, %v1068
        %v1070 = vpack.c.bf16 %v1069, %v1067
        %1071 = vrot.lane.b32.xlu0 %v613, 104
        %v1072 = vpop.permute.xlu0 %1071
        %v1075 = vsel %vm668, %v1070, 0
        %1077 = vmatprep.subr.bf16.mxu0 0
        %1078 = vmatpush1.bf16.msra.mxu0 %v1072
        %1079 = vmatprep.subr.bf16.mxu0 0
        %1080 = vmatpush1.bf16.msra.mxu0 0
        %1081 = vmatprep.subr.bf16.mxu0 0
        %1082 = vmatpush1.bf16.msra.mxu0 0
        %1083 = vmatprep.subr.bf16.mxu0 0
        %1084 = vmatpush1.bf16.msra.mxu0 0
        %1085 = vmatprep.subr.bf16.mxu0 0
        %1086 = vmatpush1.bf16.msra.mxu0 0
        %1087 = vmatprep.subr.bf16.mxu0 0
        %1088 = vmatpush1.bf16.msra.mxu0 0
        %1089 = vmatprep.subr.bf16.mxu0 0
        %1090 = vmatpush1.bf16.msra.mxu0 0
        %1091 = vmatprep.subr.bf16.mxu0 0
        %1092 = vmatpush1.bf16.msra.mxu0 0
        %1093 = vmatprep.subr.bf16.mxu0 0
        %1094 = vmatpush1.bf16.msra.mxu0 0
        %1095 = vmatprep.subr.bf16.mxu0 0
        %1096 = vmatpush1.bf16.msra.mxu0 0
        %1097 = vmatprep.subr.bf16.mxu0 0
        %1098 = vmatpush1.bf16.msra.mxu0 0
        %1099 = vmatprep.subr.bf16.mxu0 0
        %1100 = vmatpush1.bf16.msra.mxu0 0
        %1101 = vmatprep.subr.bf16.mxu0 0
        %1102 = vmatpush1.bf16.msra.mxu0 0
        %1103 = vmatprep.subr.bf16.mxu0 0
        %1104 = vmatpush1.bf16.msra.mxu0 0
        %1105 = vmatprep.subr.bf16.mxu0 0
        %1106 = vmatpush1.bf16.msra.mxu0 0
        %1107 = vmatprep.subr.bf16.mxu0 0
        %1108 = vmatpush1.bf16.msra.mxu0 0
        %1109 = vmatprep.mubr.bf16.mxu0 0
        %1110 = vmatmul.mubr.bf16.gmra.mrb[0].mxu0 %v1075
        %v1111 = vpop.f32.mrb[0].mxu0
        %v1112 = vadd.f32 0.0, %v1111
        %v1113 = vpop.f32.mrb[0].mxu0
        %v1114 = vpop.f32.mrb[0].mxu0
        %v1115 = vadd.f32 0.0, %v1114
        %v1116 = vpop.f32.mrb[0].mxu0
        %1117 = vdwg.mxu0
        %v1118 = vpack.c.bf16 %v1115, %v1112
        %1120 = vrot.lane.b32.xlu0 %v1118, 24
        %v1121 = vpop.permute.xlu0 %1120
        %vm1123 = vcmask 261312
        %1124 = vst.msk [vmem:[#allocation2] sm:$0xff] %vm1123, %v1121
        %v1125 = vld [vmem:[#allocation2] sm:$0xff]
        %v1126 = vlaneseq
        %v1127 = vshrl.u32 %v1126, 7
        %v1128 = vsub.s32 0, %v1127
        %v1129 = vrot.slane %v619, %v1128
        %v1134 = vunpack.c.l.b16 %v615
        %v1135 = vunpack.c.l.b16 %v616
        %v1136 = vunpack.c.l.b16 %v617
        %v1137 = vunpack.c.l.b16 %v618
        %v1138 = vpack.c.b16 %v1135, %v1134
        %v1139 = vpack.c.b16 %v1137, %v1136
        %v1143 = vsel %vm394, %v1125, 0
        %1145 = vmatprep.subr.bf16.mxu0 0
        %1146 = vmatpush1.bf16.msra.mxu0 %v1138
        %1147 = vmatprep.subr.bf16.mxu0 0
        %1148 = vmatpush1.bf16.msra.mxu0 %v1139
        %1149 = vmatprep.subr.bf16.mxu0 0
        %1150 = vmatpush1.bf16.msra.mxu0 0
        %1151 = vmatprep.subr.bf16.mxu0 0
        %1152 = vmatpush1.bf16.msra.mxu0 0
        %1153 = vmatprep.subr.bf16.mxu0 0
        %1154 = vmatpush1.bf16.msra.mxu0 0
        %1155 = vmatprep.subr.bf16.mxu0 0
        %1156 = vmatpush1.bf16.msra.mxu0 0
        %1157 = vmatprep.subr.bf16.mxu0 0
        %1158 = vmatpush1.bf16.msra.mxu0 0
        %1159 = vmatprep.subr.bf16.mxu0 0
        %1160 = vmatpush1.bf16.msra.mxu0 0
        %1161 = vmatprep.subr.bf16.mxu0 0
        %1162 = vmatpush1.bf16.msra.mxu0 0
        %1163 = vmatprep.subr.bf16.mxu0 0
        %1164 = vmatpush1.bf16.msra.mxu0 0
        %1165 = vmatprep.subr.bf16.mxu0 0
        %1166 = vmatpush1.bf16.msra.mxu0 0
        %1167 = vmatprep.subr.bf16.mxu0 0
        %1168 = vmatpush1.bf16.msra.mxu0 0
        %1169 = vmatprep.subr.bf16.mxu0 0
        %1170 = vmatpush1.bf16.msra.mxu0 0
        %1171 = vmatprep.subr.bf16.mxu0 0
        %1172 = vmatpush1.bf16.msra.mxu0 0
        %1173 = vmatprep.subr.bf16.mxu0 0
        %1174 = vmatpush1.bf16.msra.mxu0 0
        %1175 = vmatprep.subr.bf16.mxu0 0
        %1176 = vmatpush1.bf16.msra.mxu0 0
        %1177 = vmatprep.mubr.bf16.mxu0 0
        %1178 = vmatmul.mubr.bf16.gmra.mrb[0].mxu0 %v1143
        %v1179 = vpop.f32.mrb[0].mxu0
        %v1180 = vadd.f32 %v1129, %v1179
        %v1181 = vpop.f32.mrb[0].mxu0
        %v1182 = vpop.f32.mrb[0].mxu0
        %v1183 = vadd.f32 %v1129, %v1182
        %v1184 = vpop.f32.mrb[0].mxu0
        %1185 = vdwg.mxu0
        %s1186 = scalar_lea.vmem %s4, 64
        %v1187 = vld [vmem:[%s1186] sm:$0xf]
        %v1188 = vld [vmem:[%s1186 + $0x4] sm:$0xf]
        %v1189 = vld [vmem:[%s1186 + $0x8] sm:$0xf]
        %v1190 = vld [vmem:[%s1186 + $0xc] sm:$0xf]
        %v1195 = vunpack.c.l.b16 %v1187
        %v1196 = vunpack.c.l.b16 %v1188
        %v1197 = vunpack.c.l.b16 %v1189
        %v1198 = vunpack.c.l.b16 %v1190
        %v1199 = vpack.c.b16 %v1196, %v1195
        %v1200 = vpack.c.b16 %v1198, %v1197
        %1203 = vmatprep.subr.bf16.mxu0 0
        %1204 = vmatpush1.bf16.msra.mxu0 %v1199
        %1205 = vmatprep.subr.bf16.mxu0 0
        %1206 = vmatpush1.bf16.msra.mxu0 %v1200
        %1207 = vmatprep.subr.bf16.mxu0 0
        %1208 = vmatpush1.bf16.msra.mxu0 0
        %1209 = vmatprep.subr.bf16.mxu0 0
        %1210 = vmatpush1.bf16.msra.mxu0 0
        %1211 = vmatprep.subr.bf16.mxu0 0
        %1212 = vmatpush1.bf16.msra.mxu0 0
        %1213 = vmatprep.subr.bf16.mxu0 0
        %1214 = vmatpush1.bf16.msra.mxu0 0
        %1215 = vmatprep.subr.bf16.mxu0 0
        %1216 = vmatpush1.bf16.msra.mxu0 0
        %1217 = vmatprep.subr.bf16.mxu0 0
        %1218 = vmatpush1.bf16.msra.mxu0 0
        %1219 = vmatprep.subr.bf16.mxu0 0
        %1220 = vmatpush1.bf16.msra.mxu0 0
        %1221 = vmatprep.subr.bf16.mxu0 0
        %1222 = vmatpush1.bf16.msra.mxu0 0
        %1223 = vmatprep.subr.bf16.mxu0 0
        %1224 = vmatpush1.bf16.msra.mxu0 0
        %1225 = vmatprep.subr.bf16.mxu0 0
        %1226 = vmatpush1.bf16.msra.mxu0 0
        %1227 = vmatprep.subr.bf16.mxu0 0
        %1228 = vmatpush1.bf16.msra.mxu0 0
        %1229 = vmatprep.subr.bf16.mxu0 0
        %1230 = vmatpush1.bf16.msra.mxu0 0
        %1231 = vmatprep.subr.bf16.mxu0 0
        %1232 = vmatpush1.bf16.msra.mxu0 0
        %1233 = vmatprep.subr.bf16.mxu0 0
        %1234 = vmatpush1.bf16.msra.mxu0 0
        %1235 = vmatprep.mubr.bf16.mxu0 0
        %1236 = vmatmul.mubr.bf16.gmra.mrb[0].mxu0 %v452
        %v1237 = vpop.f32.mrb[0].mxu0
        %v1238 = vadd.f32 0.0, %v1237
        %v1239 = vpop.f32.mrb[0].mxu0
        %v1240 = vpop.f32.mrb[0].mxu0
        %v1241 = vadd.f32 0.0, %v1240
        %v1242 = vpop.f32.mrb[0].mxu0
        %1243 = vdwg.mxu0
        %v1244 = vpack.c.bf16 %v1241, %v1238
        %v1245 = vlaneseq
        %v1246 = vshrl.u32 %v1245, 7
        %v1247 = vadd.s32 %v1246, 8
        %v1248 = vlaneseq
        %v1249 = vshrl.u32 %v1248, 7
        %v1250 = vsub.s32 0, %v1249
        %v1251 = vrot.slane %v390, %v1250
        %vm1252 = vcmp.eq.s32.totalorder %v1251, %v1246
        %vm1253 = vcmp.eq.s32.totalorder %v1251, %v1247
        %v1254 = vsel %vm1252, 1.0, 0.0
        %v1255 = vsel %vm1253, 1.0, 0.0
        %v1256 = vpack.c.bf16 %v1255, %v1254
        %1257 = vxpose.xlu0.c.b16.start [1/8] %v1256, 128
        %1258 = vxpose.xlu0.c.b16.cont [2/8] 0, 128
        %1259 = vxpose.xlu0.c.b16.cont [3/8] 0, 128
        %1260 = vxpose.xlu0.c.b16.cont [4/8] 0, 128
        %1261 = vxpose.xlu0.c.b16.cont [5/8] 0, 128
        %1262 = vxpose.xlu0.c.b16.cont [6/8] 0, 128
        %1263 = vxpose.xlu0.c.b16.cont [7/8] 0, 128
        %1264 = vxpose.xlu0.c.b16.end [8/8] 0, 128
        %v1265 = vpop.trf.xlu0
        %v1266 = vpop.trf.xlu0
        %v1267 = vpop.trf.xlu0
        %v1268 = vpop.trf.xlu0
        %v1269 = vpop.trf.xlu0
        %v1270 = vpop.trf.xlu0
        %v1271 = vpop.trf.xlu0
        %v1272 = vpop.trf.xlu0
        %v1274 = vsel %vm668, %v1265, 0
        %1276 = vmatprep.subr.bf16.mxu0 0
        %1277 = vmatpush1.bf16.msra.mxu0 %v1244
        %1278 = vmatprep.subr.bf16.mxu0 0
        %1279 = vmatpush1.bf16.msra.mxu0 0
        %1280 = vmatprep.subr.bf16.mxu0 0
        %1281 = vmatpush1.bf16.msra.mxu0 0
        %1282 = vmatprep.subr.bf16.mxu0 0
        %1283 = vmatpush1.bf16.msra.mxu0 0
        %1284 = vmatprep.subr.bf16.mxu0 0
        %1285 = vmatpush1.bf16.msra.mxu0 0
        %1286 = vmatprep.subr.bf16.mxu0 0
        %1287 = vmatpush1.bf16.msra.mxu0 0
        %1288 = vmatprep.subr.bf16.mxu0 0
        %1289 = vmatpush1.bf16.msra.mxu0 0
        %1290 = vmatprep.subr.bf16.mxu0 0
        %1291 = vmatpush1.bf16.msra.mxu0 0
        %1292 = vmatprep.subr.bf16.mxu0 0
        %1293 = vmatpush1.bf16.msra.mxu0 0
        %1294 = vmatprep.subr.bf16.mxu0 0
        %1295 = vmatpush1.bf16.msra.mxu0 0
        %1296 = vmatprep.subr.bf16.mxu0 0
        %1297 = vmatpush1.bf16.msra.mxu0 0
        %1298 = vmatprep.subr.bf16.mxu0 0
        %1299 = vmatpush1.bf16.msra.mxu0 0
        %1300 = vmatprep.subr.bf16.mxu0 0
        %1301 = vmatpush1.bf16.msra.mxu0 0
        %1302 = vmatprep.subr.bf16.mxu0 0
        %1303 = vmatpush1.bf16.msra.mxu0 0
        %1304 = vmatprep.subr.bf16.mxu0 0
        %1305 = vmatpush1.bf16.msra.mxu0 0
        %1306 = vmatprep.subr.bf16.mxu0 0
        %1307 = vmatpush1.bf16.msra.mxu0 0
        %1308 = vmatprep.mubr.bf16.mxu0 0
        %1309 = vmatmul.mubr.bf16.gmra.mrb[0].mxu0 %v1274
        %v1310 = vpop.f32.mrb[0].mxu0
        %v1311 = vadd.f32 0.0, %v1310
        %v1312 = vpop.f32.mrb[0].mxu0
        %v1313 = vpop.f32.mrb[0].mxu0
        %v1314 = vadd.f32 0.0, %v1313
        %v1315 = vpop.f32.mrb[0].mxu0
        %1316 = vdwg.mxu0
        %v1317 = vlaneseq
        %v1318 = vshrl.u32 %v1317, 7
        %v1319 = vsub.s32 1, %v1318
        %v1320 = vrot.slane %v390, %v1319
        %vm1321 = vcmp.eq.s32.totalorder %v1320, %v1246
        %vm1322 = vcmp.eq.s32.totalorder %v1320, %v1247
        %v1323 = vsel %vm1321, 1.0, 0.0
        %v1324 = vsel %vm1322, 1.0, 0.0
        %v1325 = vpack.c.bf16 %v1324, %v1323
        %1326 = vxpose.xlu0.c.b16.start [1/8] %v1325, 128
        %1327 = vxpose.xlu0.c.b16.cont [2/8] 0, 128
        %1328 = vxpose.xlu0.c.b16.cont [3/8] 0, 128
        %1329 = vxpose.xlu0.c.b16.cont [4/8] 0, 128
        %1330 = vxpose.xlu0.c.b16.cont [5/8] 0, 128
        %1331 = vxpose.xlu0.c.b16.cont [6/8] 0, 128
        %1332 = vxpose.xlu0.c.b16.cont [7/8] 0, 128
        %1333 = vxpose.xlu0.c.b16.end [8/8] 0, 128
        %v1334 = vpop.trf.xlu0
        %v1335 = vpop.trf.xlu0
        %v1336 = vpop.trf.xlu0
        %v1337 = vpop.trf.xlu0
        %v1338 = vpop.trf.xlu0
        %v1339 = vpop.trf.xlu0
        %v1340 = vpop.trf.xlu0
        %v1341 = vpop.trf.xlu0
        %v1343 = vsel %vm668, %v1334, 0
        %1345 = vmatprep.subr.bf16.mxu0 0
        %1346 = vmatpush1.bf16.msra.mxu0 %v1244
        %1347 = vmatprep.subr.bf16.mxu0 0
        %1348 = vmatpush1.bf16.msra.mxu0 0
        %1349 = vmatprep.subr.bf16.mxu0 0
        %1350 = vmatpush1.bf16.msra.mxu0 0
        %1351 = vmatprep.subr.bf16.mxu0 0
        %1352 = vmatpush1.bf16.msra.mxu0 0
        %1353 = vmatprep.subr.bf16.mxu0 0
        %1354 = vmatpush1.bf16.msra.mxu0 0
        %1355 = vmatprep.subr.bf16.mxu0 0
        %1356 = vmatpush1.bf16.msra.mxu0 0
        %1357 = vmatprep.subr.bf16.mxu0 0
        %1358 = vmatpush1.bf16.msra.mxu0 0
        %1359 = vmatprep.subr.bf16.mxu0 0
        %1360 = vmatpush1.bf16.msra.mxu0 0
        %1361 = vmatprep.subr.bf16.mxu0 0
        %1362 = vmatpush1.bf16.msra.mxu0 0
        %1363 = vmatprep.subr.bf16.mxu0 0
        %1364 = vmatpush1.bf16.msra.mxu0 0
        %1365 = vmatprep.subr.bf16.mxu0 0
        %1366 = vmatpush1.bf16.msra.mxu0 0
        %1367 = vmatprep.subr.bf16.mxu0 0
        %1368 = vmatpush1.bf16.msra.mxu0 0
        %1369 = vmatprep.subr.bf16.mxu0 0
        %1370 = vmatpush1.bf16.msra.mxu0 0
        %1371 = vmatprep.subr.bf16.mxu0 0
        %1372 = vmatpush1.bf16.msra.mxu0 0
        %1373 = vmatprep.subr.bf16.mxu0 0
        %1374 = vmatpush1.bf16.msra.mxu0 0
        %1375 = vmatprep.subr.bf16.mxu0 0
        %1376 = vmatpush1.bf16.msra.mxu0 0
        %1377 = vmatprep.mubr.bf16.mxu0 0
        %1378 = vmatmul.mubr.bf16.gmra.mrb[0].mxu0 %v1343
        %v1379 = vpop.f32.mrb[0].mxu0
        %v1380 = vadd.f32 0.0, %v1379
        %v1381 = vpop.f32.mrb[0].mxu0
        %v1382 = vpop.f32.mrb[0].mxu0
        %v1383 = vadd.f32 0.0, %v1382
        %v1384 = vpop.f32.mrb[0].mxu0
        %1385 = vdwg.mxu0
        %v1386 = vmax.f32 %v1311, %v1380
        %v1387 = vmax.f32 %v1314, %v1383
        %v1388 = vlaneseq
        %v1389 = vshrl.u32 %v1388, 7
        %v1390 = vsub.s32 2, %v1389
        %v1391 = vrot.slane %v390, %v1390
        %vm1392 = vcmp.eq.s32.totalorder %v1391, %v1246
        %vm1393 = vcmp.eq.s32.totalorder %v1391, %v1247
        %v1394 = vsel %vm1392, 1.0, 0.0
        %v1395 = vsel %vm1393, 1.0, 0.0
        %v1396 = vpack.c.bf16 %v1395, %v1394
        %1397 = vxpose.xlu0.c.b16.start [1/8] %v1396, 128
        %1398 = vxpose.xlu0.c.b16.cont [2/8] 0, 128
        %1399 = vxpose.xlu0.c.b16.cont [3/8] 0, 128
        %1400 = vxpose.xlu0.c.b16.cont [4/8] 0, 128
        %1401 = vxpose.xlu0.c.b16.cont [5/8] 0, 128
        %1402 = vxpose.xlu0.c.b16.cont [6/8] 0, 128
        %1403 = vxpose.xlu0.c.b16.cont [7/8] 0, 128
        %1404 = vxpose.xlu0.c.b16.end [8/8] 0, 128
        %v1405 = vpop.trf.xlu0
        %v1406 = vpop.trf.xlu0
        %v1407 = vpop.trf.xlu0
        %v1408 = vpop.trf.xlu0
        %v1409 = vpop.trf.xlu0
        %v1410 = vpop.trf.xlu0
        %v1411 = vpop.trf.xlu0
        %v1412 = vpop.trf.xlu0
        %v1414 = vsel %vm668, %v1405, 0
        %1416 = vmatprep.subr.bf16.mxu0 0
        %1417 = vmatpush1.bf16.msra.mxu0 %v1244
        %1418 = vmatprep.subr.bf16.mxu0 0
        %1419 = vmatpush1.bf16.msra.mxu0 0
        %1420 = vmatprep.subr.bf16.mxu0 0
        %1421 = vmatpush1.bf16.msra.mxu0 0
        %1422 = vmatprep.subr.bf16.mxu0 0
        %1423 = vmatpush1.bf16.msra.mxu0 0
        %1424 = vmatprep.subr.bf16.mxu0 0
        %1425 = vmatpush1.bf16.msra.mxu0 0
        %1426 = vmatprep.subr.bf16.mxu0 0
        %1427 = vmatpush1.bf16.msra.mxu0 0
        %1428 = vmatprep.subr.bf16.mxu0 0
        %1429 = vmatpush1.bf16.msra.mxu0 0
        %1430 = vmatprep.subr.bf16.mxu0 0
        %1431 = vmatpush1.bf16.msra.mxu0 0
        %1432 = vmatprep.subr.bf16.mxu0 0
        %1433 = vmatpush1.bf16.msra.mxu0 0
        %1434 = vmatprep.subr.bf16.mxu0 0
        %1435 = vmatpush1.bf16.msra.mxu0 0
        %1436 = vmatprep.subr.bf16.mxu0 0
        %1437 = vmatpush1.bf16.msra.mxu0 0
        %1438 = vmatprep.subr.bf16.mxu0 0
        %1439 = vmatpush1.bf16.msra.mxu0 0
        %1440 = vmatprep.subr.bf16.mxu0 0
        %1441 = vmatpush1.bf16.msra.mxu0 0
        %1442 = vmatprep.subr.bf16.mxu0 0
        %1443 = vmatpush1.bf16.msra.mxu0 0
        %1444 = vmatprep.subr.bf16.mxu0 0
        %1445 = vmatpush1.bf16.msra.mxu0 0
        %1446 = vmatprep.subr.bf16.mxu0 0
        %1447 = vmatpush1.bf16.msra.mxu0 0
        %1448 = vmatprep.mubr.bf16.mxu0 0
        %1449 = vmatmul.mubr.bf16.gmra.mrb[0].mxu0 %v1414
        %v1450 = vpop.f32.mrb[0].mxu0
        %v1451 = vadd.f32 0.0, %v1450
        %v1452 = vpop.f32.mrb[0].mxu0
        %v1453 = vpop.f32.mrb[0].mxu0
        %v1454 = vadd.f32 0.0, %v1453
        %v1455 = vpop.f32.mrb[0].mxu0
        %1456 = vdwg.mxu0
        %v1457 = vmax.f32 %v1386, %v1451
        %v1458 = vmax.f32 %v1387, %v1454
        %v1459 = vlaneseq
        %v1460 = vshrl.u32 %v1459, 7
        %v1461 = vsub.s32 3, %v1460
        %v1462 = vrot.slane %v390, %v1461
        %vm1463 = vcmp.eq.s32.totalorder %v1462, %v1246
        %vm1464 = vcmp.eq.s32.totalorder %v1462, %v1247
        %v1465 = vsel %vm1463, 1.0, 0.0
        %v1466 = vsel %vm1464, 1.0, 0.0
        %v1467 = vpack.c.bf16 %v1466, %v1465
        %1468 = vxpose.xlu0.c.b16.start [1/8] %v1467, 128
        %1469 = vxpose.xlu0.c.b16.cont [2/8] 0, 128
        %1470 = vxpose.xlu0.c.b16.cont [3/8] 0, 128
        %1471 = vxpose.xlu0.c.b16.cont [4/8] 0, 128
        %1472 = vxpose.xlu0.c.b16.cont [5/8] 0, 128
        %1473 = vxpose.xlu0.c.b16.cont [6/8] 0, 128
        %1474 = vxpose.xlu0.c.b16.cont [7/8] 0, 128
        %1475 = vxpose.xlu0.c.b16.end [8/8] 0, 128
        %v1476 = vpop.trf.xlu0
        %v1477 = vpop.trf.xlu0
        %v1478 = vpop.trf.xlu0
        %v1479 = vpop.trf.xlu0
        %v1480 = vpop.trf.xlu0
        %v1481 = vpop.trf.xlu0
        %v1482 = vpop.trf.xlu0
        %v1483 = vpop.trf.xlu0
        %v1485 = vsel %vm668, %v1476, 0
        %1487 = vmatprep.subr.bf16.mxu0 0
        %1488 = vmatpush1.bf16.msra.mxu0 %v1244
        %1489 = vmatprep.subr.bf16.mxu0 0
        %1490 = vmatpush1.bf16.msra.mxu0 0
        %1491 = vmatprep.subr.bf16.mxu0 0
        %1492 = vmatpush1.bf16.msra.mxu0 0
        %1493 = vmatprep.subr.bf16.mxu0 0
        %1494 = vmatpush1.bf16.msra.mxu0 0
        %1495 = vmatprep.subr.bf16.mxu0 0
        %1496 = vmatpush1.bf16.msra.mxu0 0
        %1497 = vmatprep.subr.bf16.mxu0 0
        %1498 = vmatpush1.bf16.msra.mxu0 0
        %1499 = vmatprep.subr.bf16.mxu0 0
        %1500 = vmatpush1.bf16.msra.mxu0 0
        %1501 = vmatprep.subr.bf16.mxu0 0
        %1502 = vmatpush1.bf16.msra.mxu0 0
        %1503 = vmatprep.subr.bf16.mxu0 0
        %1504 = vmatpush1.bf16.msra.mxu0 0
        %1505 = vmatprep.subr.bf16.mxu0 0
        %1506 = vmatpush1.bf16.msra.mxu0 0
        %1507 = vmatprep.subr.bf16.mxu0 0
        %1508 = vmatpush1.bf16.msra.mxu0 0
        %1509 = vmatprep.subr.bf16.mxu0 0
        %1510 = vmatpush1.bf16.msra.mxu0 0
        %1511 = vmatprep.subr.bf16.mxu0 0
        %1512 = vmatpush1.bf16.msra.mxu0 0
        %1513 = vmatprep.subr.bf16.mxu0 0
        %1514 = vmatpush1.bf16.msra.mxu0 0
        %1515 = vmatprep.subr.bf16.mxu0 0
        %1516 = vmatpush1.bf16.msra.mxu0 0
        %1517 = vmatprep.subr.bf16.mxu0 0
        %1518 = vmatpush1.bf16.msra.mxu0 0
        %1519 = vmatprep.mubr.bf16.mxu0 0
        %1520 = vmatmul.mubr.bf16.gmra.mrb[0].mxu0 %v1485
        %v1521 = vpop.f32.mrb[0].mxu0
        %v1522 = vadd.f32 0.0, %v1521
        %v1523 = vpop.f32.mrb[0].mxu0
        %v1524 = vpop.f32.mrb[0].mxu0
        %v1525 = vadd.f32 0.0, %v1524
        %v1526 = vpop.f32.mrb[0].mxu0
        %1527 = vdwg.mxu0
        %v1528 = vmax.f32 %v1457, %v1522
        %v1529 = vmax.f32 %v1458, %v1525
        %v1530 = vlaneseq
        %v1531 = vshrl.u32 %v1530, 7
        %v1532 = vsub.s32 4, %v1531
        %v1533 = vrot.slane %v390, %v1532
        %vm1534 = vcmp.eq.s32.totalorder %v1533, %v1246
        %vm1535 = vcmp.eq.s32.totalorder %v1533, %v1247
        %v1536 = vsel %vm1534, 1.0, 0.0
        %v1537 = vsel %vm1535, 1.0, 0.0
        %v1538 = vpack.c.bf16 %v1537, %v1536
        %1539 = vxpose.xlu0.c.b16.start [1/8] %v1538, 128
        %1540 = vxpose.xlu0.c.b16.cont [2/8] 0, 128
        %1541 = vxpose.xlu0.c.b16.cont [3/8] 0, 128
        %1542 = vxpose.xlu0.c.b16.cont [4/8] 0, 128
        %1543 = vxpose.xlu0.c.b16.cont [5/8] 0, 128
        %1544 = vxpose.xlu0.c.b16.cont [6/8] 0, 128
        %1545 = vxpose.xlu0.c.b16.cont [7/8] 0, 128
        %1546 = vxpose.xlu0.c.b16.end [8/8] 0, 128
        %v1547 = vpop.trf.xlu0
        %v1548 = vpop.trf.xlu0
        %v1549 = vpop.trf.xlu0
        %v1550 = vpop.trf.xlu0
        %v1551 = vpop.trf.xlu0
        %v1552 = vpop.trf.xlu0
        %v1553 = vpop.trf.xlu0
        %v1554 = vpop.trf.xlu0
        %v1556 = vsel %vm668, %v1547, 0
        %1558 = vmatprep.subr.bf16.mxu0 0
        %1559 = vmatpush1.bf16.msra.mxu0 %v1244
        %1560 = vmatprep.subr.bf16.mxu0 0
        %1561 = vmatpush1.bf16.msra.mxu0 0
        %1562 = vmatprep.subr.bf16.mxu0 0
        %1563 = vmatpush1.bf16.msra.mxu0 0
        %1564 = vmatprep.subr.bf16.mxu0 0
        %1565 = vmatpush1.bf16.msra.mxu0 0
        %1566 = vmatprep.subr.bf16.mxu0 0
        %1567 = vmatpush1.bf16.msra.mxu0 0
        %1568 = vmatprep.subr.bf16.mxu0 0
        %1569 = vmatpush1.bf16.msra.mxu0 0
        %1570 = vmatprep.subr.bf16.mxu0 0
        %1571 = vmatpush1.bf16.msra.mxu0 0
        %1572 = vmatprep.subr.bf16.mxu0 0
        %1573 = vmatpush1.bf16.msra.mxu0 0
        %1574 = vmatprep.subr.bf16.mxu0 0
        %1575 = vmatpush1.bf16.msra.mxu0 0
        %1576 = vmatprep.subr.bf16.mxu0 0
        %1577 = vmatpush1.bf16.msra.mxu0 0
        %1578 = vmatprep.subr.bf16.mxu0 0
        %1579 = vmatpush1.bf16.msra.mxu0 0
        %1580 = vmatprep.subr.bf16.mxu0 0
        %1581 = vmatpush1.bf16.msra.mxu0 0
        %1582 = vmatprep.subr.bf16.mxu0 0
        %1583 = vmatpush1.bf16.msra.mxu0 0
        %1584 = vmatprep.subr.bf16.mxu0 0
        %1585 = vmatpush1.bf16.msra.mxu0 0
        %1586 = vmatprep.subr.bf16.mxu0 0
        %1587 = vmatpush1.bf16.msra.mxu0 0
        %1588 = vmatprep.subr.bf16.mxu0 0
        %1589 = vmatpush1.bf16.msra.mxu0 0
        %1590 = vmatprep.mubr.bf16.mxu0 0
        %1591 = vmatmul.mubr.bf16.gmra.mrb[0].mxu0 %v1556
        %v1592 = vpop.f32.mrb[0].mxu0
        %v1593 = vadd.f32 0.0, %v1592
        %v1594 = vpop.f32.mrb[0].mxu0
        %v1595 = vpop.f32.mrb[0].mxu0
        %v1596 = vadd.f32 0.0, %v1595
        %v1597 = vpop.f32.mrb[0].mxu0
        %1598 = vdwg.mxu0
        %v1599 = vmax.f32 %v1528, %v1593
        %v1600 = vmax.f32 %v1529, %v1596
        %v1601 = vlaneseq
        %v1602 = vshrl.u32 %v1601, 7
        %v1603 = vsub.s32 5, %v1602
        %v1604 = vrot.slane %v390, %v1603
        %vm1605 = vcmp.eq.s32.totalorder %v1604, %v1246
        %vm1606 = vcmp.eq.s32.totalorder %v1604, %v1247
        %v1607 = vsel %vm1605, 1.0, 0.0
        %v1608 = vsel %vm1606, 1.0, 0.0
        %v1609 = vpack.c.bf16 %v1608, %v1607
        %1610 = vxpose.xlu0.c.b16.start [1/8] %v1609, 128
        %1611 = vxpose.xlu0.c.b16.cont [2/8] 0, 128
        %1612 = vxpose.xlu0.c.b16.cont [3/8] 0, 128
        %1613 = vxpose.xlu0.c.b16.cont [4/8] 0, 128
        %1614 = vxpose.xlu0.c.b16.cont [5/8] 0, 128
        %1615 = vxpose.xlu0.c.b16.cont [6/8] 0, 128
        %1616 = vxpose.xlu0.c.b16.cont [7/8] 0, 128
        %1617 = vxpose.xlu0.c.b16.end [8/8] 0, 128
        %v1618 = vpop.trf.xlu0
        %v1619 = vpop.trf.xlu0
        %v1620 = vpop.trf.xlu0
        %v1621 = vpop.trf.xlu0
        %v1622 = vpop.trf.xlu0
        %v1623 = vpop.trf.xlu0
        %v1624 = vpop.trf.xlu0
        %v1625 = vpop.trf.xlu0
        %v1627 = vsel %vm668, %v1618, 0
        %1629 = vmatprep.subr.bf16.mxu0 0
        %1630 = vmatpush1.bf16.msra.mxu0 %v1244
        %1631 = vmatprep.subr.bf16.mxu0 0
        %1632 = vmatpush1.bf16.msra.mxu0 0
        %1633 = vmatprep.subr.bf16.mxu0 0
        %1634 = vmatpush1.bf16.msra.mxu0 0
        %1635 = vmatprep.subr.bf16.mxu0 0
        %1636 = vmatpush1.bf16.msra.mxu0 0
        %1637 = vmatprep.subr.bf16.mxu0 0
        %1638 = vmatpush1.bf16.msra.mxu0 0
        %1639 = vmatprep.subr.bf16.mxu0 0
        %1640 = vmatpush1.bf16.msra.mxu0 0
        %1641 = vmatprep.subr.bf16.mxu0 0
        %1642 = vmatpush1.bf16.msra.mxu0 0
        %1643 = vmatprep.subr.bf16.mxu0 0
        %1644 = vmatpush1.bf16.msra.mxu0 0
        %1645 = vmatprep.subr.bf16.mxu0 0
        %1646 = vmatpush1.bf16.msra.mxu0 0
        %1647 = vmatprep.subr.bf16.mxu0 0
        %1648 = vmatpush1.bf16.msra.mxu0 0
        %1649 = vmatprep.subr.bf16.mxu0 0
        %1650 = vmatpush1.bf16.msra.mxu0 0
        %1651 = vmatprep.subr.bf16.mxu0 0
        %1652 = vmatpush1.bf16.msra.mxu0 0
        %1653 = vmatprep.subr.bf16.mxu0 0
        %1654 = vmatpush1.bf16.msra.mxu0 0
        %1655 = vmatprep.subr.bf16.mxu0 0
        %1656 = vmatpush1.bf16.msra.mxu0 0
        %1657 = vmatprep.subr.bf16.mxu0 0
        %1658 = vmatpush1.bf16.msra.mxu0 0
        %1659 = vmatprep.subr.bf16.mxu0 0
        %1660 = vmatpush1.bf16.msra.mxu0 0
        %1661 = vmatprep.mubr.bf16.mxu0 0
        %1662 = vmatmul.mubr.bf16.gmra.mrb[0].mxu0 %v1627
        %v1663 = vpop.f32.mrb[0].mxu0
        %v1664 = vadd.f32 0.0, %v1663
        %v1665 = vpop.f32.mrb[0].mxu0
        %v1666 = vpop.f32.mrb[0].mxu0
        %v1667 = vadd.f32 0.0, %v1666
        %v1668 = vpop.f32.mrb[0].mxu0
        %1669 = vdwg.mxu0
        %v1670 = vmax.f32 %v1599, %v1664
        %v1671 = vmax.f32 %v1600, %v1667
        %v1672 = vlaneseq
        %v1673 = vshrl.u32 %v1672, 7
        %v1674 = vsub.s32 6, %v1673
        %v1675 = vrot.slane %v390, %v1674
        %vm1676 = vcmp.eq.s32.totalorder %v1675, %v1246
        %vm1677 = vcmp.eq.s32.totalorder %v1675, %v1247
        %v1678 = vsel %vm1676, 1.0, 0.0
        %v1679 = vsel %vm1677, 1.0, 0.0
        %v1680 = vpack.c.bf16 %v1679, %v1678
        %1681 = vxpose.xlu0.c.b16.start [1/8] %v1680, 128
        %1682 = vxpose.xlu0.c.b16.cont [2/8] 0, 128
        %1683 = vxpose.xlu0.c.b16.cont [3/8] 0, 128
        %1684 = vxpose.xlu0.c.b16.cont [4/8] 0, 128
        %1685 = vxpose.xlu0.c.b16.cont [5/8] 0, 128
        %1686 = vxpose.xlu0.c.b16.cont [6/8] 0, 128
        %1687 = vxpose.xlu0.c.b16.cont [7/8] 0, 128
        %1688 = vxpose.xlu0.c.b16.end [8/8] 0, 128
        %v1689 = vpop.trf.xlu0
        %v1690 = vpop.trf.xlu0
        %v1691 = vpop.trf.xlu0
        %v1692 = vpop.trf.xlu0
        %v1693 = vpop.trf.xlu0
        %v1694 = vpop.trf.xlu0
        %v1695 = vpop.trf.xlu0
        %v1696 = vpop.trf.xlu0
        %v1698 = vsel %vm668, %v1689, 0
        %1700 = vmatprep.subr.bf16.mxu0 0
        %1701 = vmatpush1.bf16.msra.mxu0 %v1244
        %1702 = vmatprep.subr.bf16.mxu0 0
        %1703 = vmatpush1.bf16.msra.mxu0 0
        %1704 = vmatprep.subr.bf16.mxu0 0
        %1705 = vmatpush1.bf16.msra.mxu0 0
        %1706 = vmatprep.subr.bf16.mxu0 0
        %1707 = vmatpush1.bf16.msra.mxu0 0
        %1708 = vmatprep.subr.bf16.mxu0 0
        %1709 = vmatpush1.bf16.msra.mxu0 0
        %1710 = vmatprep.subr.bf16.mxu0 0
        %1711 = vmatpush1.bf16.msra.mxu0 0
        %1712 = vmatprep.subr.bf16.mxu0 0
        %1713 = vmatpush1.bf16.msra.mxu0 0
        %1714 = vmatprep.subr.bf16.mxu0 0
        %1715 = vmatpush1.bf16.msra.mxu0 0
        %1716 = vmatprep.subr.bf16.mxu0 0
        %1717 = vmatpush1.bf16.msra.mxu0 0
        %1718 = vmatprep.subr.bf16.mxu0 0
        %1719 = vmatpush1.bf16.msra.mxu0 0
        %1720 = vmatprep.subr.bf16.mxu0 0
        %1721 = vmatpush1.bf16.msra.mxu0 0
        %1722 = vmatprep.subr.bf16.mxu0 0
        %1723 = vmatpush1.bf16.msra.mxu0 0
        %1724 = vmatprep.subr.bf16.mxu0 0
        %1725 = vmatpush1.bf16.msra.mxu0 0
        %1726 = vmatprep.subr.bf16.mxu0 0
        %1727 = vmatpush1.bf16.msra.mxu0 0
        %1728 = vmatprep.subr.bf16.mxu0 0
        %1729 = vmatpush1.bf16.msra.mxu0 0
        %1730 = vmatprep.subr.bf16.mxu0 0
        %1731 = vmatpush1.bf16.msra.mxu0 0
        %1732 = vmatprep.mubr.bf16.mxu0 0
        %1733 = vmatmul.mubr.bf16.gmra.mrb[0].mxu0 %v1698
        %v1734 = vpop.f32.mrb[0].mxu0
        %v1735 = vadd.f32 0.0, %v1734
        %v1736 = vpop.f32.mrb[0].mxu0
        %v1737 = vpop.f32.mrb[0].mxu0
        %v1738 = vadd.f32 0.0, %v1737
        %v1739 = vpop.f32.mrb[0].mxu0
        %1740 = vdwg.mxu0
        %v1741 = vmax.f32 %v1670, %v1735
        %v1742 = vmax.f32 %v1671, %v1738
        %v1743 = vlaneseq
        %v1744 = vshrl.u32 %v1743, 7
        %v1745 = vsub.s32 7, %v1744
        %v1746 = vrot.slane %v390, %v1745
        %vm1747 = vcmp.eq.s32.totalorder %v1746, %v1246
        %vm1748 = vcmp.eq.s32.totalorder %v1746, %v1247
        %v1749 = vsel %vm1747, 1.0, 0.0
        %v1750 = vsel %vm1748, 1.0, 0.0
        %v1751 = vpack.c.bf16 %v1750, %v1749
        %1752 = vxpose.xlu0.c.b16.start [1/8] %v1751, 128
        %1753 = vxpose.xlu0.c.b16.cont [2/8] 0, 128
        %1754 = vxpose.xlu0.c.b16.cont [3/8] 0, 128
        %1755 = vxpose.xlu0.c.b16.cont [4/8] 0, 128
        %1756 = vxpose.xlu0.c.b16.cont [5/8] 0, 128
        %1757 = vxpose.xlu0.c.b16.cont [6/8] 0, 128
        %1758 = vxpose.xlu0.c.b16.cont [7/8] 0, 128
        %1759 = vxpose.xlu0.c.b16.end [8/8] 0, 128
        %v1760 = vpop.trf.xlu0
        %v1761 = vpop.trf.xlu0
        %v1762 = vpop.trf.xlu0
        %v1763 = vpop.trf.xlu0
        %v1764 = vpop.trf.xlu0
        %v1765 = vpop.trf.xlu0
        %v1766 = vpop.trf.xlu0
        %v1767 = vpop.trf.xlu0
        %v1769 = vsel %vm668, %v1760, 0
        %1771 = vmatprep.subr.bf16.mxu0 0
        %1772 = vmatpush1.bf16.msra.mxu0 %v1244
        %1773 = vmatprep.subr.bf16.mxu0 0
        %1774 = vmatpush1.bf16.msra.mxu0 0
        %1775 = vmatprep.subr.bf16.mxu0 0
        %1776 = vmatpush1.bf16.msra.mxu0 0
        %1777 = vmatprep.subr.bf16.mxu0 0
        %1778 = vmatpush1.bf16.msra.mxu0 0
        %1779 = vmatprep.subr.bf16.mxu0 0
        %1780 = vmatpush1.bf16.msra.mxu0 0
        %1781 = vmatprep.subr.bf16.mxu0 0
        %1782 = vmatpush1.bf16.msra.mxu0 0
        %1783 = vmatprep.subr.bf16.mxu0 0
        %1784 = vmatpush1.bf16.msra.mxu0 0
        %1785 = vmatprep.subr.bf16.mxu0 0
        %1786 = vmatpush1.bf16.msra.mxu0 0
        %1787 = vmatprep.subr.bf16.mxu0 0
        %1788 = vmatpush1.bf16.msra.mxu0 0
        %1789 = vmatprep.subr.bf16.mxu0 0
        %1790 = vmatpush1.bf16.msra.mxu0 0
        %1791 = vmatprep.subr.bf16.mxu0 0
        %1792 = vmatpush1.bf16.msra.mxu0 0
        %1793 = vmatprep.subr.bf16.mxu0 0
        %1794 = vmatpush1.bf16.msra.mxu0 0
        %1795 = vmatprep.subr.bf16.mxu0 0
        %1796 = vmatpush1.bf16.msra.mxu0 0
        %1797 = vmatprep.subr.bf16.mxu0 0
        %1798 = vmatpush1.bf16.msra.mxu0 0
        %1799 = vmatprep.subr.bf16.mxu0 0
        %1800 = vmatpush1.bf16.msra.mxu0 0
        %1801 = vmatprep.subr.bf16.mxu0 0
        %1802 = vmatpush1.bf16.msra.mxu0 0
        %1803 = vmatprep.mubr.bf16.mxu0 0
        %1804 = vmatmul.mubr.bf16.gmra.mrb[0].mxu0 %v1769
        %v1805 = vpop.f32.mrb[0].mxu0
        %v1806 = vadd.f32 0.0, %v1805
        %v1807 = vpop.f32.mrb[0].mxu0
        %v1808 = vpop.f32.mrb[0].mxu0
        %v1809 = vadd.f32 0.0, %v1808
        %v1810 = vpop.f32.mrb[0].mxu0
        %1811 = vdwg.mxu0
        %v1812 = vmax.f32 %v1741, %v1806
        %v1813 = vmax.f32 %v1742, %v1809
        %s1814 = scalar_lea.vmem %s4, 80
        %v1815 = vld [vmem:[%s1814] sm:$0xf]
        %v1816 = vld [vmem:[%s1814 + $0x4] sm:$0xf]
        %v1817 = vld [vmem:[%s1814 + $0x8] sm:$0xf]
        %v1818 = vld [vmem:[%s1814 + $0xc] sm:$0xf]
        %v1823 = vunpack.c.l.b16 %v1815
        %v1824 = vunpack.c.l.b16 %v1816
        %v1825 = vunpack.c.l.b16 %v1817
        %v1826 = vunpack.c.l.b16 %v1818
        %v1827 = vpack.c.b16 %v1824, %v1823
        %v1828 = vpack.c.b16 %v1826, %v1825
        %1831 = vmatprep.subr.bf16.mxu0 0
        %1832 = vmatpush1.bf16.msra.mxu0 %v1827
        %1833 = vmatprep.subr.bf16.mxu0 0
        %1834 = vmatpush1.bf16.msra.mxu0 %v1828
        %1835 = vmatprep.subr.bf16.mxu0 0
        %1836 = vmatpush1.bf16.msra.mxu0 0
        %1837 = vmatprep.subr.bf16.mxu0 0
        %1838 = vmatpush1.bf16.msra.mxu0 0
        %1839 = vmatprep.subr.bf16.mxu0 0
        %1840 = vmatpush1.bf16.msra.mxu0 0
        %1841 = vmatprep.subr.bf16.mxu0 0
        %1842 = vmatpush1.bf16.msra.mxu0 0
        %1843 = vmatprep.subr.bf16.mxu0 0
        %1844 = vmatpush1.bf16.msra.mxu0 0
        %1845 = vmatprep.subr.bf16.mxu0 0
        %1846 = vmatpush1.bf16.msra.mxu0 0
        %1847 = vmatprep.subr.bf16.mxu0 0
        %1848 = vmatpush1.bf16.msra.mxu0 0
        %1849 = vmatprep.subr.bf16.mxu0 0
        %1850 = vmatpush1.bf16.msra.mxu0 0
        %1851 = vmatprep.subr.bf16.mxu0 0
        %1852 = vmatpush1.bf16.msra.mxu0 0
        %1853 = vmatprep.subr.bf16.mxu0 0
        %1854 = vmatpush1.bf16.msra.mxu0 0
        %1855 = vmatprep.subr.bf16.mxu0 0
        %1856 = vmatpush1.bf16.msra.mxu0 0
        %1857 = vmatprep.subr.bf16.mxu0 0
        %1858 = vmatpush1.bf16.msra.mxu0 0
        %1859 = vmatprep.subr.bf16.mxu0 0
        %1860 = vmatpush1.bf16.msra.mxu0 0
        %1861 = vmatprep.subr.bf16.mxu0 0
        %1862 = vmatpush1.bf16.msra.mxu0 0
        %1863 = vmatprep.mubr.bf16.mxu0 0
        %1864 = vmatmul.mubr.bf16.gmra.mrb[0].mxu0 %v452
        %v1865 = vpop.f32.mrb[0].mxu0
        %v1866 = vadd.f32 0.0, %v1865
        %v1867 = vpop.f32.mrb[0].mxu0
        %v1868 = vpop.f32.mrb[0].mxu0
        %v1869 = vadd.f32 0.0, %v1868
        %v1870 = vpop.f32.mrb[0].mxu0
        %1871 = vdwg.mxu0
        %v1872 = vadd.f32 %v1812, %v1866
        %v1873 = vadd.f32 %v1813, %v1869
        %v1874 = vld [vmem:[%s5 + $0x3] sm:$0x1]
        %v1875 = vlaneseq
        %v1876 = vshrl.u32 %v1875, 7
        %v1877 = vsub.s32 0, %v1876
        %v1878 = vrot.slane %v1874, %v1877
        %v1879 = vadd.f32 %v1872, %v1878
        %v1880 = vadd.f32 %v1873, %v1878
        %vm1881 = vcmp.ge.f32.partialorder %v1879, 0.0
        %vm1882 = vcmp.ge.f32.partialorder %v1880, 0.0
        %v1883 = vmul.f32 %v1879, 0.2
        %v1884 = vmul.f32 %v1880, 0.2
        %v1885 = vsel %vm1881, %v1879, %v1883
        %v1886 = vsel %vm1882, %v1880, %v1884
        %s1887 = scalar_lea.vmem %s4, 96
        %v1888 = vld [vmem:[%s1887] sm:$0xf]
        %v1889 = vld [vmem:[%s1887 + $0x4] sm:$0xf]
        %v1890 = vld [vmem:[%s1887 + $0x8] sm:$0xf]
        %v1891 = vld [vmem:[%s1887 + $0xc] sm:$0xf]
        %v1892 = vpack.c.bf16 %v1183, %v1180
        %v1897 = vunpack.c.l.b16 %v1888
        %v1898 = vunpack.c.l.b16 %v1889
        %v1899 = vunpack.c.l.b16 %v1890
        %v1900 = vunpack.c.l.b16 %v1891
        %v1901 = vpack.c.b16 %v1898, %v1897
        %v1902 = vpack.c.b16 %v1900, %v1899
        %v1906 = vsel %vm394, %v1892, 0
        %1908 = vmatprep.subr.bf16.mxu0 0
        %1909 = vmatpush1.bf16.msra.mxu0 %v1901
        %1910 = vmatprep.subr.bf16.mxu0 0
        %1911 = vmatpush1.bf16.msra.mxu0 %v1902
        %1912 = vmatprep.subr.bf16.mxu0 0
        %1913 = vmatpush1.bf16.msra.mxu0 0
        %1914 = vmatprep.subr.bf16.mxu0 0
        %1915 = vmatpush1.bf16.msra.mxu0 0
        %1916 = vmatprep.subr.bf16.mxu0 0
        %1917 = vmatpush1.bf16.msra.mxu0 0
        %1918 = vmatprep.subr.bf16.mxu0 0
        %1919 = vmatpush1.bf16.msra.mxu0 0
        %1920 = vmatprep.subr.bf16.mxu0 0
        %1921 = vmatpush1.bf16.msra.mxu0 0
        %1922 = vmatprep.subr.bf16.mxu0 0
        %1923 = vmatpush1.bf16.msra.mxu0 0
        %1924 = vmatprep.subr.bf16.mxu0 0
        %1925 = vmatpush1.bf16.msra.mxu0 0
        %1926 = vmatprep.subr.bf16.mxu0 0
        %1927 = vmatpush1.bf16.msra.mxu0 0
        %1928 = vmatprep.subr.bf16.mxu0 0
        %1929 = vmatpush1.bf16.msra.mxu0 0
        %1930 = vmatprep.subr.bf16.mxu0 0
        %1931 = vmatpush1.bf16.msra.mxu0 0
        %1932 = vmatprep.subr.bf16.mxu0 0
        %1933 = vmatpush1.bf16.msra.mxu0 0
        %1934 = vmatprep.subr.bf16.mxu0 0
        %1935 = vmatpush1.bf16.msra.mxu0 0
        %1936 = vmatprep.subr.bf16.mxu0 0
        %1937 = vmatpush1.bf16.msra.mxu0 0
        %1938 = vmatprep.subr.bf16.mxu0 0
        %1939 = vmatpush1.bf16.msra.mxu0 0
        %1940 = vmatprep.mubr.bf16.mxu0 0
        %1941 = vmatmul.mubr.bf16.gmra.mrb[0].mxu0 %v1906
        %v1942 = vpop.f32.mrb[0].mxu0
        %v1943 = vadd.f32 0.0, %v1942
        %v1944 = vpop.f32.mrb[0].mxu0
        %v1945 = vpop.f32.mrb[0].mxu0
        %v1946 = vadd.f32 0.0, %v1945
        %v1947 = vpop.f32.mrb[0].mxu0
        %1948 = vdwg.mxu0
        %v1949 = vadd.f32 %v386, %v1943
        %v1950 = vadd.f32 %v387, %v1946
        %s1951 = scalar_lea.vmem %s4, 112
        %v1952 = vld [vmem:[%s1951] sm:$0xf]
        %v1953 = vld [vmem:[%s1951 + $0x4] sm:$0xf]
        %v1954 = vld [vmem:[%s1951 + $0x8] sm:$0xf]
        %v1955 = vld [vmem:[%s1951 + $0xc] sm:$0xf]
        %v1956 = vpack.c.bf16 %v1886, %v1885
        %v1961 = vunpack.c.l.b16 %v1952
        %v1962 = vunpack.c.l.b16 %v1953
        %v1963 = vunpack.c.l.b16 %v1954
        %v1964 = vunpack.c.l.b16 %v1955
        %v1965 = vpack.c.b16 %v1962, %v1961
        %v1966 = vpack.c.b16 %v1964, %v1963
        %v1970 = vsel %vm394, %v1956, 0
        %1972 = vmatprep.subr.bf16.mxu0 0
        %1973 = vmatpush1.bf16.msra.mxu0 %v1965
        %1974 = vmatprep.subr.bf16.mxu0 0
        %1975 = vmatpush1.bf16.msra.mxu0 %v1966
        %1976 = vmatprep.subr.bf16.mxu0 0
        %1977 = vmatpush1.bf16.msra.mxu0 0
        %1978 = vmatprep.subr.bf16.mxu0 0
        %1979 = vmatpush1.bf16.msra.mxu0 0
        %1980 = vmatprep.subr.bf16.mxu0 0
        %1981 = vmatpush1.bf16.msra.mxu0 0
        %1982 = vmatprep.subr.bf16.mxu0 0
        %1983 = vmatpush1.bf16.msra.mxu0 0
        %1984 = vmatprep.subr.bf16.mxu0 0
        %1985 = vmatpush1.bf16.msra.mxu0 0
        %1986 = vmatprep.subr.bf16.mxu0 0
        %1987 = vmatpush1.bf16.msra.mxu0 0
        %1988 = vmatprep.subr.bf16.mxu0 0
        %1989 = vmatpush1.bf16.msra.mxu0 0
        %1990 = vmatprep.subr.bf16.mxu0 0
        %1991 = vmatpush1.bf16.msra.mxu0 0
        %1992 = vmatprep.subr.bf16.mxu0 0
        %1993 = vmatpush1.bf16.msra.mxu0 0
        %1994 = vmatprep.subr.bf16.mxu0 0
        %1995 = vmatpush1.bf16.msra.mxu0 0
        %1996 = vmatprep.subr.bf16.mxu0 0
        %1997 = vmatpush1.bf16.msra.mxu0 0
        %1998 = vmatprep.subr.bf16.mxu0 0
        %1999 = vmatpush1.bf16.msra.mxu0 0
        %2000 = vmatprep.subr.bf16.mxu0 0
        %2001 = vmatpush1.bf16.msra.mxu0 0
        %2002 = vmatprep.subr.bf16.mxu0 0
        %2003 = vmatpush1.bf16.msra.mxu0 0
        %2004 = vmatprep.mubr.bf16.mxu0 0
        %2005 = vmatmul.mubr.bf16.gmra.mrb[0].mxu0 %v1970
        %v2006 = vpop.f32.mrb[0].mxu0
        %v2007 = vadd.f32 0.0, %v2006
        %v2008 = vpop.f32.mrb[0].mxu0
        %v2009 = vpop.f32.mrb[0].mxu0
        %v2010 = vadd.f32 0.0, %v2009
        %v2011 = vpop.f32.mrb[0].mxu0
        %2012 = vdwg.mxu0
        %v2013 = vadd.f32 %v1949, %v2007
        %v2014 = vadd.f32 %v1950, %v2010
        %v2015 = vld [vmem:[%s5 + $0x4] sm:$0x1]
        %v2016 = vlaneseq
        %v2017 = vshrl.u32 %v2016, 7
        %v2018 = vsub.s32 0, %v2017
        %v2019 = vrot.slane %v2015, %v2018
        %v2020 = vadd.f32 %v2013, %v2019
        %v2021 = vadd.f32 %v2014, %v2019
        %v2022 = vld [vmem:[%s5 + $0x5] sm:$0x1]
        %v2023 = vld [vmem:[%s5 + $0x6] sm:$0x1]
        %v2024 = vsel %vm394, %v2020, 0.0
        %2025 = vadd.xlane.f32.xlu0 %v2024
        %v2026 = vpop.xlane.xlu0 %2025
        %v2027 = vsel %vm394, %v2021, 0.0
        %2028 = vadd.xlane.f32.xlu0 %v2027
        %v2029 = vpop.xlane.xlu0 %2028
        %v2030 = vmul.f32 %v2026, %v401
        %v2031 = vmul.f32 %v2029, %v401
        %v2032 = vsub.f32 %v2020, %v2030
        %v2033 = vsub.f32 %v2021, %v2031
        %v2034 = vmul.f32 %v2032, %v2032
        %v2035 = vmul.f32 %v2033, %v2033
        %v2036 = vsel %vm394, %v2034, 0.0
        %2037 = vadd.xlane.f32.xlu0 %v2036
        %v2038 = vpop.xlane.xlu0 %2037
        %v2039 = vsel %vm394, %v2035, 0.0
        %2040 = vadd.xlane.f32.xlu0 %v2039
        %v2041 = vpop.xlane.xlu0 %2040
        %v2042 = vmul.f32 %v2038, %v401
        %v2043 = vmul.f32 %v2041, %v401
        %v2044 = vadd.f32 %v2042, 1e-05
        %v2045 = vadd.f32 %v2043, 1e-05
        %v2046 = vrsqrt.pop %v2044
        %v2047 = vrsqrt.pop %v2045
        %v2048 = vmul.f32 %v2032, %v2046
        %v2049 = vmul.f32 %v2033, %v2047
        %v2050 = vlaneseq
        %v2051 = vshrl.u32 %v2050, 7
        %v2052 = vsub.s32 0, %v2051
        %v2053 = vrot.slane %v2022, %v2052
        %v2054 = vmul.f32 %v2048, %v2053
        %v2055 = vmul.f32 %v2049, %v2053
        %v2056 = vlaneseq
        %v2057 = vshrl.u32 %v2056, 7
        %v2058 = vsub.s32 0, %v2057
        %v2059 = vrot.slane %v2023, %v2058
        %v2060 = vadd.f32 %v2054, %v2059
        %v2061 = vadd.f32 %v2055, %v2059
        %v2062 = vpack.c.bf16 %v2061, %v2060
        %v2063 = vld [vmem:[%s5 + $0x7] sm:$0x1]
        %v2064 = vld [vmem:[%s5 + $0x8] sm:$0x1]
        %v2065 = vsel %vm394, %v388, 0.0
        %2066 = vadd.xlane.f32.xlu0 %v2065
        %v2067 = vpop.xlane.xlu0 %2066
        %v2068 = vsel %vm394, %v389, 0.0
        %2069 = vadd.xlane.f32.xlu0 %v2068
        %v2070 = vpop.xlane.xlu0 %2069
        %v2071 = vmul.f32 %v2067, %v401
        %v2072 = vmul.f32 %v2070, %v401
        %v2073 = vsub.f32 %v388, %v2071
        %v2074 = vsub.f32 %v389, %v2072
        %v2075 = vmul.f32 %v2073, %v2073
        %v2076 = vmul.f32 %v2074, %v2074
        %v2077 = vsel %vm394, %v2075, 0.0
        %2078 = vadd.xlane.f32.xlu0 %v2077
        %v2079 = vpop.xlane.xlu0 %2078
        %v2080 = vsel %vm394, %v2076, 0.0
        %2081 = vadd.xlane.f32.xlu0 %v2080
        %v2082 = vpop.xlane.xlu0 %2081
        %v2083 = vmul.f32 %v2079, %v401
        %v2084 = vmul.f32 %v2082, %v401
        %v2085 = vadd.f32 %v2083, 1e-05
        %v2086 = vadd.f32 %v2084, 1e-05
        %v2087 = vrsqrt.pop %v2085
        %v2088 = vrsqrt.pop %v2086
        %v2089 = vmul.f32 %v2073, %v2087
        %v2090 = vmul.f32 %v2074, %v2088
        %v2091 = vlaneseq
        %v2092 = vshrl.u32 %v2091, 7
        %v2093 = vsub.s32 0, %v2092
        %v2094 = vrot.slane %v2063, %v2093
        %v2095 = vmul.f32 %v2089, %v2094
        %v2096 = vmul.f32 %v2090, %v2094
        %v2097 = vlaneseq
        %v2098 = vshrl.u32 %v2097, 7
        %v2099 = vsub.s32 0, %v2098
        %v2100 = vrot.slane %v2064, %v2099
        %v2101 = vadd.f32 %v2095, %v2100
        %v2102 = vadd.f32 %v2096, %v2100
        %v2103 = vpack.c.bf16 %v2102, %v2101
        %s2104 = scalar_lea.vmem %s4, 128
        %v2105 = vld [vmem:[%s2104] sm:$0xf]
        %v2106 = vld [vmem:[%s2104 + $0x4] sm:$0xf]
        %v2107 = vld [vmem:[%s2104 + $0x8] sm:$0xf]
        %v2108 = vld [vmem:[%s2104 + $0xc] sm:$0xf]
        %v2113 = vunpack.c.l.b16 %v2105
        %v2114 = vunpack.c.l.b16 %v2106
        %v2115 = vunpack.c.l.b16 %v2107
        %v2116 = vunpack.c.l.b16 %v2108
        %v2117 = vpack.c.b16 %v2114, %v2113
        %v2118 = vpack.c.b16 %v2116, %v2115
        %v2122 = vsel %vm394, %v2062, 0
        %2124 = vmatprep.subr.bf16.mxu0 0
        %2125 = vmatpush1.bf16.msra.mxu0 %v2117
        %2126 = vmatprep.subr.bf16.mxu0 0
        %2127 = vmatpush1.bf16.msra.mxu0 %v2118
        %2128 = vmatprep.subr.bf16.mxu0 0
        %2129 = vmatpush1.bf16.msra.mxu0 0
        %2130 = vmatprep.subr.bf16.mxu0 0
        %2131 = vmatpush1.bf16.msra.mxu0 0
        %2132 = vmatprep.subr.bf16.mxu0 0
        %2133 = vmatpush1.bf16.msra.mxu0 0
        %2134 = vmatprep.subr.bf16.mxu0 0
        %2135 = vmatpush1.bf16.msra.mxu0 0
        %2136 = vmatprep.subr.bf16.mxu0 0
        %2137 = vmatpush1.bf16.msra.mxu0 0
        %2138 = vmatprep.subr.bf16.mxu0 0
        %2139 = vmatpush1.bf16.msra.mxu0 0
        %2140 = vmatprep.subr.bf16.mxu0 0
        %2141 = vmatpush1.bf16.msra.mxu0 0
        %2142 = vmatprep.subr.bf16.mxu0 0
        %2143 = vmatpush1.bf16.msra.mxu0 0
        %2144 = vmatprep.subr.bf16.mxu0 0
        %2145 = vmatpush1.bf16.msra.mxu0 0
        %2146 = vmatprep.subr.bf16.mxu0 0
        %2147 = vmatpush1.bf16.msra.mxu0 0
        %2148 = vmatprep.subr.bf16.mxu0 0
        %2149 = vmatpush1.bf16.msra.mxu0 0
        %2150 = vmatprep.subr.bf16.mxu0 0
        %2151 = vmatpush1.bf16.msra.mxu0 0
        %2152 = vmatprep.subr.bf16.mxu0 0
        %2153 = vmatpush1.bf16.msra.mxu0 0
        %2154 = vmatprep.subr.bf16.mxu0 0
        %2155 = vmatpush1.bf16.msra.mxu0 0
        %2156 = vmatprep.mubr.bf16.mxu0 0
        %2157 = vmatmul.mubr.bf16.gmra.mrb[0].mxu0 %v2122
        %v2158 = vpop.f32.mrb[0].mxu0
        %v2159 = vadd.f32 0.0, %v2158
        %v2160 = vpop.f32.mrb[0].mxu0
        %v2161 = vpop.f32.mrb[0].mxu0
        %v2162 = vadd.f32 0.0, %v2161
        %v2163 = vpop.f32.mrb[0].mxu0
        %2164 = vdwg.mxu0
        %v2165 = vpack.c.bf16 %v2162, %v2159
        %s2166 = scalar_lea.vmem %s4, 144
        %v2167 = vld [vmem:[%s2166] sm:$0xf]
        %v2168 = vld [vmem:[%s2166 + $0x4] sm:$0xf]
        %v2169 = vld [vmem:[%s2166 + $0x8] sm:$0xf]
        %v2170 = vld [vmem:[%s2166 + $0xc] sm:$0xf]
        %v2175 = vunpack.c.l.b16 %v2167
        %v2176 = vunpack.c.l.b16 %v2168
        %v2177 = vunpack.c.l.b16 %v2169
        %v2178 = vunpack.c.l.b16 %v2170
        %v2179 = vpack.c.b16 %v2176, %v2175
        %v2180 = vpack.c.b16 %v2178, %v2177
        %v2184 = vsel %vm394, %v2103, 0
        %2186 = vmatprep.subr.bf16.mxu0 0
        %2187 = vmatpush1.bf16.msra.mxu0 %v2179
        %2188 = vmatprep.subr.bf16.mxu0 0
        %2189 = vmatpush1.bf16.msra.mxu0 %v2180
        %2190 = vmatprep.subr.bf16.mxu0 0
        %2191 = vmatpush1.bf16.msra.mxu0 0
        %2192 = vmatprep.subr.bf16.mxu0 0
        %2193 = vmatpush1.bf16.msra.mxu0 0
        %2194 = vmatprep.subr.bf16.mxu0 0
        %2195 = vmatpush1.bf16.msra.mxu0 0
        %2196 = vmatprep.subr.bf16.mxu0 0
        %2197 = vmatpush1.bf16.msra.mxu0 0
        %2198 = vmatprep.subr.bf16.mxu0 0
        %2199 = vmatpush1.bf16.msra.mxu0 0
        %2200 = vmatprep.subr.bf16.mxu0 0
        %2201 = vmatpush1.bf16.msra.mxu0 0
        %2202 = vmatprep.subr.bf16.mxu0 0
        %2203 = vmatpush1.bf16.msra.mxu0 0
        %2204 = vmatprep.subr.bf16.mxu0 0
        %2205 = vmatpush1.bf16.msra.mxu0 0
        %2206 = vmatprep.subr.bf16.mxu0 0
        %2207 = vmatpush1.bf16.msra.mxu0 0
        %2208 = vmatprep.subr.bf16.mxu0 0
        %2209 = vmatpush1.bf16.msra.mxu0 0
        %2210 = vmatprep.subr.bf16.mxu0 0
        %2211 = vmatpush1.bf16.msra.mxu0 0
        %2212 = vmatprep.subr.bf16.mxu0 0
        %2213 = vmatpush1.bf16.msra.mxu0 0
        %2214 = vmatprep.subr.bf16.mxu0 0
        %2215 = vmatpush1.bf16.msra.mxu0 0
        %2216 = vmatprep.subr.bf16.mxu0 0
        %2217 = vmatpush1.bf16.msra.mxu0 0
        %2218 = vmatprep.mubr.bf16.mxu0 0
        %2219 = vmatmul.mubr.bf16.gmra.mrb[0].mxu0 %v2184
        %v2220 = vpop.f32.mrb[0].mxu0
        %v2221 = vadd.f32 0.0, %v2220
        %v2222 = vpop.f32.mrb[0].mxu0
        %v2223 = vpop.f32.mrb[0].mxu0
        %v2224 = vadd.f32 0.0, %v2223
        %v2225 = vpop.f32.mrb[0].mxu0
        %2226 = vdwg.mxu0
        %v2227 = vpack.c.bf16 %v2224, %v2221
        %s2228 = scalar_lea.vmem %s4, 160
        %v2229 = vld [vmem:[%s2228] sm:$0xf]
        %v2230 = vld [vmem:[%s2228 + $0x4] sm:$0xf]
        %v2231 = vld [vmem:[%s2228 + $0x8] sm:$0xf]
        %v2232 = vld [vmem:[%s2228 + $0xc] sm:$0xf]
        %v2237 = vunpack.c.l.b16 %v2229
        %v2238 = vunpack.c.l.b16 %v2230
        %v2239 = vunpack.c.l.b16 %v2231
        %v2240 = vunpack.c.l.b16 %v2232
        %v2241 = vpack.c.b16 %v2238, %v2237
        %v2242 = vpack.c.b16 %v2240, %v2239
        %2245 = vmatprep.subr.bf16.mxu0 0
        %2246 = vmatpush1.bf16.msra.mxu0 %v2241
        %2247 = vmatprep.subr.bf16.mxu0 0
        %2248 = vmatpush1.bf16.msra.mxu0 %v2242
        %2249 = vmatprep.subr.bf16.mxu0 0
        %2250 = vmatpush1.bf16.msra.mxu0 0
        %2251 = vmatprep.subr.bf16.mxu0 0
        %2252 = vmatpush1.bf16.msra.mxu0 0
        %2253 = vmatprep.subr.bf16.mxu0 0
        %2254 = vmatpush1.bf16.msra.mxu0 0
        %2255 = vmatprep.subr.bf16.mxu0 0
        %2256 = vmatpush1.bf16.msra.mxu0 0
        %2257 = vmatprep.subr.bf16.mxu0 0
        %2258 = vmatpush1.bf16.msra.mxu0 0
        %2259 = vmatprep.subr.bf16.mxu0 0
        %2260 = vmatpush1.bf16.msra.mxu0 0
        %2261 = vmatprep.subr.bf16.mxu0 0
        %2262 = vmatpush1.bf16.msra.mxu0 0
        %2263 = vmatprep.subr.bf16.mxu0 0
        %2264 = vmatpush1.bf16.msra.mxu0 0
        %2265 = vmatprep.subr.bf16.mxu0 0
        %2266 = vmatpush1.bf16.msra.mxu0 0
        %2267 = vmatprep.subr.bf16.mxu0 0
        %2268 = vmatpush1.bf16.msra.mxu0 0
        %2269 = vmatprep.subr.bf16.mxu0 0
        %2270 = vmatpush1.bf16.msra.mxu0 0
        %2271 = vmatprep.subr.bf16.mxu0 0
        %2272 = vmatpush1.bf16.msra.mxu0 0
        %2273 = vmatprep.subr.bf16.mxu0 0
        %2274 = vmatpush1.bf16.msra.mxu0 0
        %2275 = vmatprep.subr.bf16.mxu0 0
        %2276 = vmatpush1.bf16.msra.mxu0 0
        %2277 = vmatprep.mubr.bf16.mxu0 0
        %2278 = vmatmul.mubr.bf16.gmra.mrb[0].mxu0 %v2184
        %v2279 = vpop.f32.mrb[0].mxu0
        %v2280 = vadd.f32 0.0, %v2279
        %v2281 = vpop.f32.mrb[0].mxu0
        %v2282 = vpop.f32.mrb[0].mxu0
        %v2283 = vadd.f32 0.0, %v2282
        %v2284 = vpop.f32.mrb[0].mxu0
        %2285 = vdwg.mxu0
        %v2286 = vpack.c.bf16 %v2283, %v2280
        %s2287 = scalar_lea.vmem %s4, 176
        %v2288 = vld [vmem:[%s2287] sm:$0xf]
        %v2289 = vld [vmem:[%s2287 + $0x4] sm:$0xf]
        %v2290 = vld [vmem:[%s2287 + $0x8] sm:$0xf]
        %v2291 = vld [vmem:[%s2287 + $0xc] sm:$0xf]
        %v2292 = vld [vmem:[%s5 + $0x9] sm:$0x1]
        %v2294 = vsel %vm620, %v2165, 0
        %v2297 = vsel %vm620, %v2227, 0
        %2299 = vmatprep.subr.bf16.mxu0 0
        %2300 = vmatpush1.bf16.xpose.msra.mxu0 %v2297
        %2301 = vmatprep.subr.bf16.mxu0 0
        %2302 = vmatpush1.bf16.xpose.msra.mxu0 0
        %2303 = vmatprep.subr.bf16.mxu0 0
        %2304 = vmatpush1.bf16.xpose.msra.mxu0 0
        %2305 = vmatprep.subr.bf16.mxu0 0
        %2306 = vmatpush1.bf16.xpose.msra.mxu0 0
        %2307 = vmatprep.subr.bf16.mxu0 0
        %2308 = vmatpush1.bf16.xpose.msra.mxu0 0
        %2309 = vmatprep.subr.bf16.mxu0 0
        %2310 = vmatpush1.bf16.xpose.msra.mxu0 0
        %2311 = vmatprep.subr.bf16.mxu0 0
        %2312 = vmatpush1.bf16.xpose.msra.mxu0 0
        %2313 = vmatprep.subr.bf16.mxu0 0
        %2314 = vmatpush1.bf16.xpose.msra.mxu0 0
        %2315 = vmatprep.subr.bf16.mxu0 0
        %2316 = vmatpush1.bf16.xpose.msra.mxu0 0
        %2317 = vmatprep.subr.bf16.mxu0 0
        %2318 = vmatpush1.bf16.xpose.msra.mxu0 0
        %2319 = vmatprep.subr.bf16.mxu0 0
        %2320 = vmatpush1.bf16.xpose.msra.mxu0 0
        %2321 = vmatprep.subr.bf16.mxu0 0
        %2322 = vmatpush1.bf16.xpose.msra.mxu0 0
        %2323 = vmatprep.subr.bf16.mxu0 0
        %2324 = vmatpush1.bf16.xpose.msra.mxu0 0
        %2325 = vmatprep.subr.bf16.mxu0 0
        %2326 = vmatpush1.bf16.xpose.msra.mxu0 0
        %2327 = vmatprep.subr.bf16.mxu0 0
        %2328 = vmatpush1.bf16.xpose.msra.mxu0 0
        %2329 = vmatprep.subr.bf16.mxu0 0
        %2330 = vmatpush1.bf16.xpose.msra.mxu0 0
        %2331 = vmatprep.mubr.bf16.mxu0 0
        %2332 = vmatmul.mubr.bf16.gmra.mrb[0].mxu0 %v2294
        %v2333 = vpop.f32.mrb[0].mxu0
        %v2334 = vadd.f32 0.0, %v2333
        %v2335 = vpop.f32.mrb[0].mxu0
        %v2336 = vpop.f32.mrb[0].mxu0
        %v2337 = vadd.f32 0.0, %v2336
        %v2338 = vpop.f32.mrb[0].mxu0
        %2339 = vdwg.mxu0
        %v2340 = vsel %vm668, %v2334, -inf
        %2341 = vmax.xlane.f32.xlu0 %v2340
        %v2342 = vpop.xlane.xlu0 %2341
        %v2343 = vsel %vm668, %v2337, -inf
        %2344 = vmax.xlane.f32.xlu0 %v2343
        %v2345 = vpop.xlane.xlu0 %2344
        %v2346 = vsub.f32 %v2334, %v2342
        %v2347 = vsub.f32 %v2337, %v2345
        %v2348 = vmul.f32 %v2346, 1.442695
        %v2349 = vpow.pop %v2348
        %v2350 = vmul.f32 %v2347, 1.442695
        %v2351 = vpow.pop %v2350
        %v2352 = vsel %vm668, %v2349, 0.0
        %2353 = vadd.xlane.f32.xlu0 %v2352
        %v2354 = vpop.xlane.xlu0 %2353
        %v2355 = vsel %vm668, %v2351, 0.0
        %2356 = vadd.xlane.f32.xlu0 %v2355
        %v2357 = vpop.xlane.xlu0 %2356
        %v2358 = vrcp.pop %v2354
        %v2359 = vmul.f32 %v2349, %v2358
        %v2360 = vrcp.pop %v2357
        %v2361 = vmul.f32 %v2351, %v2360
        %v2362 = vpack.c.bf16 %v2361, %v2359
        %v2364 = vsel %vm668, %v2362, 0
        %2366 = vmatprep.subr.bf16.mxu0 0
        %2367 = vmatpush1.bf16.msra.mxu0 %v2286
        %2368 = vmatprep.subr.bf16.mxu0 0
        %2369 = vmatpush1.bf16.msra.mxu0 0
        %2370 = vmatprep.subr.bf16.mxu0 0
        %2371 = vmatpush1.bf16.msra.mxu0 0
        %2372 = vmatprep.subr.bf16.mxu0 0
        %2373 = vmatpush1.bf16.msra.mxu0 0
        %2374 = vmatprep.subr.bf16.mxu0 0
        %2375 = vmatpush1.bf16.msra.mxu0 0
        %2376 = vmatprep.subr.bf16.mxu0 0
        %2377 = vmatpush1.bf16.msra.mxu0 0
        %2378 = vmatprep.subr.bf16.mxu0 0
        %2379 = vmatpush1.bf16.msra.mxu0 0
        %2380 = vmatprep.subr.bf16.mxu0 0
        %2381 = vmatpush1.bf16.msra.mxu0 0
        %2382 = vmatprep.subr.bf16.mxu0 0
        %2383 = vmatpush1.bf16.msra.mxu0 0
        %2384 = vmatprep.subr.bf16.mxu0 0
        %2385 = vmatpush1.bf16.msra.mxu0 0
        %2386 = vmatprep.subr.bf16.mxu0 0
        %2387 = vmatpush1.bf16.msra.mxu0 0
        %2388 = vmatprep.subr.bf16.mxu0 0
        %2389 = vmatpush1.bf16.msra.mxu0 0
        %2390 = vmatprep.subr.bf16.mxu0 0
        %2391 = vmatpush1.bf16.msra.mxu0 0
        %2392 = vmatprep.subr.bf16.mxu0 0
        %2393 = vmatpush1.bf16.msra.mxu0 0
        %2394 = vmatprep.subr.bf16.mxu0 0
        %2395 = vmatpush1.bf16.msra.mxu0 0
        %2396 = vmatprep.subr.bf16.mxu0 0
        %2397 = vmatpush1.bf16.msra.mxu0 0
        %2398 = vmatprep.mubr.bf16.mxu0 0
        %2399 = vmatmul.mubr.bf16.gmra.mrb[0].mxu0 %v2364
        %v2400 = vpop.f32.mrb[0].mxu0
        %v2401 = vadd.f32 0.0, %v2400
        %v2402 = vpop.f32.mrb[0].mxu0
        %v2403 = vpop.f32.mrb[0].mxu0
        %v2404 = vadd.f32 0.0, %v2403
        %v2405 = vpop.f32.mrb[0].mxu0
        %2406 = vdwg.mxu0
        %v2407 = vpack.c.bf16 %v2404, %v2401
        %2408 = vst.msk [vmem:[#allocation2] sm:$0xff] %vm620, %v2407
        %2410 = vrot.lane.b32.xlu0 %v2165, 120
        %v2411 = vpop.permute.xlu0 %2410
        %2413 = vrot.lane.b32.xlu0 %v2227, 120
        %v2414 = vpop.permute.xlu0 %2413
        %v2416 = vsel %vm620, %v2411, 0
        %v2419 = vsel %vm620, %v2414, 0
        %2421 = vmatprep.subr.bf16.mxu0 0
        %2422 = vmatpush1.bf16.xpose.msra.mxu0 %v2419
        %2423 = vmatprep.subr.bf16.mxu0 0
        %2424 = vmatpush1.bf16.xpose.msra.mxu0 0
        %2425 = vmatprep.subr.bf16.mxu0 0
        %2426 = vmatpush1.bf16.xpose.msra.mxu0 0
        %2427 = vmatprep.subr.bf16.mxu0 0
        %2428 = vmatpush1.bf16.xpose.msra.mxu0 0
        %2429 = vmatprep.subr.bf16.mxu0 0
        %2430 = vmatpush1.bf16.xpose.msra.mxu0 0
        %2431 = vmatprep.subr.bf16.mxu0 0
        %2432 = vmatpush1.bf16.xpose.msra.mxu0 0
        %2433 = vmatprep.subr.bf16.mxu0 0
        %2434 = vmatpush1.bf16.xpose.msra.mxu0 0
        %2435 = vmatprep.subr.bf16.mxu0 0
        %2436 = vmatpush1.bf16.xpose.msra.mxu0 0
        %2437 = vmatprep.subr.bf16.mxu0 0
        %2438 = vmatpush1.bf16.xpose.msra.mxu0 0
        %2439 = vmatprep.subr.bf16.mxu0 0
        %2440 = vmatpush1.bf16.xpose.msra.mxu0 0
        %2441 = vmatprep.subr.bf16.mxu0 0
        %2442 = vmatpush1.bf16.xpose.msra.mxu0 0
        %2443 = vmatprep.subr.bf16.mxu0 0
        %2444 = vmatpush1.bf16.xpose.msra.mxu0 0
        %2445 = vmatprep.subr.bf16.mxu0 0
        %2446 = vmatpush1.bf16.xpose.msra.mxu0 0
        %2447 = vmatprep.subr.bf16.mxu0 0
        %2448 = vmatpush1.bf16.xpose.msra.mxu0 0
        %2449 = vmatprep.subr.bf16.mxu0 0
        %2450 = vmatpush1.bf16.xpose.msra.mxu0 0
        %2451 = vmatprep.subr.bf16.mxu0 0
        %2452 = vmatpush1.bf16.xpose.msra.mxu0 0
        %2453 = vmatprep.mubr.bf16.mxu0 0
        %2454 = vmatmul.mubr.bf16.gmra.mrb[0].mxu0 %v2416
        %v2455 = vpop.f32.mrb[0].mxu0
        %v2456 = vadd.f32 0.0, %v2455
        %v2457 = vpop.f32.mrb[0].mxu0
        %v2458 = vpop.f32.mrb[0].mxu0
        %v2459 = vadd.f32 0.0, %v2458
        %v2460 = vpop.f32.mrb[0].mxu0
        %2461 = vdwg.mxu0
        %v2462 = vsel %vm668, %v2456, -inf
        %2463 = vmax.xlane.f32.xlu0 %v2462
        %v2464 = vpop.xlane.xlu0 %2463
        %v2465 = vsel %vm668, %v2459, -inf
        %2466 = vmax.xlane.f32.xlu0 %v2465
        %v2467 = vpop.xlane.xlu0 %2466
        %v2468 = vsub.f32 %v2456, %v2464
        %v2469 = vsub.f32 %v2459, %v2467
        %v2470 = vmul.f32 %v2468, 1.442695
        %v2471 = vpow.pop %v2470
        %v2472 = vmul.f32 %v2469, 1.442695
        %v2473 = vpow.pop %v2472
        %v2474 = vsel %vm668, %v2471, 0.0
        %2475 = vadd.xlane.f32.xlu0 %v2474
        %v2476 = vpop.xlane.xlu0 %2475
        %v2477 = vsel %vm668, %v2473, 0.0
        %2478 = vadd.xlane.f32.xlu0 %v2477
        %v2479 = vpop.xlane.xlu0 %2478
        %v2480 = vrcp.pop %v2476
        %v2481 = vmul.f32 %v2471, %v2480
        %v2482 = vrcp.pop %v2479
        %v2483 = vmul.f32 %v2473, %v2482
        %v2484 = vpack.c.bf16 %v2483, %v2481
        %2486 = vrot.lane.b32.xlu0 %v2286, 120
        %v2487 = vpop.permute.xlu0 %2486
        %v2490 = vsel %vm668, %v2484, 0
        %2492 = vmatprep.subr.bf16.mxu0 0
        %2493 = vmatpush1.bf16.msra.mxu0 %v2487
        %2494 = vmatprep.subr.bf16.mxu0 0
        %2495 = vmatpush1.bf16.msra.mxu0 0
        %2496 = vmatprep.subr.bf16.mxu0 0
        %2497 = vmatpush1.bf16.msra.mxu0 0
        %2498 = vmatprep.subr.bf16.mxu0 0
        %2499 = vmatpush1.bf16.msra.mxu0 0
        %2500 = vmatprep.subr.bf16.mxu0 0
        %2501 = vmatpush1.bf16.msra.mxu0 0
        %2502 = vmatprep.subr.bf16.mxu0 0
        %2503 = vmatpush1.bf16.msra.mxu0 0
        %2504 = vmatprep.subr.bf16.mxu0 0
        %2505 = vmatpush1.bf16.msra.mxu0 0
        %2506 = vmatprep.subr.bf16.mxu0 0
        %2507 = vmatpush1.bf16.msra.mxu0 0
        %2508 = vmatprep.subr.bf16.mxu0 0
        %2509 = vmatpush1.bf16.msra.mxu0 0
        %2510 = vmatprep.subr.bf16.mxu0 0
        %2511 = vmatpush1.bf16.msra.mxu0 0
        %2512 = vmatprep.subr.bf16.mxu0 0
        %2513 = vmatpush1.bf16.msra.mxu0 0
        %2514 = vmatprep.subr.bf16.mxu0 0
        %2515 = vmatpush1.bf16.msra.mxu0 0
        %2516 = vmatprep.subr.bf16.mxu0 0
        %2517 = vmatpush1.bf16.msra.mxu0 0
        %2518 = vmatprep.subr.bf16.mxu0 0
        %2519 = vmatpush1.bf16.msra.mxu0 0
        %2520 = vmatprep.subr.bf16.mxu0 0
        %2521 = vmatpush1.bf16.msra.mxu0 0
        %2522 = vmatprep.subr.bf16.mxu0 0
        %2523 = vmatpush1.bf16.msra.mxu0 0
        %2524 = vmatprep.mubr.bf16.mxu0 0
        %2525 = vmatmul.mubr.bf16.gmra.mrb[0].mxu0 %v2490
        %v2526 = vpop.f32.mrb[0].mxu0
        %v2527 = vadd.f32 0.0, %v2526
        %v2528 = vpop.f32.mrb[0].mxu0
        %v2529 = vpop.f32.mrb[0].mxu0
        %v2530 = vadd.f32 0.0, %v2529
        %v2531 = vpop.f32.mrb[0].mxu0
        %2532 = vdwg.mxu0
        %v2533 = vpack.c.bf16 %v2530, %v2527
        %2535 = vrot.lane.b32.xlu0 %v2533, 8
        %v2536 = vpop.permute.xlu0 %2535
        %2538 = vst.msk [vmem:[#allocation2] sm:$0xff] %vm867, %v2536
        %2539 = vrot.lane.b32.xlu0 %v2165, 112
        %v2540 = vpop.permute.xlu0 %2539
        %2541 = vrot.lane.b32.xlu0 %v2227, 112
        %v2542 = vpop.permute.xlu0 %2541
        %v2544 = vsel %vm620, %v2540, 0
        %v2547 = vsel %vm620, %v2542, 0
        %2549 = vmatprep.subr.bf16.mxu0 0
        %2550 = vmatpush1.bf16.xpose.msra.mxu0 %v2547
        %2551 = vmatprep.subr.bf16.mxu0 0
        %2552 = vmatpush1.bf16.xpose.msra.mxu0 0
        %2553 = vmatprep.subr.bf16.mxu0 0
        %2554 = vmatpush1.bf16.xpose.msra.mxu0 0
        %2555 = vmatprep.subr.bf16.mxu0 0
        %2556 = vmatpush1.bf16.xpose.msra.mxu0 0
        %2557 = vmatprep.subr.bf16.mxu0 0
        %2558 = vmatpush1.bf16.xpose.msra.mxu0 0
        %2559 = vmatprep.subr.bf16.mxu0 0
        %2560 = vmatpush1.bf16.xpose.msra.mxu0 0
        %2561 = vmatprep.subr.bf16.mxu0 0
        %2562 = vmatpush1.bf16.xpose.msra.mxu0 0
        %2563 = vmatprep.subr.bf16.mxu0 0
        %2564 = vmatpush1.bf16.xpose.msra.mxu0 0
        %2565 = vmatprep.subr.bf16.mxu0 0
        %2566 = vmatpush1.bf16.xpose.msra.mxu0 0
        %2567 = vmatprep.subr.bf16.mxu0 0
        %2568 = vmatpush1.bf16.xpose.msra.mxu0 0
        %2569 = vmatprep.subr.bf16.mxu0 0
        %2570 = vmatpush1.bf16.xpose.msra.mxu0 0
        %2571 = vmatprep.subr.bf16.mxu0 0
        %2572 = vmatpush1.bf16.xpose.msra.mxu0 0
        %2573 = vmatprep.subr.bf16.mxu0 0
        %2574 = vmatpush1.bf16.xpose.msra.mxu0 0
        %2575 = vmatprep.subr.bf16.mxu0 0
        %2576 = vmatpush1.bf16.xpose.msra.mxu0 0
        %2577 = vmatprep.subr.bf16.mxu0 0
        %2578 = vmatpush1.bf16.xpose.msra.mxu0 0
        %2579 = vmatprep.subr.bf16.mxu0 0
        %2580 = vmatpush1.bf16.xpose.msra.mxu0 0
        %2581 = vmatprep.mubr.bf16.mxu0 0
        %2582 = vmatmul.mubr.bf16.gmra.mrb[0].mxu0 %v2544
        %v2583 = vpop.f32.mrb[0].mxu0
        %v2584 = vadd.f32 0.0, %v2583
        %v2585 = vpop.f32.mrb[0].mxu0
        %v2586 = vpop.f32.mrb[0].mxu0
        %v2587 = vadd.f32 0.0, %v2586
        %v2588 = vpop.f32.mrb[0].mxu0
        %2589 = vdwg.mxu0
        %v2590 = vsel %vm668, %v2584, -inf
        %2591 = vmax.xlane.f32.xlu0 %v2590
        %v2592 = vpop.xlane.xlu0 %2591
        %v2593 = vsel %vm668, %v2587, -inf
        %2594 = vmax.xlane.f32.xlu0 %v2593
        %v2595 = vpop.xlane.xlu0 %2594
        %v2596 = vsub.f32 %v2584, %v2592
        %v2597 = vsub.f32 %v2587, %v2595
        %v2598 = vmul.f32 %v2596, 1.442695
        %v2599 = vpow.pop %v2598
        %v2600 = vmul.f32 %v2597, 1.442695
        %v2601 = vpow.pop %v2600
        %v2602 = vsel %vm668, %v2599, 0.0
        %2603 = vadd.xlane.f32.xlu0 %v2602
        %v2604 = vpop.xlane.xlu0 %2603
        %v2605 = vsel %vm668, %v2601, 0.0
        %2606 = vadd.xlane.f32.xlu0 %v2605
        %v2607 = vpop.xlane.xlu0 %2606
        %v2608 = vrcp.pop %v2604
        %v2609 = vmul.f32 %v2599, %v2608
        %v2610 = vrcp.pop %v2607
        %v2611 = vmul.f32 %v2601, %v2610
        %v2612 = vpack.c.bf16 %v2611, %v2609
        %2613 = vrot.lane.b32.xlu0 %v2286, 112
        %v2614 = vpop.permute.xlu0 %2613
        %v2617 = vsel %vm668, %v2612, 0
        %2619 = vmatprep.subr.bf16.mxu0 0
        %2620 = vmatpush1.bf16.msra.mxu0 %v2614
        %2621 = vmatprep.subr.bf16.mxu0 0
        %2622 = vmatpush1.bf16.msra.mxu0 0
        %2623 = vmatprep.subr.bf16.mxu0 0
        %2624 = vmatpush1.bf16.msra.mxu0 0
        %2625 = vmatprep.subr.bf16.mxu0 0
        %2626 = vmatpush1.bf16.msra.mxu0 0
        %2627 = vmatprep.subr.bf16.mxu0 0
        %2628 = vmatpush1.bf16.msra.mxu0 0
        %2629 = vmatprep.subr.bf16.mxu0 0
        %2630 = vmatpush1.bf16.msra.mxu0 0
        %2631 = vmatprep.subr.bf16.mxu0 0
        %2632 = vmatpush1.bf16.msra.mxu0 0
        %2633 = vmatprep.subr.bf16.mxu0 0
        %2634 = vmatpush1.bf16.msra.mxu0 0
        %2635 = vmatprep.subr.bf16.mxu0 0
        %2636 = vmatpush1.bf16.msra.mxu0 0
        %2637 = vmatprep.subr.bf16.mxu0 0
        %2638 = vmatpush1.bf16.msra.mxu0 0
        %2639 = vmatprep.subr.bf16.mxu0 0
        %2640 = vmatpush1.bf16.msra.mxu0 0
        %2641 = vmatprep.subr.bf16.mxu0 0
        %2642 = vmatpush1.bf16.msra.mxu0 0
        %2643 = vmatprep.subr.bf16.mxu0 0
        %2644 = vmatpush1.bf16.msra.mxu0 0
        %2645 = vmatprep.subr.bf16.mxu0 0
        %2646 = vmatpush1.bf16.msra.mxu0 0
        %2647 = vmatprep.subr.bf16.mxu0 0
        %2648 = vmatpush1.bf16.msra.mxu0 0
        %2649 = vmatprep.subr.bf16.mxu0 0
        %2650 = vmatpush1.bf16.msra.mxu0 0
        %2651 = vmatprep.mubr.bf16.mxu0 0
        %2652 = vmatmul.mubr.bf16.gmra.mrb[0].mxu0 %v2617
        %v2653 = vpop.f32.mrb[0].mxu0
        %v2654 = vadd.f32 0.0, %v2653
        %v2655 = vpop.f32.mrb[0].mxu0
        %v2656 = vpop.f32.mrb[0].mxu0
        %v2657 = vadd.f32 0.0, %v2656
        %v2658 = vpop.f32.mrb[0].mxu0
        %2659 = vdwg.mxu0
        %v2660 = vpack.c.bf16 %v2657, %v2654
        %2662 = vrot.lane.b32.xlu0 %v2660, 16
        %v2663 = vpop.permute.xlu0 %2662
        %2665 = vst.msk [vmem:[#allocation2] sm:$0xff] %vm995, %v2663
        %2666 = vrot.lane.b32.xlu0 %v2165, 104
        %v2667 = vpop.permute.xlu0 %2666
        %2668 = vrot.lane.b32.xlu0 %v2227, 104
        %v2669 = vpop.permute.xlu0 %2668
        %v2671 = vsel %vm620, %v2667, 0
        %v2674 = vsel %vm620, %v2669, 0
        %2676 = vmatprep.subr.bf16.mxu0 0
        %2677 = vmatpush1.bf16.xpose.msra.mxu0 %v2674
        %2678 = vmatprep.subr.bf16.mxu0 0
        %2679 = vmatpush1.bf16.xpose.msra.mxu0 0
        %2680 = vmatprep.subr.bf16.mxu0 0
        %2681 = vmatpush1.bf16.xpose.msra.mxu0 0
        %2682 = vmatprep.subr.bf16.mxu0 0
        %2683 = vmatpush1.bf16.xpose.msra.mxu0 0
        %2684 = vmatprep.subr.bf16.mxu0 0
        %2685 = vmatpush1.bf16.xpose.msra.mxu0 0
        %2686 = vmatprep.subr.bf16.mxu0 0
        %2687 = vmatpush1.bf16.xpose.msra.mxu0 0
        %2688 = vmatprep.subr.bf16.mxu0 0
        %2689 = vmatpush1.bf16.xpose.msra.mxu0 0
        %2690 = vmatprep.subr.bf16.mxu0 0
        %2691 = vmatpush1.bf16.xpose.msra.mxu0 0
        %2692 = vmatprep.subr.bf16.mxu0 0
        %2693 = vmatpush1.bf16.xpose.msra.mxu0 0
        %2694 = vmatprep.subr.bf16.mxu0 0
        %2695 = vmatpush1.bf16.xpose.msra.mxu0 0
        %2696 = vmatprep.subr.bf16.mxu0 0
        %2697 = vmatpush1.bf16.xpose.msra.mxu0 0
        %2698 = vmatprep.subr.bf16.mxu0 0
        %2699 = vmatpush1.bf16.xpose.msra.mxu0 0
        %2700 = vmatprep.subr.bf16.mxu0 0
        %2701 = vmatpush1.bf16.xpose.msra.mxu0 0
        %2702 = vmatprep.subr.bf16.mxu0 0
        %2703 = vmatpush1.bf16.xpose.msra.mxu0 0
        %2704 = vmatprep.subr.bf16.mxu0 0
        %2705 = vmatpush1.bf16.xpose.msra.mxu0 0
        %2706 = vmatprep.subr.bf16.mxu0 0
        %2707 = vmatpush1.bf16.xpose.msra.mxu0 0
        %2708 = vmatprep.mubr.bf16.mxu0 0
        %2709 = vmatmul.mubr.bf16.gmra.mrb[0].mxu0 %v2671
        %v2710 = vpop.f32.mrb[0].mxu0
        %v2711 = vadd.f32 0.0, %v2710
        %v2712 = vpop.f32.mrb[0].mxu0
        %v2713 = vpop.f32.mrb[0].mxu0
        %v2714 = vadd.f32 0.0, %v2713
        %v2715 = vpop.f32.mrb[0].mxu0
        %2716 = vdwg.mxu0
        %v2717 = vsel %vm668, %v2711, -inf
        %2718 = vmax.xlane.f32.xlu0 %v2717
        %v2719 = vpop.xlane.xlu0 %2718
        %v2720 = vsel %vm668, %v2714, -inf
        %2721 = vmax.xlane.f32.xlu0 %v2720
        %v2722 = vpop.xlane.xlu0 %2721
        %v2723 = vsub.f32 %v2711, %v2719
        %v2724 = vsub.f32 %v2714, %v2722
        %v2725 = vmul.f32 %v2723, 1.442695
        %v2726 = vpow.pop %v2725
        %v2727 = vmul.f32 %v2724, 1.442695
        %v2728 = vpow.pop %v2727
        %v2729 = vsel %vm668, %v2726, 0.0
        %2730 = vadd.xlane.f32.xlu0 %v2729
        %v2731 = vpop.xlane.xlu0 %2730
        %v2732 = vsel %vm668, %v2728, 0.0
        %2733 = vadd.xlane.f32.xlu0 %v2732
        %v2734 = vpop.xlane.xlu0 %2733
        %v2735 = vrcp.pop %v2731
        %v2736 = vmul.f32 %v2726, %v2735
        %v2737 = vrcp.pop %v2734
        %v2738 = vmul.f32 %v2728, %v2737
        %v2739 = vpack.c.bf16 %v2738, %v2736
        %2740 = vrot.lane.b32.xlu0 %v2286, 104
        %v2741 = vpop.permute.xlu0 %2740
        %v2744 = vsel %vm668, %v2739, 0
        %2746 = vmatprep.subr.bf16.mxu0 0
        %2747 = vmatpush1.bf16.msra.mxu0 %v2741
        %2748 = vmatprep.subr.bf16.mxu0 0
        %2749 = vmatpush1.bf16.msra.mxu0 0
        %2750 = vmatprep.subr.bf16.mxu0 0
        %2751 = vmatpush1.bf16.msra.mxu0 0
        %2752 = vmatprep.subr.bf16.mxu0 0
        %2753 = vmatpush1.bf16.msra.mxu0 0
        %2754 = vmatprep.subr.bf16.mxu0 0
        %2755 = vmatpush1.bf16.msra.mxu0 0
        %2756 = vmatprep.subr.bf16.mxu0 0
        %2757 = vmatpush1.bf16.msra.mxu0 0
        %2758 = vmatprep.subr.bf16.mxu0 0
        %2759 = vmatpush1.bf16.msra.mxu0 0
        %2760 = vmatprep.subr.bf16.mxu0 0
        %2761 = vmatpush1.bf16.msra.mxu0 0
        %2762 = vmatprep.subr.bf16.mxu0 0
        %2763 = vmatpush1.bf16.msra.mxu0 0
        %2764 = vmatprep.subr.bf16.mxu0 0
        %2765 = vmatpush1.bf16.msra.mxu0 0
        %2766 = vmatprep.subr.bf16.mxu0 0
        %2767 = vmatpush1.bf16.msra.mxu0 0
        %2768 = vmatprep.subr.bf16.mxu0 0
        %2769 = vmatpush1.bf16.msra.mxu0 0
        %2770 = vmatprep.subr.bf16.mxu0 0
        %2771 = vmatpush1.bf16.msra.mxu0 0
        %2772 = vmatprep.subr.bf16.mxu0 0
        %2773 = vmatpush1.bf16.msra.mxu0 0
        %2774 = vmatprep.subr.bf16.mxu0 0
        %2775 = vmatpush1.bf16.msra.mxu0 0
        %2776 = vmatprep.subr.bf16.mxu0 0
        %2777 = vmatpush1.bf16.msra.mxu0 0
        %2778 = vmatprep.mubr.bf16.mxu0 0
        %2779 = vmatmul.mubr.bf16.gmra.mrb[0].mxu0 %v2744
        %v2780 = vpop.f32.mrb[0].mxu0
        %v2781 = vadd.f32 0.0, %v2780
        %v2782 = vpop.f32.mrb[0].mxu0
        %v2783 = vpop.f32.mrb[0].mxu0
        %v2784 = vadd.f32 0.0, %v2783
        %v2785 = vpop.f32.mrb[0].mxu0
        %2786 = vdwg.mxu0
        %v2787 = vpack.c.bf16 %v2784, %v2781
        %2789 = vrot.lane.b32.xlu0 %v2787, 24
        %v2790 = vpop.permute.xlu0 %2789
        %2792 = vst.msk [vmem:[#allocation2] sm:$0xff] %vm1123, %v2790
        %v2793 = vld [vmem:[#allocation2] sm:$0xff]
        %v2794 = vlaneseq
        %v2795 = vshrl.u32 %v2794, 7
        %v2796 = vsub.s32 0, %v2795
        %v2797 = vrot.slane %v2292, %v2796
        %v2802 = vunpack.c.l.b16 %v2288
        %v2803 = vunpack.c.l.b16 %v2289
        %v2804 = vunpack.c.l.b16 %v2290
        %v2805 = vunpack.c.l.b16 %v2291
        %v2806 = vpack.c.b16 %v2803, %v2802
        %v2807 = vpack.c.b16 %v2805, %v2804
        %v2811 = vsel %vm394, %v2793, 0
        %2813 = vmatprep.subr.bf16.mxu0 0
        %2814 = vmatpush1.bf16.msra.mxu0 %v2806
        %2815 = vmatprep.subr.bf16.mxu0 0
        %2816 = vmatpush1.bf16.msra.mxu0 %v2807
        %2817 = vmatprep.subr.bf16.mxu0 0
        %2818 = vmatpush1.bf16.msra.mxu0 0
        %2819 = vmatprep.subr.bf16.mxu0 0
        %2820 = vmatpush1.bf16.msra.mxu0 0
        %2821 = vmatprep.subr.bf16.mxu0 0
        %2822 = vmatpush1.bf16.msra.mxu0 0
        %2823 = vmatprep.subr.bf16.mxu0 0
        %2824 = vmatpush1.bf16.msra.mxu0 0
        %2825 = vmatprep.subr.bf16.mxu0 0
        %2826 = vmatpush1.bf16.msra.mxu0 0
        %2827 = vmatprep.subr.bf16.mxu0 0
        %2828 = vmatpush1.bf16.msra.mxu0 0
        %2829 = vmatprep.subr.bf16.mxu0 0
        %2830 = vmatpush1.bf16.msra.mxu0 0
        %2831 = vmatprep.subr.bf16.mxu0 0
        %2832 = vmatpush1.bf16.msra.mxu0 0
        %2833 = vmatprep.subr.bf16.mxu0 0
        %2834 = vmatpush1.bf16.msra.mxu0 0
        %2835 = vmatprep.subr.bf16.mxu0 0
        %2836 = vmatpush1.bf16.msra.mxu0 0
        %2837 = vmatprep.subr.bf16.mxu0 0
        %2838 = vmatpush1.bf16.msra.mxu0 0
        %2839 = vmatprep.subr.bf16.mxu0 0
        %2840 = vmatpush1.bf16.msra.mxu0 0
        %2841 = vmatprep.subr.bf16.mxu0 0
        %2842 = vmatpush1.bf16.msra.mxu0 0
        %2843 = vmatprep.subr.bf16.mxu0 0
        %2844 = vmatpush1.bf16.msra.mxu0 0
        %2845 = vmatprep.mubr.bf16.mxu0 0
        %2846 = vmatmul.mubr.bf16.gmra.mrb[0].mxu0 %v2811
        %v2847 = vpop.f32.mrb[0].mxu0
        %v2848 = vadd.f32 %v2797, %v2847
        %v2849 = vpop.f32.mrb[0].mxu0
        %v2850 = vpop.f32.mrb[0].mxu0
        %v2851 = vadd.f32 %v2797, %v2850
        %v2852 = vpop.f32.mrb[0].mxu0
        %2853 = vdwg.mxu0
        %s2854 = scalar_lea.vmem %s4, 192
        %v2855 = vld [vmem:[%s2854] sm:$0xf]
        %v2856 = vld [vmem:[%s2854 + $0x4] sm:$0xf]
        %v2857 = vld [vmem:[%s2854 + $0x8] sm:$0xf]
        %v2858 = vld [vmem:[%s2854 + $0xc] sm:$0xf]
        %v2863 = vunpack.c.l.b16 %v2855
        %v2864 = vunpack.c.l.b16 %v2856
        %v2865 = vunpack.c.l.b16 %v2857
        %v2866 = vunpack.c.l.b16 %v2858
        %v2867 = vpack.c.b16 %v2864, %v2863
        %v2868 = vpack.c.b16 %v2866, %v2865
        %2871 = vmatprep.subr.bf16.mxu0 0
        %2872 = vmatpush1.bf16.msra.mxu0 %v2867
        %2873 = vmatprep.subr.bf16.mxu0 0
        %2874 = vmatpush1.bf16.msra.mxu0 %v2868
        %2875 = vmatprep.subr.bf16.mxu0 0
        %2876 = vmatpush1.bf16.msra.mxu0 0
        %2877 = vmatprep.subr.bf16.mxu0 0
        %2878 = vmatpush1.bf16.msra.mxu0 0
        %2879 = vmatprep.subr.bf16.mxu0 0
        %2880 = vmatpush1.bf16.msra.mxu0 0
        %2881 = vmatprep.subr.bf16.mxu0 0
        %2882 = vmatpush1.bf16.msra.mxu0 0
        %2883 = vmatprep.subr.bf16.mxu0 0
        %2884 = vmatpush1.bf16.msra.mxu0 0
        %2885 = vmatprep.subr.bf16.mxu0 0
        %2886 = vmatpush1.bf16.msra.mxu0 0
        %2887 = vmatprep.subr.bf16.mxu0 0
        %2888 = vmatpush1.bf16.msra.mxu0 0
        %2889 = vmatprep.subr.bf16.mxu0 0
        %2890 = vmatpush1.bf16.msra.mxu0 0
        %2891 = vmatprep.subr.bf16.mxu0 0
        %2892 = vmatpush1.bf16.msra.mxu0 0
        %2893 = vmatprep.subr.bf16.mxu0 0
        %2894 = vmatpush1.bf16.msra.mxu0 0
        %2895 = vmatprep.subr.bf16.mxu0 0
        %2896 = vmatpush1.bf16.msra.mxu0 0
        %2897 = vmatprep.subr.bf16.mxu0 0
        %2898 = vmatpush1.bf16.msra.mxu0 0
        %2899 = vmatprep.subr.bf16.mxu0 0
        %2900 = vmatpush1.bf16.msra.mxu0 0
        %2901 = vmatprep.subr.bf16.mxu0 0
        %2902 = vmatpush1.bf16.msra.mxu0 0
        %2903 = vmatprep.mubr.bf16.mxu0 0
        %2904 = vmatmul.mubr.bf16.gmra.mrb[0].mxu0 %v2184
        %v2905 = vpop.f32.mrb[0].mxu0
        %v2906 = vadd.f32 0.0, %v2905
        %v2907 = vpop.f32.mrb[0].mxu0
        %v2908 = vpop.f32.mrb[0].mxu0
        %v2909 = vadd.f32 0.0, %v2908
        %v2910 = vpop.f32.mrb[0].mxu0
        %2911 = vdwg.mxu0
        %v2912 = vpack.c.bf16 %v2909, %v2906
        %v2913 = vlaneseq
        %v2914 = vshrl.u32 %v2913, 7
        %v2915 = vsub.s32 0, %v2914
        %v2916 = vrot.slane %v391, %v2915
        %vm2917 = vcmp.eq.s32.totalorder %v2916, %v1246
        %vm2918 = vcmp.eq.s32.totalorder %v2916, %v1247
        %v2919 = vsel %vm2917, 1.0, 0.0
        %v2920 = vsel %vm2918, 1.0, 0.0
        %v2921 = vpack.c.bf16 %v2920, %v2919
        %2922 = vxpose.xlu0.c.b16.start [1/8] %v2921, 128
        %2923 = vxpose.xlu0.c.b16.cont [2/8] 0, 128
        %2924 = vxpose.xlu0.c.b16.cont [3/8] 0, 128
        %2925 = vxpose.xlu0.c.b16.cont [4/8] 0, 128
        %2926 = vxpose.xlu0.c.b16.cont [5/8] 0, 128
        %2927 = vxpose.xlu0.c.b16.cont [6/8] 0, 128
        %2928 = vxpose.xlu0.c.b16.cont [7/8] 0, 128
        %2929 = vxpose.xlu0.c.b16.end [8/8] 0, 128
        %v2930 = vpop.trf.xlu0
        %v2931 = vpop.trf.xlu0
        %v2932 = vpop.trf.xlu0
        %v2933 = vpop.trf.xlu0
        %v2934 = vpop.trf.xlu0
        %v2935 = vpop.trf.xlu0
        %v2936 = vpop.trf.xlu0
        %v2937 = vpop.trf.xlu0
        %v2939 = vsel %vm668, %v2930, 0
        %2941 = vmatprep.subr.bf16.mxu0 0
        %2942 = vmatpush1.bf16.msra.mxu0 %v2912
        %2943 = vmatprep.subr.bf16.mxu0 0
        %2944 = vmatpush1.bf16.msra.mxu0 0
        %2945 = vmatprep.subr.bf16.mxu0 0
        %2946 = vmatpush1.bf16.msra.mxu0 0
        %2947 = vmatprep.subr.bf16.mxu0 0
        %2948 = vmatpush1.bf16.msra.mxu0 0
        %2949 = vmatprep.subr.bf16.mxu0 0
        %2950 = vmatpush1.bf16.msra.mxu0 0
        %2951 = vmatprep.subr.bf16.mxu0 0
        %2952 = vmatpush1.bf16.msra.mxu0 0
        %2953 = vmatprep.subr.bf16.mxu0 0
        %2954 = vmatpush1.bf16.msra.mxu0 0
        %2955 = vmatprep.subr.bf16.mxu0 0
        %2956 = vmatpush1.bf16.msra.mxu0 0
        %2957 = vmatprep.subr.bf16.mxu0 0
        %2958 = vmatpush1.bf16.msra.mxu0 0
        %2959 = vmatprep.subr.bf16.mxu0 0
        %2960 = vmatpush1.bf16.msra.mxu0 0
        %2961 = vmatprep.subr.bf16.mxu0 0
        %2962 = vmatpush1.bf16.msra.mxu0 0
        %2963 = vmatprep.subr.bf16.mxu0 0
        %2964 = vmatpush1.bf16.msra.mxu0 0
        %2965 = vmatprep.subr.bf16.mxu0 0
        %2966 = vmatpush1.bf16.msra.mxu0 0
        %2967 = vmatprep.subr.bf16.mxu0 0
        %2968 = vmatpush1.bf16.msra.mxu0 0
        %2969 = vmatprep.subr.bf16.mxu0 0
        %2970 = vmatpush1.bf16.msra.mxu0 0
        %2971 = vmatprep.subr.bf16.mxu0 0
        %2972 = vmatpush1.bf16.msra.mxu0 0
        %2973 = vmatprep.mubr.bf16.mxu0 0
        %2974 = vmatmul.mubr.bf16.gmra.mrb[0].mxu0 %v2939
        %v2975 = vpop.f32.mrb[0].mxu0
        %v2976 = vadd.f32 0.0, %v2975
        %v2977 = vpop.f32.mrb[0].mxu0
        %v2978 = vpop.f32.mrb[0].mxu0
        %v2979 = vadd.f32 0.0, %v2978
        %v2980 = vpop.f32.mrb[0].mxu0
        %2981 = vdwg.mxu0
        %v2982 = vlaneseq
        %v2983 = vshrl.u32 %v2982, 7
        %v2984 = vsub.s32 1, %v2983
        %v2985 = vrot.slane %v391, %v2984
        %vm2986 = vcmp.eq.s32.totalorder %v2985, %v1246
        %vm2987 = vcmp.eq.s32.totalorder %v2985, %v1247
        %v2988 = vsel %vm2986, 1.0, 0.0
        %v2989 = vsel %vm2987, 1.0, 0.0
        %v2990 = vpack.c.bf16 %v2989, %v2988
        %2991 = vxpose.xlu0.c.b16.start [1/8] %v2990, 128
        %2992 = vxpose.xlu0.c.b16.cont [2/8] 0, 128
        %2993 = vxpose.xlu0.c.b16.cont [3/8] 0, 128
        %2994 = vxpose.xlu0.c.b16.cont [4/8] 0, 128
        %2995 = vxpose.xlu0.c.b16.cont [5/8] 0, 128
        %2996 = vxpose.xlu0.c.b16.cont [6/8] 0, 128
        %2997 = vxpose.xlu0.c.b16.cont [7/8] 0, 128
        %2998 = vxpose.xlu0.c.b16.end [8/8] 0, 128
        %v2999 = vpop.trf.xlu0
        %v3000 = vpop.trf.xlu0
        %v3001 = vpop.trf.xlu0
        %v3002 = vpop.trf.xlu0
        %v3003 = vpop.trf.xlu0
        %v3004 = vpop.trf.xlu0
        %v3005 = vpop.trf.xlu0
        %v3006 = vpop.trf.xlu0
        %v3008 = vsel %vm668, %v2999, 0
        %3010 = vmatprep.subr.bf16.mxu0 0
        %3011 = vmatpush1.bf16.msra.mxu0 %v2912
        %3012 = vmatprep.subr.bf16.mxu0 0
        %3013 = vmatpush1.bf16.msra.mxu0 0
        %3014 = vmatprep.subr.bf16.mxu0 0
        %3015 = vmatpush1.bf16.msra.mxu0 0
        %3016 = vmatprep.subr.bf16.mxu0 0
        %3017 = vmatpush1.bf16.msra.mxu0 0
        %3018 = vmatprep.subr.bf16.mxu0 0
        %3019 = vmatpush1.bf16.msra.mxu0 0
        %3020 = vmatprep.subr.bf16.mxu0 0
        %3021 = vmatpush1.bf16.msra.mxu0 0
        %3022 = vmatprep.subr.bf16.mxu0 0
        %3023 = vmatpush1.bf16.msra.mxu0 0
        %3024 = vmatprep.subr.bf16.mxu0 0
        %3025 = vmatpush1.bf16.msra.mxu0 0
        %3026 = vmatprep.subr.bf16.mxu0 0
        %3027 = vmatpush1.bf16.msra.mxu0 0
        %3028 = vmatprep.subr.bf16.mxu0 0
        %3029 = vmatpush1.bf16.msra.mxu0 0
        %3030 = vmatprep.subr.bf16.mxu0 0
        %3031 = vmatpush1.bf16.msra.mxu0 0
        %3032 = vmatprep.subr.bf16.mxu0 0
        %3033 = vmatpush1.bf16.msra.mxu0 0
        %3034 = vmatprep.subr.bf16.mxu0 0
        %3035 = vmatpush1.bf16.msra.mxu0 0
        %3036 = vmatprep.subr.bf16.mxu0 0
        %3037 = vmatpush1.bf16.msra.mxu0 0
        %3038 = vmatprep.subr.bf16.mxu0 0
        %3039 = vmatpush1.bf16.msra.mxu0 0
        %3040 = vmatprep.subr.bf16.mxu0 0
        %3041 = vmatpush1.bf16.msra.mxu0 0
        %3042 = vmatprep.mubr.bf16.mxu0 0
        %3043 = vmatmul.mubr.bf16.gmra.mrb[0].mxu0 %v3008
        %v3044 = vpop.f32.mrb[0].mxu0
        %v3045 = vadd.f32 0.0, %v3044
        %v3046 = vpop.f32.mrb[0].mxu0
        %v3047 = vpop.f32.mrb[0].mxu0
        %v3048 = vadd.f32 0.0, %v3047
        %v3049 = vpop.f32.mrb[0].mxu0
        %3050 = vdwg.mxu0
        %v3051 = vmax.f32 %v2976, %v3045
        %v3052 = vmax.f32 %v2979, %v3048
        %v3053 = vlaneseq
        %v3054 = vshrl.u32 %v3053, 7
        %v3055 = vsub.s32 2, %v3054
        %v3056 = vrot.slane %v391, %v3055
        %vm3057 = vcmp.eq.s32.totalorder %v3056, %v1246
        %vm3058 = vcmp.eq.s32.totalorder %v3056, %v1247
        %v3059 = vsel %vm3057, 1.0, 0.0
        %v3060 = vsel %vm3058, 1.0, 0.0
        %v3061 = vpack.c.bf16 %v3060, %v3059
        %3062 = vxpose.xlu0.c.b16.start [1/8] %v3061, 128
        %3063 = vxpose.xlu0.c.b16.cont [2/8] 0, 128
        %3064 = vxpose.xlu0.c.b16.cont [3/8] 0, 128
        %3065 = vxpose.xlu0.c.b16.cont [4/8] 0, 128
        %3066 = vxpose.xlu0.c.b16.cont [5/8] 0, 128
        %3067 = vxpose.xlu0.c.b16.cont [6/8] 0, 128
        %3068 = vxpose.xlu0.c.b16.cont [7/8] 0, 128
        %3069 = vxpose.xlu0.c.b16.end [8/8] 0, 128
        %v3070 = vpop.trf.xlu0
        %v3071 = vpop.trf.xlu0
        %v3072 = vpop.trf.xlu0
        %v3073 = vpop.trf.xlu0
        %v3074 = vpop.trf.xlu0
        %v3075 = vpop.trf.xlu0
        %v3076 = vpop.trf.xlu0
        %v3077 = vpop.trf.xlu0
        %v3079 = vsel %vm668, %v3070, 0
        %3081 = vmatprep.subr.bf16.mxu0 0
        %3082 = vmatpush1.bf16.msra.mxu0 %v2912
        %3083 = vmatprep.subr.bf16.mxu0 0
        %3084 = vmatpush1.bf16.msra.mxu0 0
        %3085 = vmatprep.subr.bf16.mxu0 0
        %3086 = vmatpush1.bf16.msra.mxu0 0
        %3087 = vmatprep.subr.bf16.mxu0 0
        %3088 = vmatpush1.bf16.msra.mxu0 0
        %3089 = vmatprep.subr.bf16.mxu0 0
        %3090 = vmatpush1.bf16.msra.mxu0 0
        %3091 = vmatprep.subr.bf16.mxu0 0
        %3092 = vmatpush1.bf16.msra.mxu0 0
        %3093 = vmatprep.subr.bf16.mxu0 0
        %3094 = vmatpush1.bf16.msra.mxu0 0
        %3095 = vmatprep.subr.bf16.mxu0 0
        %3096 = vmatpush1.bf16.msra.mxu0 0
        %3097 = vmatprep.subr.bf16.mxu0 0
        %3098 = vmatpush1.bf16.msra.mxu0 0
        %3099 = vmatprep.subr.bf16.mxu0 0
        %3100 = vmatpush1.bf16.msra.mxu0 0
        %3101 = vmatprep.subr.bf16.mxu0 0
        %3102 = vmatpush1.bf16.msra.mxu0 0
        %3103 = vmatprep.subr.bf16.mxu0 0
        %3104 = vmatpush1.bf16.msra.mxu0 0
        %3105 = vmatprep.subr.bf16.mxu0 0
        %3106 = vmatpush1.bf16.msra.mxu0 0
        %3107 = vmatprep.subr.bf16.mxu0 0
        %3108 = vmatpush1.bf16.msra.mxu0 0
        %3109 = vmatprep.subr.bf16.mxu0 0
        %3110 = vmatpush1.bf16.msra.mxu0 0
        %3111 = vmatprep.subr.bf16.mxu0 0
        %3112 = vmatpush1.bf16.msra.mxu0 0
        %3113 = vmatprep.mubr.bf16.mxu0 0
        %3114 = vmatmul.mubr.bf16.gmra.mrb[0].mxu0 %v3079
        %v3115 = vpop.f32.mrb[0].mxu0
        %v3116 = vadd.f32 0.0, %v3115
        %v3117 = vpop.f32.mrb[0].mxu0
        %v3118 = vpop.f32.mrb[0].mxu0
        %v3119 = vadd.f32 0.0, %v3118
        %v3120 = vpop.f32.mrb[0].mxu0
        %3121 = vdwg.mxu0
        %v3122 = vmax.f32 %v3051, %v3116
        %v3123 = vmax.f32 %v3052, %v3119
        %v3124 = vlaneseq
        %v3125 = vshrl.u32 %v3124, 7
        %v3126 = vsub.s32 3, %v3125
        %v3127 = vrot.slane %v391, %v3126
        %vm3128 = vcmp.eq.s32.totalorder %v3127, %v1246
        %vm3129 = vcmp.eq.s32.totalorder %v3127, %v1247
        %v3130 = vsel %vm3128, 1.0, 0.0
        %v3131 = vsel %vm3129, 1.0, 0.0
        %v3132 = vpack.c.bf16 %v3131, %v3130
        %3133 = vxpose.xlu0.c.b16.start [1/8] %v3132, 128
        %3134 = vxpose.xlu0.c.b16.cont [2/8] 0, 128
        %3135 = vxpose.xlu0.c.b16.cont [3/8] 0, 128
        %3136 = vxpose.xlu0.c.b16.cont [4/8] 0, 128
        %3137 = vxpose.xlu0.c.b16.cont [5/8] 0, 128
        %3138 = vxpose.xlu0.c.b16.cont [6/8] 0, 128
        %3139 = vxpose.xlu0.c.b16.cont [7/8] 0, 128
        %3140 = vxpose.xlu0.c.b16.end [8/8] 0, 128
        %v3141 = vpop.trf.xlu0
        %v3142 = vpop.trf.xlu0
        %v3143 = vpop.trf.xlu0
        %v3144 = vpop.trf.xlu0
        %v3145 = vpop.trf.xlu0
        %v3146 = vpop.trf.xlu0
        %v3147 = vpop.trf.xlu0
        %v3148 = vpop.trf.xlu0
        %v3150 = vsel %vm668, %v3141, 0
        %3152 = vmatprep.subr.bf16.mxu0 0
        %3153 = vmatpush1.bf16.msra.mxu0 %v2912
        %3154 = vmatprep.subr.bf16.mxu0 0
        %3155 = vmatpush1.bf16.msra.mxu0 0
        %3156 = vmatprep.subr.bf16.mxu0 0
        %3157 = vmatpush1.bf16.msra.mxu0 0
        %3158 = vmatprep.subr.bf16.mxu0 0
        %3159 = vmatpush1.bf16.msra.mxu0 0
        %3160 = vmatprep.subr.bf16.mxu0 0
        %3161 = vmatpush1.bf16.msra.mxu0 0
        %3162 = vmatprep.subr.bf16.mxu0 0
        %3163 = vmatpush1.bf16.msra.mxu0 0
        %3164 = vmatprep.subr.bf16.mxu0 0
        %3165 = vmatpush1.bf16.msra.mxu0 0
        %3166 = vmatprep.subr.bf16.mxu0 0
        %3167 = vmatpush1.bf16.msra.mxu0 0
        %3168 = vmatprep.subr.bf16.mxu0 0
        %3169 = vmatpush1.bf16.msra.mxu0 0
        %3170 = vmatprep.subr.bf16.mxu0 0
        %3171 = vmatpush1.bf16.msra.mxu0 0
        %3172 = vmatprep.subr.bf16.mxu0 0
        %3173 = vmatpush1.bf16.msra.mxu0 0
        %3174 = vmatprep.subr.bf16.mxu0 0
        %3175 = vmatpush1.bf16.msra.mxu0 0
        %3176 = vmatprep.subr.bf16.mxu0 0
        %3177 = vmatpush1.bf16.msra.mxu0 0
        %3178 = vmatprep.subr.bf16.mxu0 0
        %3179 = vmatpush1.bf16.msra.mxu0 0
        %3180 = vmatprep.subr.bf16.mxu0 0
        %3181 = vmatpush1.bf16.msra.mxu0 0
        %3182 = vmatprep.subr.bf16.mxu0 0
        %3183 = vmatpush1.bf16.msra.mxu0 0
        %3184 = vmatprep.mubr.bf16.mxu0 0
        %3185 = vmatmul.mubr.bf16.gmra.mrb[0].mxu0 %v3150
        %v3186 = vpop.f32.mrb[0].mxu0
        %v3187 = vadd.f32 0.0, %v3186
        %v3188 = vpop.f32.mrb[0].mxu0
        %v3189 = vpop.f32.mrb[0].mxu0
        %v3190 = vadd.f32 0.0, %v3189
        %v3191 = vpop.f32.mrb[0].mxu0
        %3192 = vdwg.mxu0
        %v3193 = vmax.f32 %v3122, %v3187
        %v3194 = vmax.f32 %v3123, %v3190
        %v3195 = vlaneseq
        %v3196 = vshrl.u32 %v3195, 7
        %v3197 = vsub.s32 4, %v3196
        %v3198 = vrot.slane %v391, %v3197
        %vm3199 = vcmp.eq.s32.totalorder %v3198, %v1246
        %vm3200 = vcmp.eq.s32.totalorder %v3198, %v1247
        %v3201 = vsel %vm3199, 1.0, 0.0
        %v3202 = vsel %vm3200, 1.0, 0.0
        %v3203 = vpack.c.bf16 %v3202, %v3201
        %3204 = vxpose.xlu0.c.b16.start [1/8] %v3203, 128
        %3205 = vxpose.xlu0.c.b16.cont [2/8] 0, 128
        %3206 = vxpose.xlu0.c.b16.cont [3/8] 0, 128
        %3207 = vxpose.xlu0.c.b16.cont [4/8] 0, 128
        %3208 = vxpose.xlu0.c.b16.cont [5/8] 0, 128
        %3209 = vxpose.xlu0.c.b16.cont [6/8] 0, 128
        %3210 = vxpose.xlu0.c.b16.cont [7/8] 0, 128
        %3211 = vxpose.xlu0.c.b16.end [8/8] 0, 128
        %v3212 = vpop.trf.xlu0
        %v3213 = vpop.trf.xlu0
        %v3214 = vpop.trf.xlu0
        %v3215 = vpop.trf.xlu0
        %v3216 = vpop.trf.xlu0
        %v3217 = vpop.trf.xlu0
        %v3218 = vpop.trf.xlu0
        %v3219 = vpop.trf.xlu0
        %v3221 = vsel %vm668, %v3212, 0
        %3223 = vmatprep.subr.bf16.mxu0 0
        %3224 = vmatpush1.bf16.msra.mxu0 %v2912
        %3225 = vmatprep.subr.bf16.mxu0 0
        %3226 = vmatpush1.bf16.msra.mxu0 0
        %3227 = vmatprep.subr.bf16.mxu0 0
        %3228 = vmatpush1.bf16.msra.mxu0 0
        %3229 = vmatprep.subr.bf16.mxu0 0
        %3230 = vmatpush1.bf16.msra.mxu0 0
        %3231 = vmatprep.subr.bf16.mxu0 0
        %3232 = vmatpush1.bf16.msra.mxu0 0
        %3233 = vmatprep.subr.bf16.mxu0 0
        %3234 = vmatpush1.bf16.msra.mxu0 0
        %3235 = vmatprep.subr.bf16.mxu0 0
        %3236 = vmatpush1.bf16.msra.mxu0 0
        %3237 = vmatprep.subr.bf16.mxu0 0
        %3238 = vmatpush1.bf16.msra.mxu0 0
        %3239 = vmatprep.subr.bf16.mxu0 0
        %3240 = vmatpush1.bf16.msra.mxu0 0
        %3241 = vmatprep.subr.bf16.mxu0 0
        %3242 = vmatpush1.bf16.msra.mxu0 0
        %3243 = vmatprep.subr.bf16.mxu0 0
        %3244 = vmatpush1.bf16.msra.mxu0 0
        %3245 = vmatprep.subr.bf16.mxu0 0
        %3246 = vmatpush1.bf16.msra.mxu0 0
        %3247 = vmatprep.subr.bf16.mxu0 0
        %3248 = vmatpush1.bf16.msra.mxu0 0
        %3249 = vmatprep.subr.bf16.mxu0 0
        %3250 = vmatpush1.bf16.msra.mxu0 0
        %3251 = vmatprep.subr.bf16.mxu0 0
        %3252 = vmatpush1.bf16.msra.mxu0 0
        %3253 = vmatprep.subr.bf16.mxu0 0
        %3254 = vmatpush1.bf16.msra.mxu0 0
        %3255 = vmatprep.mubr.bf16.mxu0 0
        %3256 = vmatmul.mubr.bf16.gmra.mrb[0].mxu0 %v3221
        %v3257 = vpop.f32.mrb[0].mxu0
        %v3258 = vadd.f32 0.0, %v3257
        %v3259 = vpop.f32.mrb[0].mxu0
        %v3260 = vpop.f32.mrb[0].mxu0
        %v3261 = vadd.f32 0.0, %v3260
        %v3262 = vpop.f32.mrb[0].mxu0
        %3263 = vdwg.mxu0
        %v3264 = vmax.f32 %v3193, %v3258
        %v3265 = vmax.f32 %v3194, %v3261
        %v3266 = vlaneseq
        %v3267 = vshrl.u32 %v3266, 7
        %v3268 = vsub.s32 5, %v3267
        %v3269 = vrot.slane %v391, %v3268
        %vm3270 = vcmp.eq.s32.totalorder %v3269, %v1246
        %vm3271 = vcmp.eq.s32.totalorder %v3269, %v1247
        %v3272 = vsel %vm3270, 1.0, 0.0
        %v3273 = vsel %vm3271, 1.0, 0.0
        %v3274 = vpack.c.bf16 %v3273, %v3272
        %3275 = vxpose.xlu0.c.b16.start [1/8] %v3274, 128
        %3276 = vxpose.xlu0.c.b16.cont [2/8] 0, 128
        %3277 = vxpose.xlu0.c.b16.cont [3/8] 0, 128
        %3278 = vxpose.xlu0.c.b16.cont [4/8] 0, 128
        %3279 = vxpose.xlu0.c.b16.cont [5/8] 0, 128
        %3280 = vxpose.xlu0.c.b16.cont [6/8] 0, 128
        %3281 = vxpose.xlu0.c.b16.cont [7/8] 0, 128
        %3282 = vxpose.xlu0.c.b16.end [8/8] 0, 128
        %v3283 = vpop.trf.xlu0
        %v3284 = vpop.trf.xlu0
        %v3285 = vpop.trf.xlu0
        %v3286 = vpop.trf.xlu0
        %v3287 = vpop.trf.xlu0
        %v3288 = vpop.trf.xlu0
        %v3289 = vpop.trf.xlu0
        %v3290 = vpop.trf.xlu0
        %v3292 = vsel %vm668, %v3283, 0
        %3294 = vmatprep.subr.bf16.mxu0 0
        %3295 = vmatpush1.bf16.msra.mxu0 %v2912
        %3296 = vmatprep.subr.bf16.mxu0 0
        %3297 = vmatpush1.bf16.msra.mxu0 0
        %3298 = vmatprep.subr.bf16.mxu0 0
        %3299 = vmatpush1.bf16.msra.mxu0 0
        %3300 = vmatprep.subr.bf16.mxu0 0
        %3301 = vmatpush1.bf16.msra.mxu0 0
        %3302 = vmatprep.subr.bf16.mxu0 0
        %3303 = vmatpush1.bf16.msra.mxu0 0
        %3304 = vmatprep.subr.bf16.mxu0 0
        %3305 = vmatpush1.bf16.msra.mxu0 0
        %3306 = vmatprep.subr.bf16.mxu0 0
        %3307 = vmatpush1.bf16.msra.mxu0 0
        %3308 = vmatprep.subr.bf16.mxu0 0
        %3309 = vmatpush1.bf16.msra.mxu0 0
        %3310 = vmatprep.subr.bf16.mxu0 0
        %3311 = vmatpush1.bf16.msra.mxu0 0
        %3312 = vmatprep.subr.bf16.mxu0 0
        %3313 = vmatpush1.bf16.msra.mxu0 0
        %3314 = vmatprep.subr.bf16.mxu0 0
        %3315 = vmatpush1.bf16.msra.mxu0 0
        %3316 = vmatprep.subr.bf16.mxu0 0
        %3317 = vmatpush1.bf16.msra.mxu0 0
        %3318 = vmatprep.subr.bf16.mxu0 0
        %3319 = vmatpush1.bf16.msra.mxu0 0
        %3320 = vmatprep.subr.bf16.mxu0 0
        %3321 = vmatpush1.bf16.msra.mxu0 0
        %3322 = vmatprep.subr.bf16.mxu0 0
        %3323 = vmatpush1.bf16.msra.mxu0 0
        %3324 = vmatprep.subr.bf16.mxu0 0
        %3325 = vmatpush1.bf16.msra.mxu0 0
        %3326 = vmatprep.mubr.bf16.mxu0 0
        %3327 = vmatmul.mubr.bf16.gmra.mrb[0].mxu0 %v3292
        %v3328 = vpop.f32.mrb[0].mxu0
        %v3329 = vadd.f32 0.0, %v3328
        %v3330 = vpop.f32.mrb[0].mxu0
        %v3331 = vpop.f32.mrb[0].mxu0
        %v3332 = vadd.f32 0.0, %v3331
        %v3333 = vpop.f32.mrb[0].mxu0
        %3334 = vdwg.mxu0
        %v3335 = vmax.f32 %v3264, %v3329
        %v3336 = vmax.f32 %v3265, %v3332
        %v3337 = vlaneseq
        %v3338 = vshrl.u32 %v3337, 7
        %v3339 = vsub.s32 6, %v3338
        %v3340 = vrot.slane %v391, %v3339
        %vm3341 = vcmp.eq.s32.totalorder %v3340, %v1246
        %vm3342 = vcmp.eq.s32.totalorder %v3340, %v1247
        %v3343 = vsel %vm3341, 1.0, 0.0
        %v3344 = vsel %vm3342, 1.0, 0.0
        %v3345 = vpack.c.bf16 %v3344, %v3343
        %3346 = vxpose.xlu0.c.b16.start [1/8] %v3345, 128
        %3347 = vxpose.xlu0.c.b16.cont [2/8] 0, 128
        %3348 = vxpose.xlu0.c.b16.cont [3/8] 0, 128
        %3349 = vxpose.xlu0.c.b16.cont [4/8] 0, 128
        %3350 = vxpose.xlu0.c.b16.cont [5/8] 0, 128
        %3351 = vxpose.xlu0.c.b16.cont [6/8] 0, 128
        %3352 = vxpose.xlu0.c.b16.cont [7/8] 0, 128
        %3353 = vxpose.xlu0.c.b16.end [8/8] 0, 128
        %v3354 = vpop.trf.xlu0
        %v3355 = vpop.trf.xlu0
        %v3356 = vpop.trf.xlu0
        %v3357 = vpop.trf.xlu0
        %v3358 = vpop.trf.xlu0
        %v3359 = vpop.trf.xlu0
        %v3360 = vpop.trf.xlu0
        %v3361 = vpop.trf.xlu0
        %v3363 = vsel %vm668, %v3354, 0
        %3365 = vmatprep.subr.bf16.mxu0 0
        %3366 = vmatpush1.bf16.msra.mxu0 %v2912
        %3367 = vmatprep.subr.bf16.mxu0 0
        %3368 = vmatpush1.bf16.msra.mxu0 0
        %3369 = vmatprep.subr.bf16.mxu0 0
        %3370 = vmatpush1.bf16.msra.mxu0 0
        %3371 = vmatprep.subr.bf16.mxu0 0
        %3372 = vmatpush1.bf16.msra.mxu0 0
        %3373 = vmatprep.subr.bf16.mxu0 0
        %3374 = vmatpush1.bf16.msra.mxu0 0
        %3375 = vmatprep.subr.bf16.mxu0 0
        %3376 = vmatpush1.bf16.msra.mxu0 0
        %3377 = vmatprep.subr.bf16.mxu0 0
        %3378 = vmatpush1.bf16.msra.mxu0 0
        %3379 = vmatprep.subr.bf16.mxu0 0
        %3380 = vmatpush1.bf16.msra.mxu0 0
        %3381 = vmatprep.subr.bf16.mxu0 0
        %3382 = vmatpush1.bf16.msra.mxu0 0
        %3383 = vmatprep.subr.bf16.mxu0 0
        %3384 = vmatpush1.bf16.msra.mxu0 0
        %3385 = vmatprep.subr.bf16.mxu0 0
        %3386 = vmatpush1.bf16.msra.mxu0 0
        %3387 = vmatprep.subr.bf16.mxu0 0
        %3388 = vmatpush1.bf16.msra.mxu0 0
        %3389 = vmatprep.subr.bf16.mxu0 0
        %3390 = vmatpush1.bf16.msra.mxu0 0
        %3391 = vmatprep.subr.bf16.mxu0 0
        %3392 = vmatpush1.bf16.msra.mxu0 0
        %3393 = vmatprep.subr.bf16.mxu0 0
        %3394 = vmatpush1.bf16.msra.mxu0 0
        %3395 = vmatprep.subr.bf16.mxu0 0
        %3396 = vmatpush1.bf16.msra.mxu0 0
        %3397 = vmatprep.mubr.bf16.mxu0 0
        %3398 = vmatmul.mubr.bf16.gmra.mrb[0].mxu0 %v3363
        %v3399 = vpop.f32.mrb[0].mxu0
        %v3400 = vadd.f32 0.0, %v3399
        %v3401 = vpop.f32.mrb[0].mxu0
        %v3402 = vpop.f32.mrb[0].mxu0
        %v3403 = vadd.f32 0.0, %v3402
        %v3404 = vpop.f32.mrb[0].mxu0
        %3405 = vdwg.mxu0
        %v3406 = vmax.f32 %v3335, %v3400
        %v3407 = vmax.f32 %v3336, %v3403
        %v3408 = vlaneseq
        %v3409 = vshrl.u32 %v3408, 7
        %v3410 = vsub.s32 7, %v3409
        %v3411 = vrot.slane %v391, %v3410
        %vm3412 = vcmp.eq.s32.totalorder %v3411, %v1246
        %vm3413 = vcmp.eq.s32.totalorder %v3411, %v1247
        %v3414 = vsel %vm3412, 1.0, 0.0
        %v3415 = vsel %vm3413, 1.0, 0.0
        %v3416 = vpack.c.bf16 %v3415, %v3414
        %3417 = vxpose.xlu0.c.b16.start [1/8] %v3416, 128
        %3418 = vxpose.xlu0.c.b16.cont [2/8] 0, 128
        %3419 = vxpose.xlu0.c.b16.cont [3/8] 0, 128
        %3420 = vxpose.xlu0.c.b16.cont [4/8] 0, 128
        %3421 = vxpose.xlu0.c.b16.cont [5/8] 0, 128
        %3422 = vxpose.xlu0.c.b16.cont [6/8] 0, 128
        %3423 = vxpose.xlu0.c.b16.cont [7/8] 0, 128
        %3424 = vxpose.xlu0.c.b16.end [8/8] 0, 128
        %v3425 = vpop.trf.xlu0
        %v3426 = vpop.trf.xlu0
        %v3427 = vpop.trf.xlu0
        %v3428 = vpop.trf.xlu0
        %v3429 = vpop.trf.xlu0
        %v3430 = vpop.trf.xlu0
        %v3431 = vpop.trf.xlu0
        %v3432 = vpop.trf.xlu0
        %v3434 = vsel %vm668, %v3425, 0
        %3436 = vmatprep.subr.bf16.mxu0 0
        %3437 = vmatpush1.bf16.msra.mxu0 %v2912
        %3438 = vmatprep.subr.bf16.mxu0 0
        %3439 = vmatpush1.bf16.msra.mxu0 0
        %3440 = vmatprep.subr.bf16.mxu0 0
        %3441 = vmatpush1.bf16.msra.mxu0 0
        %3442 = vmatprep.subr.bf16.mxu0 0
        %3443 = vmatpush1.bf16.msra.mxu0 0
        %3444 = vmatprep.subr.bf16.mxu0 0
        %3445 = vmatpush1.bf16.msra.mxu0 0
        %3446 = vmatprep.subr.bf16.mxu0 0
        %3447 = vmatpush1.bf16.msra.mxu0 0
        %3448 = vmatprep.subr.bf16.mxu0 0
        %3449 = vmatpush1.bf16.msra.mxu0 0
        %3450 = vmatprep.subr.bf16.mxu0 0
        %3451 = vmatpush1.bf16.msra.mxu0 0
        %3452 = vmatprep.subr.bf16.mxu0 0
        %3453 = vmatpush1.bf16.msra.mxu0 0
        %3454 = vmatprep.subr.bf16.mxu0 0
        %3455 = vmatpush1.bf16.msra.mxu0 0
        %3456 = vmatprep.subr.bf16.mxu0 0
        %3457 = vmatpush1.bf16.msra.mxu0 0
        %3458 = vmatprep.subr.bf16.mxu0 0
        %3459 = vmatpush1.bf16.msra.mxu0 0
        %3460 = vmatprep.subr.bf16.mxu0 0
        %3461 = vmatpush1.bf16.msra.mxu0 0
        %3462 = vmatprep.subr.bf16.mxu0 0
        %3463 = vmatpush1.bf16.msra.mxu0 0
        %3464 = vmatprep.subr.bf16.mxu0 0
        %3465 = vmatpush1.bf16.msra.mxu0 0
        %3466 = vmatprep.subr.bf16.mxu0 0
        %3467 = vmatpush1.bf16.msra.mxu0 0
        %3468 = vmatprep.mubr.bf16.mxu0 0
        %3469 = vmatmul.mubr.bf16.gmra.mrb[0].mxu0 %v3434
        %v3470 = vpop.f32.mrb[0].mxu0
        %v3471 = vadd.f32 0.0, %v3470
        %v3472 = vpop.f32.mrb[0].mxu0
        %v3473 = vpop.f32.mrb[0].mxu0
        %v3474 = vadd.f32 0.0, %v3473
        %v3475 = vpop.f32.mrb[0].mxu0
        %3476 = vdwg.mxu0
        %v3477 = vmax.f32 %v3406, %v3471
        %v3478 = vmax.f32 %v3407, %v3474
        %s3479 = scalar_lea.vmem %s4, 208
        %v3480 = vld [vmem:[%s3479] sm:$0xf]
        %v3481 = vld [vmem:[%s3479 + $0x4] sm:$0xf]
        %v3482 = vld [vmem:[%s3479 + $0x8] sm:$0xf]
        %v3483 = vld [vmem:[%s3479 + $0xc] sm:$0xf]
        %v3488 = vunpack.c.l.b16 %v3480
        %v3489 = vunpack.c.l.b16 %v3481
        %v3490 = vunpack.c.l.b16 %v3482
        %v3491 = vunpack.c.l.b16 %v3483
        %v3492 = vpack.c.b16 %v3489, %v3488
        %v3493 = vpack.c.b16 %v3491, %v3490
        %3496 = vmatprep.subr.bf16.mxu0 0
        %3497 = vmatpush1.bf16.msra.mxu0 %v3492
        %3498 = vmatprep.subr.bf16.mxu0 0
        %3499 = vmatpush1.bf16.msra.mxu0 %v3493
        %3500 = vmatprep.subr.bf16.mxu0 0
        %3501 = vmatpush1.bf16.msra.mxu0 0
        %3502 = vmatprep.subr.bf16.mxu0 0
        %3503 = vmatpush1.bf16.msra.mxu0 0
        %3504 = vmatprep.subr.bf16.mxu0 0
        %3505 = vmatpush1.bf16.msra.mxu0 0
        %3506 = vmatprep.subr.bf16.mxu0 0
        %3507 = vmatpush1.bf16.msra.mxu0 0
        %3508 = vmatprep.subr.bf16.mxu0 0
        %3509 = vmatpush1.bf16.msra.mxu0 0
        %3510 = vmatprep.subr.bf16.mxu0 0
        %3511 = vmatpush1.bf16.msra.mxu0 0
        %3512 = vmatprep.subr.bf16.mxu0 0
        %3513 = vmatpush1.bf16.msra.mxu0 0
        %3514 = vmatprep.subr.bf16.mxu0 0
        %3515 = vmatpush1.bf16.msra.mxu0 0
        %3516 = vmatprep.subr.bf16.mxu0 0
        %3517 = vmatpush1.bf16.msra.mxu0 0
        %3518 = vmatprep.subr.bf16.mxu0 0
        %3519 = vmatpush1.bf16.msra.mxu0 0
        %3520 = vmatprep.subr.bf16.mxu0 0
        %3521 = vmatpush1.bf16.msra.mxu0 0
        %3522 = vmatprep.subr.bf16.mxu0 0
        %3523 = vmatpush1.bf16.msra.mxu0 0
        %3524 = vmatprep.subr.bf16.mxu0 0
        %3525 = vmatpush1.bf16.msra.mxu0 0
        %3526 = vmatprep.subr.bf16.mxu0 0
        %3527 = vmatpush1.bf16.msra.mxu0 0
        %3528 = vmatprep.mubr.bf16.mxu0 0
        %3529 = vmatmul.mubr.bf16.gmra.mrb[0].mxu0 %v2122
        %v3530 = vpop.f32.mrb[0].mxu0
        %v3531 = vadd.f32 0.0, %v3530
        %v3532 = vpop.f32.mrb[0].mxu0
        %v3533 = vpop.f32.mrb[0].mxu0
        %v3534 = vadd.f32 0.0, %v3533
        %v3535 = vpop.f32.mrb[0].mxu0
        %3536 = vdwg.mxu0
        %v3537 = vadd.f32 %v3477, %v3531
        %v3538 = vadd.f32 %v3478, %v3534
        %v3539 = vld [vmem:[%s5 + $0xa] sm:$0x1]
        %v3540 = vlaneseq
        %v3541 = vshrl.u32 %v3540, 7
        %v3542 = vsub.s32 0, %v3541
        %v3543 = vrot.slane %v3539, %v3542
        %v3544 = vadd.f32 %v3537, %v3543
        %v3545 = vadd.f32 %v3538, %v3543
        %vm3546 = vcmp.ge.f32.partialorder %v3544, 0.0
        %vm3547 = vcmp.ge.f32.partialorder %v3545, 0.0
        %v3548 = vmul.f32 %v3544, 0.2
        %v3549 = vmul.f32 %v3545, 0.2
        %v3550 = vsel %vm3546, %v3544, %v3548
        %v3551 = vsel %vm3547, %v3545, %v3549
        %s3552 = scalar_lea.vmem %s4, 224
        %v3553 = vld [vmem:[%s3552] sm:$0xf]
        %v3554 = vld [vmem:[%s3552 + $0x4] sm:$0xf]
        %v3555 = vld [vmem:[%s3552 + $0x8] sm:$0xf]
        %v3556 = vld [vmem:[%s3552 + $0xc] sm:$0xf]
        %v3557 = vpack.c.bf16 %v2851, %v2848
        %v3562 = vunpack.c.l.b16 %v3553
        %v3563 = vunpack.c.l.b16 %v3554
        %v3564 = vunpack.c.l.b16 %v3555
        %v3565 = vunpack.c.l.b16 %v3556
        %v3566 = vpack.c.b16 %v3563, %v3562
        %v3567 = vpack.c.b16 %v3565, %v3564
        %v3571 = vsel %vm394, %v3557, 0
        %3573 = vmatprep.subr.bf16.mxu0 0
        %3574 = vmatpush1.bf16.msra.mxu0 %v3566
        %3575 = vmatprep.subr.bf16.mxu0 0
        %3576 = vmatpush1.bf16.msra.mxu0 %v3567
        %3577 = vmatprep.subr.bf16.mxu0 0
        %3578 = vmatpush1.bf16.msra.mxu0 0
        %3579 = vmatprep.subr.bf16.mxu0 0
        %3580 = vmatpush1.bf16.msra.mxu0 0
        %3581 = vmatprep.subr.bf16.mxu0 0
        %3582 = vmatpush1.bf16.msra.mxu0 0
        %3583 = vmatprep.subr.bf16.mxu0 0
        %3584 = vmatpush1.bf16.msra.mxu0 0
        %3585 = vmatprep.subr.bf16.mxu0 0
        %3586 = vmatpush1.bf16.msra.mxu0 0
        %3587 = vmatprep.subr.bf16.mxu0 0
        %3588 = vmatpush1.bf16.msra.mxu0 0
        %3589 = vmatprep.subr.bf16.mxu0 0
        %3590 = vmatpush1.bf16.msra.mxu0 0
        %3591 = vmatprep.subr.bf16.mxu0 0
        %3592 = vmatpush1.bf16.msra.mxu0 0
        %3593 = vmatprep.subr.bf16.mxu0 0
        %3594 = vmatpush1.bf16.msra.mxu0 0
        %3595 = vmatprep.subr.bf16.mxu0 0
        %3596 = vmatpush1.bf16.msra.mxu0 0
        %3597 = vmatprep.subr.bf16.mxu0 0
        %3598 = vmatpush1.bf16.msra.mxu0 0
        %3599 = vmatprep.subr.bf16.mxu0 0
        %3600 = vmatpush1.bf16.msra.mxu0 0
        %3601 = vmatprep.subr.bf16.mxu0 0
        %3602 = vmatpush1.bf16.msra.mxu0 0
        %3603 = vmatprep.subr.bf16.mxu0 0
        %3604 = vmatpush1.bf16.msra.mxu0 0
        %3605 = vmatprep.mubr.bf16.mxu0 0
        %3606 = vmatmul.mubr.bf16.gmra.mrb[0].mxu0 %v3571
        %v3607 = vpop.f32.mrb[0].mxu0
        %v3608 = vadd.f32 0.0, %v3607
        %v3609 = vpop.f32.mrb[0].mxu0
        %v3610 = vpop.f32.mrb[0].mxu0
        %v3611 = vadd.f32 0.0, %v3610
        %v3612 = vpop.f32.mrb[0].mxu0
        %3613 = vdwg.mxu0
        %v3614 = vadd.f32 %v2020, %v3608
        %v3615 = vadd.f32 %v2021, %v3611
        %s3616 = scalar_lea.vmem %s4, 240
        %v3617 = vld [vmem:[%s3616] sm:$0xf]
        %v3618 = vld [vmem:[%s3616 + $0x4] sm:$0xf]
        %v3619 = vld [vmem:[%s3616 + $0x8] sm:$0xf]
        %v3620 = vld [vmem:[%s3616 + $0xc] sm:$0xf]
        %v3621 = vpack.c.bf16 %v3551, %v3550
        %v3626 = vunpack.c.l.b16 %v3617
        %v3627 = vunpack.c.l.b16 %v3618
        %v3628 = vunpack.c.l.b16 %v3619
        %v3629 = vunpack.c.l.b16 %v3620
        %v3630 = vpack.c.b16 %v3627, %v3626
        %v3631 = vpack.c.b16 %v3629, %v3628
        %v3635 = vsel %vm394, %v3621, 0
        %3637 = vmatprep.subr.bf16.mxu0 0
        %3638 = vmatpush1.bf16.msra.mxu0 %v3630
        %3639 = vmatprep.subr.bf16.mxu0 0
        %3640 = vmatpush1.bf16.msra.mxu0 %v3631
        %3641 = vmatprep.subr.bf16.mxu0 0
        %3642 = vmatpush1.bf16.msra.mxu0 0
        %3643 = vmatprep.subr.bf16.mxu0 0
        %3644 = vmatpush1.bf16.msra.mxu0 0
        %3645 = vmatprep.subr.bf16.mxu0 0
        %3646 = vmatpush1.bf16.msra.mxu0 0
        %3647 = vmatprep.subr.bf16.mxu0 0
        %3648 = vmatpush1.bf16.msra.mxu0 0
        %3649 = vmatprep.subr.bf16.mxu0 0
        %3650 = vmatpush1.bf16.msra.mxu0 0
        %3651 = vmatprep.subr.bf16.mxu0 0
        %3652 = vmatpush1.bf16.msra.mxu0 0
        %3653 = vmatprep.subr.bf16.mxu0 0
        %3654 = vmatpush1.bf16.msra.mxu0 0
        %3655 = vmatprep.subr.bf16.mxu0 0
        %3656 = vmatpush1.bf16.msra.mxu0 0
        %3657 = vmatprep.subr.bf16.mxu0 0
        %3658 = vmatpush1.bf16.msra.mxu0 0
        %3659 = vmatprep.subr.bf16.mxu0 0
        %3660 = vmatpush1.bf16.msra.mxu0 0
        %3661 = vmatprep.subr.bf16.mxu0 0
        %3662 = vmatpush1.bf16.msra.mxu0 0
        %3663 = vmatprep.subr.bf16.mxu0 0
        %3664 = vmatpush1.bf16.msra.mxu0 0
        %3665 = vmatprep.subr.bf16.mxu0 0
        %3666 = vmatpush1.bf16.msra.mxu0 0
        %3667 = vmatprep.subr.bf16.mxu0 0
        %3668 = vmatpush1.bf16.msra.mxu0 0
        %3669 = vmatprep.mubr.bf16.mxu0 0
        %3670 = vmatmul.mubr.bf16.gmra.mrb[0].mxu0 %v3635
        %v3671 = vpop.f32.mrb[0].mxu0
        %v3672 = vadd.f32 0.0, %v3671
        %v3673 = vpop.f32.mrb[0].mxu0
        %v3674 = vpop.f32.mrb[0].mxu0
        %v3675 = vadd.f32 0.0, %v3674
        %v3676 = vpop.f32.mrb[0].mxu0
        %3677 = vdwg.mxu0
        %v3678 = vadd.f32 %v3614, %v3672
        %v3679 = vadd.f32 %v3615, %v3675
        %v3680 = vld [vmem:[%s5 + $0xb] sm:$0x1]
        %v3681 = vlaneseq
        %v3682 = vshrl.u32 %v3681, 7
        %v3683 = vsub.s32 0, %v3682
        %v3684 = vrot.slane %v3680, %v3683
        %v3685 = vadd.f32 %v3678, %v3684
        %v3686 = vadd.f32 %v3679, %v3684
        %v3687 = vld [vmem:[%s5 + $0xc] sm:$0x1]
        %v3688 = vld [vmem:[%s5 + $0xd] sm:$0x1]
        %v3689 = vsel %vm394, %v3685, 0.0
        %3690 = vadd.xlane.f32.xlu0 %v3689
        %v3691 = vpop.xlane.xlu0 %3690
        %v3692 = vsel %vm394, %v3686, 0.0
        %3693 = vadd.xlane.f32.xlu0 %v3692
        %v3694 = vpop.xlane.xlu0 %3693
        %v3695 = vmul.f32 %v3691, %v401
        %v3696 = vmul.f32 %v3694, %v401
        %v3697 = vsub.f32 %v3685, %v3695
        %v3698 = vsub.f32 %v3686, %v3696
        %v3699 = vmul.f32 %v3697, %v3697
        %v3700 = vmul.f32 %v3698, %v3698
        %v3701 = vsel %vm394, %v3699, 0.0
        %3702 = vadd.xlane.f32.xlu0 %v3701
        %v3703 = vpop.xlane.xlu0 %3702
        %v3704 = vsel %vm394, %v3700, 0.0
        %3705 = vadd.xlane.f32.xlu0 %v3704
        %v3706 = vpop.xlane.xlu0 %3705
        %v3707 = vmul.f32 %v3703, %v401
        %v3708 = vmul.f32 %v3706, %v401
        %v3709 = vadd.f32 %v3707, 1e-05
        %v3710 = vadd.f32 %v3708, 1e-05
        %v3711 = vrsqrt.pop %v3709
        %v3712 = vrsqrt.pop %v3710
        %v3713 = vmul.f32 %v3697, %v3711
        %v3714 = vmul.f32 %v3698, %v3712
        %v3715 = vlaneseq
        %v3716 = vshrl.u32 %v3715, 7
        %v3717 = vsub.s32 0, %v3716
        %v3718 = vrot.slane %v3687, %v3717
        %v3719 = vmul.f32 %v3713, %v3718
        %v3720 = vmul.f32 %v3714, %v3718
        %v3721 = vlaneseq
        %v3722 = vshrl.u32 %v3721, 7
        %v3723 = vsub.s32 0, %v3722
        %v3724 = vrot.slane %v3688, %v3723
        %v3725 = vadd.f32 %v3719, %v3724
        %v3726 = vadd.f32 %v3720, %v3724
        %v3727 = vld [vmem:[%s6] sm:$0xf]
        %v3728 = vld [vmem:[%s6 + $0x4] sm:$0xf]
        %v3729 = vld [vmem:[%s6 + $0x8] sm:$0xf]
        %v3730 = vld [vmem:[%s6 + $0xc] sm:$0xf]
        %v3731 = vpack.c.bf16 %v3726, %v3725
        %v3732 = vld [vmem:[%s7] sm:$0x1]
        %v3734 = vlaneseq
        %v3735 = vshrl.u32 %v3734, 7
        %v3736 = vsub.s32 0, %v3735
        %v3737 = vrot.slane %v3732, %v3736
        %v3743 = vunpack.c.l.b16 %v3727
        %v3744 = vunpack.c.l.b16 %v3728
        %v3745 = vunpack.c.l.b16 %v3729
        %v3746 = vunpack.c.l.b16 %v3730
        %v3747 = vpack.c.b16 %v3744, %v3743
        %v3748 = vpack.c.b16 %v3746, %v3745
        %v3752 = vsel %vm394, %v3731, 0
        %3754 = vmatprep.subr.bf16.mxu0 0
        %3755 = vmatpush1.bf16.msra.mxu0 %v3747
        %3756 = vmatprep.subr.bf16.mxu0 0
        %3757 = vmatpush1.bf16.msra.mxu0 %v3748
        %3758 = vmatprep.subr.bf16.mxu0 0
        %3759 = vmatpush1.bf16.msra.mxu0 0
        %3760 = vmatprep.subr.bf16.mxu0 0
        %3761 = vmatpush1.bf16.msra.mxu0 0
        %3762 = vmatprep.subr.bf16.mxu0 0
        %3763 = vmatpush1.bf16.msra.mxu0 0
        %3764 = vmatprep.subr.bf16.mxu0 0
        %3765 = vmatpush1.bf16.msra.mxu0 0
        %3766 = vmatprep.subr.bf16.mxu0 0
        %3767 = vmatpush1.bf16.msra.mxu0 0
        %3768 = vmatprep.subr.bf16.mxu0 0
        %3769 = vmatpush1.bf16.msra.mxu0 0
        %3770 = vmatprep.subr.bf16.mxu0 0
        %3771 = vmatpush1.bf16.msra.mxu0 0
        %3772 = vmatprep.subr.bf16.mxu0 0
        %3773 = vmatpush1.bf16.msra.mxu0 0
        %3774 = vmatprep.subr.bf16.mxu0 0
        %3775 = vmatpush1.bf16.msra.mxu0 0
        %3776 = vmatprep.subr.bf16.mxu0 0
        %3777 = vmatpush1.bf16.msra.mxu0 0
        %3778 = vmatprep.subr.bf16.mxu0 0
        %3779 = vmatpush1.bf16.msra.mxu0 0
        %3780 = vmatprep.subr.bf16.mxu0 0
        %3781 = vmatpush1.bf16.msra.mxu0 0
        %3782 = vmatprep.subr.bf16.mxu0 0
        %3783 = vmatpush1.bf16.msra.mxu0 0
        %3784 = vmatprep.subr.bf16.mxu0 0
        %3785 = vmatpush1.bf16.msra.mxu0 0
        %3786 = vmatprep.mubr.bf16.mxu0 0
        %3787 = vmatmul.mubr.bf16.gmra.mrb[0].mxu0 %v3752
        %v3788 = vpop.f32.mrb[0].mxu0
        %v3789 = vadd.f32 %v3737, %v3788
        %v3790 = vpop.f32.mrb[0].mxu0
        %v3791 = vpop.f32.mrb[0].mxu0
        %v3792 = vadd.f32 %v3737, %v3791
        %v3793 = vpop.f32.mrb[0].mxu0
        %3794 = vdwg.mxu0
        %v3795 = vmul.f32 %v3789, 0.5
        %v3796 = vmul.f32 %v3792, 0.5
        %v3797 = vmul.f32 %v3789, 0.044715
        %v3798 = vmul.f32 %v3792, 0.044715
        %v3799 = vmul.f32 %v3797, %v3789
        %v3800 = vmul.f32 %v3798, %v3792
        %v3801 = vmul.f32 %v3799, %v3789
        %v3802 = vmul.f32 %v3800, %v3792
        %v3803 = vadd.f32 %v3789, %v3801
        %v3804 = vadd.f32 %v3792, %v3802
        %v3805 = vmul.f32 %v3803, 0.7978846
        %v3806 = vmul.f32 %v3804, 0.7978846
        %v3807 = vtanh.pop %v3805
        %v3808 = vtanh.pop %v3806
        %v3809 = vadd.f32 %v3807, 1.0
        %v3810 = vadd.f32 %v3808, 1.0
        %v3811 = vmul.f32 %v3795, %v3809
        %v3812 = vmul.f32 %v3796, %v3810
        %v3813 = vld [vmem:[%s8] sm:$0xf]
        %v3814 = vld [vmem:[%s8 + $0x4] sm:$0xf]
        %v3815 = vld [vmem:[%s8 + $0x8] sm:$0xf]
        %v3816 = vld [vmem:[%s8 + $0xc] sm:$0xf]
        %v3817 = vld [vmem:[%s8 + $0x10] sm:$0xf]
        %v3818 = vld [vmem:[%s8 + $0x14] sm:$0xf]
        %v3819 = vld [vmem:[%s8 + $0x18] sm:$0xf]
        %v3820 = vld [vmem:[%s8 + $0x1c] sm:$0xf]
        %v3821 = vld [vmem:[%s8 + $0x20] sm:$0xf]
        %v3822 = vld [vmem:[%s8 + $0x24] sm:$0xf]
        %v3823 = vld [vmem:[%s8 + $0x28] sm:$0xf]
        %v3824 = vld [vmem:[%s8 + $0x2c] sm:$0xf]
        %v3825 = vld [vmem:[%s8 + $0x30] sm:$0xf]
        %v3826 = vld [vmem:[%s8 + $0x34] sm:$0xf]
        %v3827 = vld [vmem:[%s8 + $0x38] sm:$0xf]
        %v3828 = vld [vmem:[%s8 + $0x3c] sm:$0xf]
        %v3829 = vpack.c.bf16 %v3812, %v3811
        %v3846 = vunpack.c.l.b16 %v3813
        %v3847 = vunpack.c.l.b16 %v3814
        %v3848 = vunpack.c.l.b16 %v3815
        %v3849 = vunpack.c.l.b16 %v3816
        %v3850 = vunpack.c.l.b16 %v3817
        %v3851 = vunpack.c.l.b16 %v3818
        %v3852 = vunpack.c.l.b16 %v3819
        %v3853 = vunpack.c.l.b16 %v3820
        %v3854 = vunpack.c.l.b16 %v3821
        %v3855 = vunpack.c.l.b16 %v3822
        %v3856 = vunpack.c.l.b16 %v3823
        %v3857 = vunpack.c.l.b16 %v3824
        %v3858 = vunpack.c.l.b16 %v3825
        %v3859 = vunpack.c.l.b16 %v3826
        %v3860 = vunpack.c.l.b16 %v3827
        %v3861 = vunpack.c.l.b16 %v3828
        %v3862 = vpack.c.b16 %v3847, %v3846
        %v3863 = vpack.c.b16 %v3849, %v3848
        %v3864 = vpack.c.b16 %v3851, %v3850
        %v3865 = vpack.c.b16 %v3853, %v3852
        %v3866 = vpack.c.b16 %v3855, %v3854
        %v3867 = vpack.c.b16 %v3857, %v3856
        %v3868 = vpack.c.b16 %v3859, %v3858
        %v3869 = vpack.c.b16 %v3861, %v3860
        %3878 = vmatprep.subr.bf16.mxu0 0
        %3879 = vmatpush1.bf16.msra.mxu0 %v3862
        %3880 = vmatprep.subr.bf16.mxu0 0
        %3881 = vmatpush1.bf16.msra.mxu0 %v3863
        %3882 = vmatprep.subr.bf16.mxu0 0
        %3883 = vmatpush1.bf16.msra.mxu0 %v3864
        %3884 = vmatprep.subr.bf16.mxu0 0
        %3885 = vmatpush1.bf16.msra.mxu0 %v3865
        %3886 = vmatprep.subr.bf16.mxu0 0
        %3887 = vmatpush1.bf16.msra.mxu0 %v3866
        %3888 = vmatprep.subr.bf16.mxu0 0
        %3889 = vmatpush1.bf16.msra.mxu0 %v3867
        %3890 = vmatprep.subr.bf16.mxu0 0
        %3891 = vmatpush1.bf16.msra.mxu0 %v3868
        %3892 = vmatprep.subr.bf16.mxu0 0
        %3893 = vmatpush1.bf16.msra.mxu0 %v3869
        %3894 = vmatprep.subr.bf16.mxu0 0
        %3895 = vmatpush1.bf16.msra.mxu0 0
        %3896 = vmatprep.subr.bf16.mxu0 0
        %3897 = vmatpush1.bf16.msra.mxu0 0
        %3898 = vmatprep.subr.bf16.mxu0 0
        %3899 = vmatpush1.bf16.msra.mxu0 0
        %3900 = vmatprep.subr.bf16.mxu0 0
        %3901 = vmatpush1.bf16.msra.mxu0 0
        %3902 = vmatprep.subr.bf16.mxu0 0
        %3903 = vmatpush1.bf16.msra.mxu0 0
        %3904 = vmatprep.subr.bf16.mxu0 0
        %3905 = vmatpush1.bf16.msra.mxu0 0
        %3906 = vmatprep.subr.bf16.mxu0 0
        %3907 = vmatpush1.bf16.msra.mxu0 0
        %3908 = vmatprep.subr.bf16.mxu0 0
        %3909 = vmatpush1.bf16.msra.mxu0 0
        %3910 = vmatprep.mubr.bf16.mxu0 0
        %3911 = vmatmul.mubr.bf16.gmra.mrb[0].mxu0 %v3829
        %v3912 = vpop.f32.mrb[0].mxu0
        %v3913 = vadd.f32 0.0, %v3912
        %v3914 = vpop.f32.mrb[0].mxu0
        %v3915 = vpop.f32.mrb[0].mxu0
        %v3916 = vadd.f32 0.0, %v3915
        %v3917 = vpop.f32.mrb[0].mxu0
        %3918 = vdwg.mxu0
        %v3919 = vadd.f32 %v3685, %v3913
        %v3920 = vadd.f32 %v3686, %v3916
        %v3921 = vld [vmem:[%s5 + $0xe] sm:$0x1]
        %v3922 = vlaneseq
        %v3923 = vshrl.u32 %v3922, 7
        %v3924 = vsub.s32 0, %v3923
        %v3925 = vrot.slane %v3921, %v3924
        %v3926 = vadd.f32 %v3919, %v3925
        %v3927 = vadd.f32 %v3920, %v3925
        %3928 = vst.msk [vmem:[%s366] sm:$0xff] %vm394, %v3926
        %3929 = vst.msk [vmem:[%s366 + $0x8] sm:$0xff] %vm394, %v3927
        %s3930 = sand.u32 %s240, 1
        %s3931 = scalar_lea.sflag [#allocation4], %s3930
        %s3932 = sand.u32 %s240, 1
        %s3933 = smul.addr %s3932, 16
        %s3934 = scalar_lea.vmem [#allocation3], %s3933
        // Predicated region
        $region57: #{transformer_forward.1} parent=55 // pred_check
          %p3935 = pneg %p250
        $region58: #{transformer_forward.1} parent=55 // pred_check_branch
          %3937 = sbr.rel (%p3935) target = $region60
        $region59: #{transformer_forward.1} parent=55 // pred_region
          %s3939 = ssub.s32 256, 256
          %3940 = vsyncadd %s3931, %s3939
          %s3941 = smul.addr %s23, 2
          %s3942 = smul.addr %s3941, 128
          %s3943 = scalar_lea.hbm %s9, %s3942
          %s3944 = sshll.u32 %s3934, 4
          %s3945 = int_to_ptr.vmem [resolvable:$true] %s3944
          %3950 = dma.vmem_to_hbm [thread:$0]  %s3945, 256, %s3943, %s3931, 128, 128, 8
        $region60: #{transformer_forward.1} parent=55 // pred_fallthru
          _
      $region56: #{transformer_forward.1} parent=5 // pred_fallthru
        _
      %p3951 = scmp.le.s32.totalorder 2, %s18
      // Predicated region
      $region61: #{transformer_forward.1} parent=5 // pred_check
        %p3952 = pneg %p3951
      $region62: #{transformer_forward.1} parent=5 // pred_check_branch
        %3954 = sbr.rel (%p3952) target = $region64
      $region63: #{transformer_forward.1} parent=5 // pred_region
        %s3955 = ssub.s32 %s18, 2
        // Predicated region
        $region65: #{transformer_forward.1} parent=63 // pred_check
          %p3956 = pneg %p256
        $region66: #{transformer_forward.1} parent=63 // pred_check_branch
          %3958 = sbr.rel (%p3956) target = $region68
        $region67: #{transformer_forward.1} parent=63 // pred_region
          %s3959 = sand.u32 %s241, 1
          %s3960 = scalar_lea.sflag [#allocation4], %s3959
          %s3961 = sand.u32 %s241, 1
          %s3962 = smul.addr %s3961, 16
          %s3963 = scalar_lea.vmem [#allocation3], %s3962
          %3964 = dma.done %s3960, 256
        $region68: #{transformer_forward.1} parent=63 // pred_fallthru
          _
      $region64: #{transformer_forward.1} parent=5 // pred_fallthru
        _
    $region6: #{transformer_forward.1} parent=1 // loop_footer
      %s22 = sadd.s32 1, %s18
    $region7: #{transformer_forward.1} parent=1 // loop_footer_branch
      %17 = sbr.rel target = $region3
    $region8: #{transformer_forward.1} parent=1 // loop_exit
      _
    %3965 = vsyncpa [#allocation4], 1
    %s3966 = scalar_lea.sflag [#allocation4], 1
    %3967 = vsyncpa %s3966, 1

</llo_original>
